<compile_context>
chip_gen: v7x
topology: tpu7x:2x2x1
jax: 0.10.0
libtpu: 0.0.40
codegen_flags: <defaults>
</compile_context>

<pallas_src>
import jax
import jax.numpy as jnp
from jax.experimental import pallas as pl
from jax.experimental.pallas import tpu as pltpu

LANES = 128
NEG_PAD = -1e30  # bias for padded vocab columns -> exp() underflows to 0


def _round_up(x, m):
    return ((x + m - 1) // m) * m


def decoder_rnn_kernel(
    ids_ref,      # (T,)       int32, SMEM
    emb_ref,      # (V, Hp)    VMEM, weight dtype
    h0_ref,       # (1, Hp)    VMEM, f32 initial hidden
    w_x_ref,      # (Hp, 3Hp)  VMEM  [W_ir | W_iz | W_in]
    w_h_ref,      # (Hp, 3Hp)  VMEM  [W_hr | W_hz | W_hn]
    b_x_ref,      # (1, 3Hp)   VMEM, f32  [b_ir | b_iz | b_in]
    b_h_ref,      # (1, 3Hp)   VMEM, f32  [b_hr | b_hz | b_hn]
    w_out_ref,    # (Hp, Vp)   VMEM
    b_out_ref,    # (1, Vp)    VMEM, f32 (padded cols = NEG_PAD)
    logp_ref,     # (T, Vp)    VMEM out: per-step log-probs, written back once
    h_out_ref,    # (1, Hp)    VMEM out: final hidden
):
    Hp = h0_ref.shape[1]
    V = emb_ref.shape[0]
    T = logp_ref.shape[0]
    wdt = w_x_ref.dtype

    # Small biases hoisted out of the decode loop.
    b_x = b_x_ref[...]
    b_h = b_h_ref[...]
    b_out = b_out_ref[...]

    def step(t, h):
        # Bounds-safe embedding gather (table is VMEM-resident) + ReLU.
        tok = jnp.minimum(jnp.maximum(ids_ref[t], 0), V - 1)
        x = jnp.maximum(emb_ref[pl.ds(tok, 1), :], 0.0)          # (1, Hp), wdt

        # Two M=1 MXU passes over the fused 3-gate weights (no concat, no
        # zero blocks); f32 accumulation, f32 gate math.
        gx = jnp.dot(x.astype(wdt), w_x_ref[...],
                     preferred_element_type=jnp.float32) + b_x   # (1, 3Hp)
        gh = jnp.dot(h.astype(wdt), w_h_ref[...],
                     preferred_element_type=jnp.float32) + b_h   # (1, 3Hp)

        r = jax.nn.sigmoid(gx[:, 0:Hp] + gh[:, 0:Hp])
        z = jax.nn.sigmoid(gx[:, Hp:2 * Hp] + gh[:, Hp:2 * Hp])
        n = jnp.tanh(gx[:, 2 * Hp:3 * Hp] + r * gh[:, 2 * Hp:3 * Hp])
        h_new = (1.0 - z) * n + z * h                            # (1, Hp) f32

        # output = LogSoftmax(Linear(h_new), dim=1); lane-dense row store into
        # the resident (T, Vp) output block.
        logits = jnp.dot(h_new.astype(wdt), w_out_ref[...],
                         preferred_element_type=jnp.float32) + b_out
        m = jnp.max(logits, axis=1, keepdims=True)
        shifted = logits - m
        lse = jnp.log(jnp.sum(jnp.exp(shifted), axis=1, keepdims=True))
        logp_ref[pl.ds(t, 1), :] = shifted - lse
        return h_new

    h_final = jax.lax.fori_loop(0, T, step, h0_ref[...], unroll=True)
    h_out_ref[...] = h_final


def fuse_params(p, weight_dtype=jnp.float32):
    """Offline fusion + lane padding of the GRU/embedding/output parameters."""
    H = p["w_ir"].shape[0]
    V = p["embedding"].shape[0]
    V_out = p["w_out"].shape[1]
    Hp = _round_up(H, LANES)
    Vp = _round_up(V_out, LANES)

    def padw(a, rows, cols):
        return jnp.pad(a, ((0, rows - a.shape[0]), (0, cols - a.shape[1])))

    w_x = jnp.concatenate(
        [padw(p["w_ir"], Hp, Hp), padw(p["w_iz"], Hp, Hp), padw(p["w_in"], Hp, Hp)],
        axis=1).astype(weight_dtype)                             # (Hp, 3Hp)
    w_h = jnp.concatenate(
        [padw(p["w_hr"], Hp, Hp), padw(p["w_hz"], Hp, Hp), padw(p["w_hn"], Hp, Hp)],
        axis=1).astype(weight_dtype)                             # (Hp, 3Hp)
    b_x = jnp.concatenate(
        [padw(p["b_ir"], 1, Hp), padw(p["b_iz"], 1, Hp), padw(p["b_in"], 1, Hp)],
        axis=1).astype(jnp.float32)                              # (1, 3Hp)
    b_h = jnp.concatenate(
        [padw(p["b_hr"], 1, Hp), padw(p["b_hz"], 1, Hp), padw(p["b_hn"], 1, Hp)],
        axis=1).astype(jnp.float32)                              # (1, 3Hp)
    emb = padw(p["embedding"], V, Hp).astype(weight_dtype)       # (V, Hp)
    w_out = padw(p["w_out"], Hp, Vp).astype(weight_dtype)        # (Hp, Vp)
    b_out = jnp.full((1, Vp), NEG_PAD, jnp.float32)
    b_out = b_out.at[:, :V_out].set(p["b_out"].astype(jnp.float32))
    return {"embedding": emb, "w_x": w_x, "w_h": w_h,
            "b_x": b_x, "b_h": b_h, "w_out": w_out, "b_out": b_out}


def decoder_rnn_decode(token_ids, hidden, fused):
    """Run T fused decode steps (one DecoderRNN.forward per step).

    token_ids: (T,) int32; hidden: (1, H) or (1, 1, H) float32.
    Returns (log_probs (T, V), final hidden (1, H)).
    """
    T = token_ids.shape[0]
    V = fused["embedding"].shape[0]      # logical vocab (rows not padded)
    Hp = fused["embedding"].shape[1]
    Vp = fused["w_out"].shape[1]

    hidden = hidden.reshape(1, -1).astype(jnp.float32)
    H = hidden.shape[1]
    h0 = jnp.zeros((1, Hp), jnp.float32).at[:, :H].set(hidden)

    def _nbytes(a):
        return a.size * a.dtype.itemsize

    resident = (sum(_nbytes(v) for v in fused.values())
                + _nbytes(h0) + T * Vp * 4 + Hp * 4)
    vmem_limit = int(min(max(2 * resident + (2 << 20), 16 << 20), 64 << 20))

    vmem = pl.BlockSpec(memory_space=pltpu.MemorySpace.VMEM)
    smem = pl.BlockSpec(memory_space=pltpu.MemorySpace.SMEM)

    log_probs, h_final = pl.pallas_call(
        decoder_rnn_kernel,
        out_shape=(
            jax.ShapeDtypeStruct((T, Vp), jnp.float32),
            jax.ShapeDtypeStruct((1, Hp), jnp.float32),
        ),
        in_specs=[smem, vmem, vmem, vmem, vmem, vmem, vmem, vmem, vmem],
        out_specs=(vmem, vmem),
        compiler_params=pltpu.CompilerParams(vmem_limit_bytes=vmem_limit),
    )(
        token_ids.astype(jnp.int32),
        fused["embedding"], h0,
        fused["w_x"], fused["w_h"], fused["b_x"], fused["b_h"],
        fused["w_out"], fused["b_out"],
    )
    return log_probs[:, :V], h_final[:, :H]


decoder_rnn_decode_jit = jax.jit(decoder_rnn_decode)


def decoder_rnn_forward(token_id, hidden, fused):
    """Single step, matching DecoderRNN.forward(input, hidden) -> (output, hidden)."""
    lp, h = decoder_rnn_decode_jit(
        jnp.reshape(token_id, (1,)).astype(jnp.int32), hidden, fused)
    return lp, h


def make_params(key, hidden_size, output_size):
    ks = jax.random.split(key, 12)
    s = 0.1
    return {
        "embedding": jax.random.normal(ks[0], (output_size, hidden_size), jnp.float32) * s,
        # GRU weights stored pre-transposed as (in_features, out_features).
        "w_ir": jax.random.normal(ks[1], (hidden_size, hidden_size), jnp.float32) * s,
        "w_iz": jax.random.normal(ks[2], (hidden_size, hidden_size), jnp.float32) * s,
        "w_in": jax.random.normal(ks[3], (hidden_size, hidden_size), jnp.float32) * s,
        "w_hr": jax.random.normal(ks[4], (hidden_size, hidden_size), jnp.float32) * s,
        "w_hz": jax.random.normal(ks[5], (hidden_size, hidden_size), jnp.float32) * s,
        "w_hn": jax.random.normal(ks[6], (hidden_size, hidden_size), jnp.float32) * s,
        "b_ir": jax.random.normal(ks[7], (1, hidden_size), jnp.float32) * s,
        "b_iz": jax.random.normal(ks[8], (1, hidden_size), jnp.float32) * s,
        "b_in": jax.random.normal(ks[9], (1, hidden_size), jnp.float32) * s,
        "b_hr": jnp.zeros((1, hidden_size), jnp.float32),
        "b_hz": jnp.zeros((1, hidden_size), jnp.float32),
        "b_hn": jnp.zeros((1, hidden_size), jnp.float32),
        "w_out": jax.random.normal(ks[10], (hidden_size, output_size), jnp.float32) * s,
        "b_out": jax.random.normal(ks[11], (1, output_size), jnp.float32) * s,
    }


def reference_decode(token_ids, hidden, p):
    """Pure-JAX step-by-step reference matching PyTorch nn.GRU + Linear + LogSoftmax."""
    h = hidden.reshape(1, -1)
    logps = []
    for i in range(int(token_ids.shape[0])):
        x = jnp.maximum(p["embedding"][token_ids[i]].reshape(1, -1), 0.0)
        i_r = x @ p["w_ir"] + p["b_ir"]
        i_z = x @ p["w_iz"] + p["b_iz"]
        i_n = x @ p["w_in"] + p["b_in"]
        h_r = h @ p["w_hr"] + p["b_hr"]
        h_z = h @ p["w_hz"] + p["b_hz"]
        h_n = h @ p["w_hn"] + p["b_hn"]
        r = jax.nn.sigmoid(i_r + h_r)
        z = jax.nn.sigmoid(i_z + h_z)
        n = jnp.tanh(i_n + r * h_n)
        h = (1.0 - z) * n + z * h
        logits = h @ p["w_out"] + p["b_out"]
        logps.append(jax.nn.log_softmax(logits, axis=1))
    return jnp.concatenate(logps, axis=0), h


if __name__ == "__main__":
    HIDDEN = 32    # logical hidden size (padded to 128 lanes inside fuse_params)
    OUTPUT = 128   # vocab size
    T = 8          # decode steps fused into one kernel launch

    key = jax.random.PRNGKey(0)
    pkey, tkey = jax.random.split(key)
    params = make_params(pkey, HIDDEN, OUTPUT)
    token_ids = jax.random.randint(tkey, (T,), 0, OUTPUT, dtype=jnp.int32)
    hidden0 = jnp.zeros((1, HIDDEN), jnp.float32)  # initHidden()

    ref_lp, ref_h = reference_decode(token_ids, hidden0, params)

    # f32 weights: tight correctness check of the fused multi-step decode.
    fused_f32 = fuse_params(params, weight_dtype=jnp.float32)
    log_probs, h_final = decoder_rnn_decode_jit(token_ids, hidden0, fused_f32)
    jax.block_until_ready((log_probs, h_final))
    assert log_probs.shape == (T, OUTPUT) and h_final.shape == (1, HIDDEN)
    assert jnp.allclose(log_probs, ref_lp, atol=2e-4), "multi-step log_probs mismatch"
    assert jnp.allclose(h_final, ref_h, atol=2e-4), "multi-step hidden mismatch"

    # Single-step call matching DecoderRNN.forward(input, hidden) exactly.
    lp1, h1 = decoder_rnn_forward(token_ids[0], hidden0, fused_f32)
    jax.block_until_ready((lp1, h1))
    assert lp1.shape == (1, OUTPUT) and h1.shape == (1, HIDDEN)
    assert jnp.allclose(lp1, ref_lp[:1], atol=2e-4), "single-step log_probs mismatch"

    # bf16 weights (halved resident VMEM / DMA bytes, f32 accumulation): loose check.
    fused_bf16 = fuse_params(params, weight_dtype=jnp.bfloat16)
    lp_bf, h_bf = decoder_rnn_decode_jit(token_ids, hidden0, fused_bf16)
    jax.block_until_ready((lp_bf, h_bf))
    assert jnp.allclose(lp_bf, ref_lp, atol=5e-2), "bf16-weight log_probs mismatch"

    print("KERNEL_OK")
</pallas_src>

<mosaic_0001>
module attributes {stable_mosaic.version = 11 : i64} {
  func.func @decoder_rnn_kernel(%arg0: memref<8xi32, #tpu.memory_space<smem>>, %arg1: memref<128x128xf32, #tpu.memory_space<vmem>>, %arg2: memref<1x128xf32, #tpu.memory_space<vmem>>, %arg3: memref<128x384xf32, #tpu.memory_space<vmem>>, %arg4: memref<128x384xf32, #tpu.memory_space<vmem>>, %arg5: memref<1x384xf32, #tpu.memory_space<vmem>>, %arg6: memref<1x384xf32, #tpu.memory_space<vmem>>, %arg7: memref<128x128xf32, #tpu.memory_space<vmem>>, %arg8: memref<1x128xf32, #tpu.memory_space<vmem>>, %arg9: memref<8x128xf32, #tpu.memory_space<vmem>>, %arg10: memref<1x128xf32, #tpu.memory_space<vmem>>) attributes {dimension_semantics = [], scalar_prefetch = 0 : i64, scratch_operands = 0 : i64, tpu.core_type = #tpu.core_type<tc>} {
    %c0 = arith.constant 0 : index
    %c0_0 = arith.constant 0 : index
    %0 = vector.load %arg5[%c0, %c0_0] : memref<1x384xf32, #tpu.memory_space<vmem>>, vector<1x384xf32>
    %c0_1 = arith.constant 0 : index
    %c0_2 = arith.constant 0 : index
    %1 = vector.load %arg6[%c0_1, %c0_2] : memref<1x384xf32, #tpu.memory_space<vmem>>, vector<1x384xf32>
    %c0_3 = arith.constant 0 : index
    %c0_4 = arith.constant 0 : index
    %2 = vector.load %arg8[%c0_3, %c0_4] : memref<1x128xf32, #tpu.memory_space<vmem>>, vector<1x128xf32>
    %c0_5 = arith.constant 0 : index
    %c0_6 = arith.constant 0 : index
    %3 = vector.load %arg2[%c0_5, %c0_6] : memref<1x128xf32, #tpu.memory_space<vmem>>, vector<1x128xf32>
    %c0_i32 = arith.constant 0 : i32
    %4 = arith.index_cast %c0_i32 : i32 to index
    %5 = memref.load %arg0[%4] : memref<8xi32, #tpu.memory_space<smem>>
    %c0_i32_7 = arith.constant 0 : i32
    %6 = arith.maxsi %5, %c0_i32_7 : i32
    %c127_i32 = arith.constant 127 : i32
    %7 = arith.minsi %6, %c127_i32 : i32
    %8 = arith.index_cast %7 : i32 to index
    %c0_8 = arith.constant 0 : index
    %9 = vector.load %arg1[%8, %c0_8] : memref<128x128xf32, #tpu.memory_space<vmem>>, vector<1x128xf32>
    %cst = arith.constant 0.000000e+00 : f32
    %10 = vector.broadcast %cst : f32 to vector<1x128xf32>
    %11 = arith.maximumf %9, %10 : vector<1x128xf32>
    %c0_9 = arith.constant 0 : index
    %c0_10 = arith.constant 0 : index
    %12 = vector.load %arg3[%c0_9, %c0_10] : memref<128x384xf32, #tpu.memory_space<vmem>>, vector<128x384xf32>
    %cst_11 = arith.constant dense<0.000000e+00> : vector<1x384xf32>
    %13 = tpu.matmul %11, %12, %cst_11 {dimension_numbers = #tpu.dot_dimension_numbers<[1], [0], [0], [1], [0, 0, 1, 1], [], []>} : vector<1x128xf32>, vector<128x384xf32>, vector<1x384xf32> -> vector<1x384xf32>
    %14 = arith.addf %13, %0 : vector<1x384xf32>
    %c0_12 = arith.constant 0 : index
    %c0_13 = arith.constant 0 : index
    %15 = vector.load %arg4[%c0_12, %c0_13] : memref<128x384xf32, #tpu.memory_space<vmem>>, vector<128x384xf32>
    %cst_14 = arith.constant dense<0.000000e+00> : vector<1x384xf32>
    %16 = tpu.matmul %3, %15, %cst_14 {dimension_numbers = #tpu.dot_dimension_numbers<[1], [0], [0], [1], [0, 0, 1, 1], [], []>} : vector<1x128xf32>, vector<128x384xf32>, vector<1x384xf32> -> vector<1x384xf32>
    %17 = arith.addf %16, %1 : vector<1x384xf32>
    %18 = vector.extract_strided_slice %14 {offsets = [0, 0], sizes = [1, 128], strides = [1, 1]} : vector<1x384xf32> to vector<1x128xf32>
    %19 = vector.extract_strided_slice %17 {offsets = [0, 0], sizes = [1, 128], strides = [1, 1]} : vector<1x384xf32> to vector<1x128xf32>
    %20 = arith.addf %18, %19 : vector<1x128xf32>
    %21 = arith.negf %20 : vector<1x128xf32>
    %22 = math.exp %21 : vector<1x128xf32>
    %cst_15 = arith.constant 1.000000e+00 : f32
    %23 = vector.broadcast %cst_15 : f32 to vector<1x128xf32>
    %24 = arith.addf %23, %22 : vector<1x128xf32>
    %25 = arith.divf %23, %24 : vector<1x128xf32>
    %26 = vector.extract_strided_slice %14 {offsets = [0, 128], sizes = [1, 128], strides = [1, 1]} : vector<1x384xf32> to vector<1x128xf32>
    %27 = vector.extract_strided_slice %17 {offsets = [0, 128], sizes = [1, 128], strides = [1, 1]} : vector<1x384xf32> to vector<1x128xf32>
    %28 = arith.addf %26, %27 : vector<1x128xf32>
    %29 = arith.negf %28 : vector<1x128xf32>
    %30 = math.exp %29 : vector<1x128xf32>
    %cst_16 = arith.constant 1.000000e+00 : f32
    %31 = vector.broadcast %cst_16 : f32 to vector<1x128xf32>
    %32 = arith.addf %31, %30 : vector<1x128xf32>
    %33 = arith.divf %31, %32 : vector<1x128xf32>
    %34 = vector.extract_strided_slice %14 {offsets = [0, 256], sizes = [1, 128], strides = [1, 1]} : vector<1x384xf32> to vector<1x128xf32>
    %35 = vector.extract_strided_slice %17 {offsets = [0, 256], sizes = [1, 128], strides = [1, 1]} : vector<1x384xf32> to vector<1x128xf32>
    %36 = arith.mulf %25, %35 : vector<1x128xf32>
    %37 = arith.addf %34, %36 : vector<1x128xf32>
    %38 = math.tanh %37 : vector<1x128xf32>
    %cst_17 = arith.constant 1.000000e+00 : f32
    %39 = vector.broadcast %cst_17 : f32 to vector<1x128xf32>
    %40 = arith.subf %39, %33 : vector<1x128xf32>
    %41 = arith.mulf %40, %38 : vector<1x128xf32>
    %42 = arith.mulf %33, %3 : vector<1x128xf32>
    %43 = arith.addf %41, %42 : vector<1x128xf32>
    %c0_18 = arith.constant 0 : index
    %c0_19 = arith.constant 0 : index
    %44 = vector.load %arg7[%c0_18, %c0_19] : memref<128x128xf32, #tpu.memory_space<vmem>>, vector<128x128xf32>
    %cst_20 = arith.constant dense<0.000000e+00> : vector<1x128xf32>
    %45 = tpu.matmul %43, %44, %cst_20 {dimension_numbers = #tpu.dot_dimension_numbers<[1], [0], [0], [1], [0, 0, 1, 1], [], []>} : vector<1x128xf32>, vector<128x128xf32>, vector<1x128xf32> -> vector<1x128xf32>
    %46 = arith.addf %45, %2 : vector<1x128xf32>
    %cst_21 = arith.constant dense<0xFF800000> : vector<1xf32>
    %47 = vector.multi_reduction <maximumf>, %46, %cst_21 [1] : vector<1x128xf32> to vector<1xf32>
    %48 = vector.shape_cast %47 : vector<1xf32> to vector<1x1xf32>
    %49 = vector.broadcast %48 : vector<1x1xf32> to vector<1x128xf32>
    %50 = arith.subf %46, %49 : vector<1x128xf32>
    %51 = math.exp %50 : vector<1x128xf32>
    %cst_22 = arith.constant dense<0.000000e+00> : vector<1xf32>
    %52 = vector.multi_reduction <add>, %51, %cst_22 [1] : vector<1x128xf32> to vector<1xf32>
    %53 = vector.shape_cast %52 : vector<1xf32> to vector<1x1xf32>
    %54 = math.log %53 : vector<1x1xf32>
    %55 = vector.broadcast %54 : vector<1x1xf32> to vector<1x128xf32>
    %56 = arith.subf %50, %55 : vector<1x128xf32>
    %57 = arith.index_cast %c0_i32 : i32 to index
    %c0_23 = arith.constant 0 : index
    %58 = vector.load %arg9[%57, %c0_23] : memref<8x128xf32, #tpu.memory_space<vmem>>, vector<1x128xf32>
    tpu.vector_store %arg9[%57, %c0_23], %56 {strides = array<i32>} : memref<8x128xf32, #tpu.memory_space<vmem>>, vector<1x128xf32>,
    %c1_i32 = arith.constant 1 : i32
    %59 = arith.index_cast %c1_i32 : i32 to index
    %60 = memref.load %arg0[%59] : memref<8xi32, #tpu.memory_space<smem>>
    %c0_i32_24 = arith.constant 0 : i32
    %61 = arith.maxsi %60, %c0_i32_24 : i32
    %c127_i32_25 = arith.constant 127 : i32
    %62 = arith.minsi %61, %c127_i32_25 : i32
    %63 = arith.index_cast %62 : i32 to index
    %c0_26 = arith.constant 0 : index
    %64 = vector.load %arg1[%63, %c0_26] : memref<128x128xf32, #tpu.memory_space<vmem>>, vector<1x128xf32>
    %cst_27 = arith.constant 0.000000e+00 : f32
    %65 = vector.broadcast %cst_27 : f32 to vector<1x128xf32>
    %66 = arith.maximumf %64, %65 : vector<1x128xf32>
    %c0_28 = arith.constant 0 : index
    %c0_29 = arith.constant 0 : index
    %67 = vector.load %arg3[%c0_28, %c0_29] : memref<128x384xf32, #tpu.memory_space<vmem>>, vector<128x384xf32>
    %cst_30 = arith.constant dense<0.000000e+00> : vector<1x384xf32>
    %68 = tpu.matmul %66, %67, %cst_30 {dimension_numbers = #tpu.dot_dimension_numbers<[1], [0], [0], [1], [0, 0, 1, 1], [], []>} : vector<1x128xf32>, vector<128x384xf32>, vector<1x384xf32> -> vector<1x384xf32>
    %69 = arith.addf %68, %0 : vector<1x384xf32>
    %c0_31 = arith.constant 0 : index
    %c0_32 = arith.constant 0 : index
    %70 = vector.load %arg4[%c0_31, %c0_32] : memref<128x384xf32, #tpu.memory_space<vmem>>, vector<128x384xf32>
    %cst_33 = arith.constant dense<0.000000e+00> : vector<1x384xf32>
    %71 = tpu.matmul %43, %70, %cst_33 {dimension_numbers = #tpu.dot_dimension_numbers<[1], [0], [0], [1], [0, 0, 1, 1], [], []>} : vector<1x128xf32>, vector<128x384xf32>, vector<1x384xf32> -> vector<1x384xf32>
    %72 = arith.addf %71, %1 : vector<1x384xf32>
    %73 = vector.extract_strided_slice %69 {offsets = [0, 0], sizes = [1, 128], strides = [1, 1]} : vector<1x384xf32> to vector<1x128xf32>
    %74 = vector.extract_strided_slice %72 {offsets = [0, 0], sizes = [1, 128], strides = [1, 1]} : vector<1x384xf32> to vector<1x128xf32>
    %75 = arith.addf %73, %74 : vector<1x128xf32>
    %76 = arith.negf %75 : vector<1x128xf32>
    %77 = math.exp %76 : vector<1x128xf32>
    %cst_34 = arith.constant 1.000000e+00 : f32
    %78 = vector.broadcast %cst_34 : f32 to vector<1x128xf32>
    %79 = arith.addf %78, %77 : vector<1x128xf32>
    %80 = arith.divf %78, %79 : vector<1x128xf32>
    %81 = vector.extract_strided_slice %69 {offsets = [0, 128], sizes = [1, 128], strides = [1, 1]} : vector<1x384xf32> to vector<1x128xf32>
    %82 = vector.extract_strided_slice %72 {offsets = [0, 128], sizes = [1, 128], strides = [1, 1]} : vector<1x384xf32> to vector<1x128xf32>
    %83 = arith.addf %81, %82 : vector<1x128xf32>
    %84 = arith.negf %83 : vector<1x128xf32>
    %85 = math.exp %84 : vector<1x128xf32>
    %cst_35 = arith.constant 1.000000e+00 : f32
    %86 = vector.broadcast %cst_35 : f32 to vector<1x128xf32>
    %87 = arith.addf %86, %85 : vector<1x128xf32>
    %88 = arith.divf %86, %87 : vector<1x128xf32>
    %89 = vector.extract_strided_slice %69 {offsets = [0, 256], sizes = [1, 128], strides = [1, 1]} : vector<1x384xf32> to vector<1x128xf32>
    %90 = vector.extract_strided_slice %72 {offsets = [0, 256], sizes = [1, 128], strides = [1, 1]} : vector<1x384xf32> to vector<1x128xf32>
    %91 = arith.mulf %80, %90 : vector<1x128xf32>
    %92 = arith.addf %89, %91 : vector<1x128xf32>
    %93 = math.tanh %92 : vector<1x128xf32>
    %cst_36 = arith.constant 1.000000e+00 : f32
    %94 = vector.broadcast %cst_36 : f32 to vector<1x128xf32>
    %95 = arith.subf %94, %88 : vector<1x128xf32>
    %96 = arith.mulf %95, %93 : vector<1x128xf32>
    %97 = arith.mulf %88, %43 : vector<1x128xf32>
    %98 = arith.addf %96, %97 : vector<1x128xf32>
    %c0_37 = arith.constant 0 : index
    %c0_38 = arith.constant 0 : index
    %99 = vector.load %arg7[%c0_37, %c0_38] : memref<128x128xf32, #tpu.memory_space<vmem>>, vector<128x128xf32>
    %cst_39 = arith.constant dense<0.000000e+00> : vector<1x128xf32>
    %100 = tpu.matmul %98, %99, %cst_39 {dimension_numbers = #tpu.dot_dimension_numbers<[1], [0], [0], [1], [0, 0, 1, 1], [], []>} : vector<1x128xf32>, vector<128x128xf32>, vector<1x128xf32> -> vector<1x128xf32>
    %101 = arith.addf %100, %2 : vector<1x128xf32>
    %cst_40 = arith.constant dense<0xFF800000> : vector<1xf32>
    %102 = vector.multi_reduction <maximumf>, %101, %cst_40 [1] : vector<1x128xf32> to vector<1xf32>
    %103 = vector.shape_cast %102 : vector<1xf32> to vector<1x1xf32>
    %104 = vector.broadcast %103 : vector<1x1xf32> to vector<1x128xf32>
    %105 = arith.subf %101, %104 : vector<1x128xf32>
    %106 = math.exp %105 : vector<1x128xf32>
    %cst_41 = arith.constant dense<0.000000e+00> : vector<1xf32>
    %107 = vector.multi_reduction <add>, %106, %cst_41 [1] : vector<1x128xf32> to vector<1xf32>
    %108 = vector.shape_cast %107 : vector<1xf32> to vector<1x1xf32>
    %109 = math.log %108 : vector<1x1xf32>
    %110 = vector.broadcast %109 : vector<1x1xf32> to vector<1x128xf32>
    %111 = arith.subf %105, %110 : vector<1x128xf32>
    %112 = arith.index_cast %c1_i32 : i32 to index
    %c0_42 = arith.constant 0 : index
    %113 = vector.load %arg9[%112, %c0_42] : memref<8x128xf32, #tpu.memory_space<vmem>>, vector<1x128xf32>
    tpu.vector_store %arg9[%112, %c0_42], %111 {strides = array<i32>} : memref<8x128xf32, #tpu.memory_space<vmem>>, vector<1x128xf32>,
    %c2_i32 = arith.constant 2 : i32
    %114 = arith.index_cast %c2_i32 : i32 to index
    %115 = memref.load %arg0[%114] : memref<8xi32, #tpu.memory_space<smem>>
    %c0_i32_43 = arith.constant 0 : i32
    %116 = arith.maxsi %115, %c0_i32_43 : i32
    %c127_i32_44 = arith.constant 127 : i32
    %117 = arith.minsi %116, %c127_i32_44 : i32
    %118 = arith.index_cast %117 : i32 to index
    %c0_45 = arith.constant 0 : index
    %119 = vector.load %arg1[%118, %c0_45] : memref<128x128xf32, #tpu.memory_space<vmem>>, vector<1x128xf32>
    %cst_46 = arith.constant 0.000000e+00 : f32
    %120 = vector.broadcast %cst_46 : f32 to vector<1x128xf32>
    %121 = arith.maximumf %119, %120 : vector<1x128xf32>
    %c0_47 = arith.constant 0 : index
    %c0_48 = arith.constant 0 : index
    %122 = vector.load %arg3[%c0_47, %c0_48] : memref<128x384xf32, #tpu.memory_space<vmem>>, vector<128x384xf32>
    %cst_49 = arith.constant dense<0.000000e+00> : vector<1x384xf32>
    %123 = tpu.matmul %121, %122, %cst_49 {dimension_numbers = #tpu.dot_dimension_numbers<[1], [0], [0], [1], [0, 0, 1, 1], [], []>} : vector<1x128xf32>, vector<128x384xf32>, vector<1x384xf32> -> vector<1x384xf32>
    %124 = arith.addf %123, %0 : vector<1x384xf32>
    %c0_50 = arith.constant 0 : index
    %c0_51 = arith.constant 0 : index
    %125 = vector.load %arg4[%c0_50, %c0_51] : memref<128x384xf32, #tpu.memory_space<vmem>>, vector<128x384xf32>
    %cst_52 = arith.constant dense<0.000000e+00> : vector<1x384xf32>
    %126 = tpu.matmul %98, %125, %cst_52 {dimension_numbers = #tpu.dot_dimension_numbers<[1], [0], [0], [1], [0, 0, 1, 1], [], []>} : vector<1x128xf32>, vector<128x384xf32>, vector<1x384xf32> -> vector<1x384xf32>
    %127 = arith.addf %126, %1 : vector<1x384xf32>
    %128 = vector.extract_strided_slice %124 {offsets = [0, 0], sizes = [1, 128], strides = [1, 1]} : vector<1x384xf32> to vector<1x128xf32>
    %129 = vector.extract_strided_slice %127 {offsets = [0, 0], sizes = [1, 128], strides = [1, 1]} : vector<1x384xf32> to vector<1x128xf32>
    %130 = arith.addf %128, %129 : vector<1x128xf32>
    %131 = arith.negf %130 : vector<1x128xf32>
    %132 = math.exp %131 : vector<1x128xf32>
    %cst_53 = arith.constant 1.000000e+00 : f32
    %133 = vector.broadcast %cst_53 : f32 to vector<1x128xf32>
    %134 = arith.addf %133, %132 : vector<1x128xf32>
    %135 = arith.divf %133, %134 : vector<1x128xf32>
    %136 = vector.extract_strided_slice %124 {offsets = [0, 128], sizes = [1, 128], strides = [1, 1]} : vector<1x384xf32> to vector<1x128xf32>
    %137 = vector.extract_strided_slice %127 {offsets = [0, 128], sizes = [1, 128], strides = [1, 1]} : vector<1x384xf32> to vector<1x128xf32>
    %138 = arith.addf %136, %137 : vector<1x128xf32>
    %139 = arith.negf %138 : vector<1x128xf32>
    %140 = math.exp %139 : vector<1x128xf32>
    %cst_54 = arith.constant 1.000000e+00 : f32
    %141 = vector.broadcast %cst_54 : f32 to vector<1x128xf32>
    %142 = arith.addf %141, %140 : vector<1x128xf32>
    %143 = arith.divf %141, %142 : vector<1x128xf32>
    %144 = vector.extract_strided_slice %124 {offsets = [0, 256], sizes = [1, 128], strides = [1, 1]} : vector<1x384xf32> to vector<1x128xf32>
    %145 = vector.extract_strided_slice %127 {offsets = [0, 256], sizes = [1, 128], strides = [1, 1]} : vector<1x384xf32> to vector<1x128xf32>
    %146 = arith.mulf %135, %145 : vector<1x128xf32>
    %147 = arith.addf %144, %146 : vector<1x128xf32>
    %148 = math.tanh %147 : vector<1x128xf32>
    %cst_55 = arith.constant 1.000000e+00 : f32
    %149 = vector.broadcast %cst_55 : f32 to vector<1x128xf32>
    %150 = arith.subf %149, %143 : vector<1x128xf32>
    %151 = arith.mulf %150, %148 : vector<1x128xf32>
    %152 = arith.mulf %143, %98 : vector<1x128xf32>
    %153 = arith.addf %151, %152 : vector<1x128xf32>
    %c0_56 = arith.constant 0 : index
    %c0_57 = arith.constant 0 : index
    %154 = vector.load %arg7[%c0_56, %c0_57] : memref<128x128xf32, #tpu.memory_space<vmem>>, vector<128x128xf32>
    %cst_58 = arith.constant dense<0.000000e+00> : vector<1x128xf32>
    %155 = tpu.matmul %153, %154, %cst_58 {dimension_numbers = #tpu.dot_dimension_numbers<[1], [0], [0], [1], [0, 0, 1, 1], [], []>} : vector<1x128xf32>, vector<128x128xf32>, vector<1x128xf32> -> vector<1x128xf32>
    %156 = arith.addf %155, %2 : vector<1x128xf32>
    %cst_59 = arith.constant dense<0xFF800000> : vector<1xf32>
    %157 = vector.multi_reduction <maximumf>, %156, %cst_59 [1] : vector<1x128xf32> to vector<1xf32>
    %158 = vector.shape_cast %157 : vector<1xf32> to vector<1x1xf32>
    %159 = vector.broadcast %158 : vector<1x1xf32> to vector<1x128xf32>
    %160 = arith.subf %156, %159 : vector<1x128xf32>
    %161 = math.exp %160 : vector<1x128xf32>
    %cst_60 = arith.constant dense<0.000000e+00> : vector<1xf32>
    %162 = vector.multi_reduction <add>, %161, %cst_60 [1] : vector<1x128xf32> to vector<1xf32>
    %163 = vector.shape_cast %162 : vector<1xf32> to vector<1x1xf32>
    %164 = math.log %163 : vector<1x1xf32>
    %165 = vector.broadcast %164 : vector<1x1xf32> to vector<1x128xf32>
    %166 = arith.subf %160, %165 : vector<1x128xf32>
    %167 = arith.index_cast %c2_i32 : i32 to index
    %c0_61 = arith.constant 0 : index
    %168 = vector.load %arg9[%167, %c0_61] : memref<8x128xf32, #tpu.memory_space<vmem>>, vector<1x128xf32>
    tpu.vector_store %arg9[%167, %c0_61], %166 {strides = array<i32>} : memref<8x128xf32, #tpu.memory_space<vmem>>, vector<1x128xf32>,
    %c3_i32 = arith.constant 3 : i32
    %169 = arith.index_cast %c3_i32 : i32 to index
    %170 = memref.load %arg0[%169] : memref<8xi32, #tpu.memory_space<smem>>
    %c0_i32_62 = arith.constant 0 : i32
    %171 = arith.maxsi %170, %c0_i32_62 : i32
    %c127_i32_63 = arith.constant 127 : i32
    %172 = arith.minsi %171, %c127_i32_63 : i32
    %173 = arith.index_cast %172 : i32 to index
    %c0_64 = arith.constant 0 : index
    %174 = vector.load %arg1[%173, %c0_64] : memref<128x128xf32, #tpu.memory_space<vmem>>, vector<1x128xf32>
    %cst_65 = arith.constant 0.000000e+00 : f32
    %175 = vector.broadcast %cst_65 : f32 to vector<1x128xf32>
    %176 = arith.maximumf %174, %175 : vector<1x128xf32>
    %c0_66 = arith.constant 0 : index
    %c0_67 = arith.constant 0 : index
    %177 = vector.load %arg3[%c0_66, %c0_67] : memref<128x384xf32, #tpu.memory_space<vmem>>, vector<128x384xf32>
    %cst_68 = arith.constant dense<0.000000e+00> : vector<1x384xf32>
    %178 = tpu.matmul %176, %177, %cst_68 {dimension_numbers = #tpu.dot_dimension_numbers<[1], [0], [0], [1], [0, 0, 1, 1], [], []>} : vector<1x128xf32>, vector<128x384xf32>, vector<1x384xf32> -> vector<1x384xf32>
    %179 = arith.addf %178, %0 : vector<1x384xf32>
    %c0_69 = arith.constant 0 : index
    %c0_70 = arith.constant 0 : index
    %180 = vector.load %arg4[%c0_69, %c0_70] : memref<128x384xf32, #tpu.memory_space<vmem>>, vector<128x384xf32>
    %cst_71 = arith.constant dense<0.000000e+00> : vector<1x384xf32>
    %181 = tpu.matmul %153, %180, %cst_71 {dimension_numbers = #tpu.dot_dimension_numbers<[1], [0], [0], [1], [0, 0, 1, 1], [], []>} : vector<1x128xf32>, vector<128x384xf32>, vector<1x384xf32> -> vector<1x384xf32>
    %182 = arith.addf %181, %1 : vector<1x384xf32>
    %183 = vector.extract_strided_slice %179 {offsets = [0, 0], sizes = [1, 128], strides = [1, 1]} : vector<1x384xf32> to vector<1x128xf32>
    %184 = vector.extract_strided_slice %182 {offsets = [0, 0], sizes = [1, 128], strides = [1, 1]} : vector<1x384xf32> to vector<1x128xf32>
    %185 = arith.addf %183, %184 : vector<1x128xf32>
    %186 = arith.negf %185 : vector<1x128xf32>
    %187 = math.exp %186 : vector<1x128xf32>
    %cst_72 = arith.constant 1.000000e+00 : f32
    %188 = vector.broadcast %cst_72 : f32 to vector<1x128xf32>
    %189 = arith.addf %188, %187 : vector<1x128xf32>
    %190 = arith.divf %188, %189 : vector<1x128xf32>
    %191 = vector.extract_strided_slice %179 {offsets = [0, 128], sizes = [1, 128], strides = [1, 1]} : vector<1x384xf32> to vector<1x128xf32>
    %192 = vector.extract_strided_slice %182 {offsets = [0, 128], sizes = [1, 128], strides = [1, 1]} : vector<1x384xf32> to vector<1x128xf32>
    %193 = arith.addf %191, %192 : vector<1x128xf32>
    %194 = arith.negf %193 : vector<1x128xf32>
    %195 = math.exp %194 : vector<1x128xf32>
    %cst_73 = arith.constant 1.000000e+00 : f32
    %196 = vector.broadcast %cst_73 : f32 to vector<1x128xf32>
    %197 = arith.addf %196, %195 : vector<1x128xf32>
    %198 = arith.divf %196, %197 : vector<1x128xf32>
    %199 = vector.extract_strided_slice %179 {offsets = [0, 256], sizes = [1, 128], strides = [1, 1]} : vector<1x384xf32> to vector<1x128xf32>
    %200 = vector.extract_strided_slice %182 {offsets = [0, 256], sizes = [1, 128], strides = [1, 1]} : vector<1x384xf32> to vector<1x128xf32>
    %201 = arith.mulf %190, %200 : vector<1x128xf32>
    %202 = arith.addf %199, %201 : vector<1x128xf32>
    %203 = math.tanh %202 : vector<1x128xf32>
    %cst_74 = arith.constant 1.000000e+00 : f32
    %204 = vector.broadcast %cst_74 : f32 to vector<1x128xf32>
    %205 = arith.subf %204, %198 : vector<1x128xf32>
    %206 = arith.mulf %205, %203 : vector<1x128xf32>
    %207 = arith.mulf %198, %153 : vector<1x128xf32>
    %208 = arith.addf %206, %207 : vector<1x128xf32>
    %c0_75 = arith.constant 0 : index
    %c0_76 = arith.constant 0 : index
    %209 = vector.load %arg7[%c0_75, %c0_76] : memref<128x128xf32, #tpu.memory_space<vmem>>, vector<128x128xf32>
    %cst_77 = arith.constant dense<0.000000e+00> : vector<1x128xf32>
    %210 = tpu.matmul %208, %209, %cst_77 {dimension_numbers = #tpu.dot_dimension_numbers<[1], [0], [0], [1], [0, 0, 1, 1], [], []>} : vector<1x128xf32>, vector<128x128xf32>, vector<1x128xf32> -> vector<1x128xf32>
    %211 = arith.addf %210, %2 : vector<1x128xf32>
    %cst_78 = arith.constant dense<0xFF800000> : vector<1xf32>
    %212 = vector.multi_reduction <maximumf>, %211, %cst_78 [1] : vector<1x128xf32> to vector<1xf32>
    %213 = vector.shape_cast %212 : vector<1xf32> to vector<1x1xf32>
    %214 = vector.broadcast %213 : vector<1x1xf32> to vector<1x128xf32>
    %215 = arith.subf %211, %214 : vector<1x128xf32>
    %216 = math.exp %215 : vector<1x128xf32>
    %cst_79 = arith.constant dense<0.000000e+00> : vector<1xf32>
    %217 = vector.multi_reduction <add>, %216, %cst_79 [1] : vector<1x128xf32> to vector<1xf32>
    %218 = vector.shape_cast %217 : vector<1xf32> to vector<1x1xf32>
    %219 = math.log %218 : vector<1x1xf32>
    %220 = vector.broadcast %219 : vector<1x1xf32> to vector<1x128xf32>
    %221 = arith.subf %215, %220 : vector<1x128xf32>
    %222 = arith.index_cast %c3_i32 : i32 to index
    %c0_80 = arith.constant 0 : index
    %223 = vector.load %arg9[%222, %c0_80] : memref<8x128xf32, #tpu.memory_space<vmem>>, vector<1x128xf32>
    tpu.vector_store %arg9[%222, %c0_80], %221 {strides = array<i32>} : memref<8x128xf32, #tpu.memory_space<vmem>>, vector<1x128xf32>,
    %c4_i32 = arith.constant 4 : i32
    %224 = arith.index_cast %c4_i32 : i32 to index
    %225 = memref.load %arg0[%224] : memref<8xi32, #tpu.memory_space<smem>>
    %c0_i32_81 = arith.constant 0 : i32
    %226 = arith.maxsi %225, %c0_i32_81 : i32
    %c127_i32_82 = arith.constant 127 : i32
    %227 = arith.minsi %226, %c127_i32_82 : i32
    %228 = arith.index_cast %227 : i32 to index
    %c0_83 = arith.constant 0 : index
    %229 = vector.load %arg1[%228, %c0_83] : memref<128x128xf32, #tpu.memory_space<vmem>>, vector<1x128xf32>
    %cst_84 = arith.constant 0.000000e+00 : f32
    %230 = vector.broadcast %cst_84 : f32 to vector<1x128xf32>
    %231 = arith.maximumf %229, %230 : vector<1x128xf32>
    %c0_85 = arith.constant 0 : index
    %c0_86 = arith.constant 0 : index
    %232 = vector.load %arg3[%c0_85, %c0_86] : memref<128x384xf32, #tpu.memory_space<vmem>>, vector<128x384xf32>
    %cst_87 = arith.constant dense<0.000000e+00> : vector<1x384xf32>
    %233 = tpu.matmul %231, %232, %cst_87 {dimension_numbers = #tpu.dot_dimension_numbers<[1], [0], [0], [1], [0, 0, 1, 1], [], []>} : vector<1x128xf32>, vector<128x384xf32>, vector<1x384xf32> -> vector<1x384xf32>
    %234 = arith.addf %233, %0 : vector<1x384xf32>
    %c0_88 = arith.constant 0 : index
    %c0_89 = arith.constant 0 : index
    %235 = vector.load %arg4[%c0_88, %c0_89] : memref<128x384xf32, #tpu.memory_space<vmem>>, vector<128x384xf32>
    %cst_90 = arith.constant dense<0.000000e+00> : vector<1x384xf32>
    %236 = tpu.matmul %208, %235, %cst_90 {dimension_numbers = #tpu.dot_dimension_numbers<[1], [0], [0], [1], [0, 0, 1, 1], [], []>} : vector<1x128xf32>, vector<128x384xf32>, vector<1x384xf32> -> vector<1x384xf32>
    %237 = arith.addf %236, %1 : vector<1x384xf32>
    %238 = vector.extract_strided_slice %234 {offsets = [0, 0], sizes = [1, 128], strides = [1, 1]} : vector<1x384xf32> to vector<1x128xf32>
    %239 = vector.extract_strided_slice %237 {offsets = [0, 0], sizes = [1, 128], strides = [1, 1]} : vector<1x384xf32> to vector<1x128xf32>
    %240 = arith.addf %238, %239 : vector<1x128xf32>
    %241 = arith.negf %240 : vector<1x128xf32>
    %242 = math.exp %241 : vector<1x128xf32>
    %cst_91 = arith.constant 1.000000e+00 : f32
    %243 = vector.broadcast %cst_91 : f32 to vector<1x128xf32>
    %244 = arith.addf %243, %242 : vector<1x128xf32>
    %245 = arith.divf %243, %244 : vector<1x128xf32>
    %246 = vector.extract_strided_slice %234 {offsets = [0, 128], sizes = [1, 128], strides = [1, 1]} : vector<1x384xf32> to vector<1x128xf32>
    %247 = vector.extract_strided_slice %237 {offsets = [0, 128], sizes = [1, 128], strides = [1, 1]} : vector<1x384xf32> to vector<1x128xf32>
    %248 = arith.addf %246, %247 : vector<1x128xf32>
    %249 = arith.negf %248 : vector<1x128xf32>
    %250 = math.exp %249 : vector<1x128xf32>
    %cst_92 = arith.constant 1.000000e+00 : f32
    %251 = vector.broadcast %cst_92 : f32 to vector<1x128xf32>
    %252 = arith.addf %251, %250 : vector<1x128xf32>
    %253 = arith.divf %251, %252 : vector<1x128xf32>
    %254 = vector.extract_strided_slice %234 {offsets = [0, 256], sizes = [1, 128], strides = [1, 1]} : vector<1x384xf32> to vector<1x128xf32>
    %255 = vector.extract_strided_slice %237 {offsets = [0, 256], sizes = [1, 128], strides = [1, 1]} : vector<1x384xf32> to vector<1x128xf32>
    %256 = arith.mulf %245, %255 : vector<1x128xf32>
    %257 = arith.addf %254, %256 : vector<1x128xf32>
    %258 = math.tanh %257 : vector<1x128xf32>
    %cst_93 = arith.constant 1.000000e+00 : f32
    %259 = vector.broadcast %cst_93 : f32 to vector<1x128xf32>
    %260 = arith.subf %259, %253 : vector<1x128xf32>
    %261 = arith.mulf %260, %258 : vector<1x128xf32>
    %262 = arith.mulf %253, %208 : vector<1x128xf32>
    %263 = arith.addf %261, %262 : vector<1x128xf32>
    %c0_94 = arith.constant 0 : index
    %c0_95 = arith.constant 0 : index
    %264 = vector.load %arg7[%c0_94, %c0_95] : memref<128x128xf32, #tpu.memory_space<vmem>>, vector<128x128xf32>
    %cst_96 = arith.constant dense<0.000000e+00> : vector<1x128xf32>
    %265 = tpu.matmul %263, %264, %cst_96 {dimension_numbers = #tpu.dot_dimension_numbers<[1], [0], [0], [1], [0, 0, 1, 1], [], []>} : vector<1x128xf32>, vector<128x128xf32>, vector<1x128xf32> -> vector<1x128xf32>
    %266 = arith.addf %265, %2 : vector<1x128xf32>
    %cst_97 = arith.constant dense<0xFF800000> : vector<1xf32>
    %267 = vector.multi_reduction <maximumf>, %266, %cst_97 [1] : vector<1x128xf32> to vector<1xf32>
    %268 = vector.shape_cast %267 : vector<1xf32> to vector<1x1xf32>
    %269 = vector.broadcast %268 : vector<1x1xf32> to vector<1x128xf32>
    %270 = arith.subf %266, %269 : vector<1x128xf32>
    %271 = math.exp %270 : vector<1x128xf32>
    %cst_98 = arith.constant dense<0.000000e+00> : vector<1xf32>
    %272 = vector.multi_reduction <add>, %271, %cst_98 [1] : vector<1x128xf32> to vector<1xf32>
    %273 = vector.shape_cast %272 : vector<1xf32> to vector<1x1xf32>
    %274 = math.log %273 : vector<1x1xf32>
    %275 = vector.broadcast %274 : vector<1x1xf32> to vector<1x128xf32>
    %276 = arith.subf %270, %275 : vector<1x128xf32>
    %277 = arith.index_cast %c4_i32 : i32 to index
    %c0_99 = arith.constant 0 : index
    %278 = vector.load %arg9[%277, %c0_99] : memref<8x128xf32, #tpu.memory_space<vmem>>, vector<1x128xf32>
    tpu.vector_store %arg9[%277, %c0_99], %276 {strides = array<i32>} : memref<8x128xf32, #tpu.memory_space<vmem>>, vector<1x128xf32>,
    %c5_i32 = arith.constant 5 : i32
    %279 = arith.index_cast %c5_i32 : i32 to index
    %280 = memref.load %arg0[%279] : memref<8xi32, #tpu.memory_space<smem>>
    %c0_i32_100 = arith.constant 0 : i32
    %281 = arith.maxsi %280, %c0_i32_100 : i32
    %c127_i32_101 = arith.constant 127 : i32
    %282 = arith.minsi %281, %c127_i32_101 : i32
    %283 = arith.index_cast %282 : i32 to index
    %c0_102 = arith.constant 0 : index
    %284 = vector.load %arg1[%283, %c0_102] : memref<128x128xf32, #tpu.memory_space<vmem>>, vector<1x128xf32>
    %cst_103 = arith.constant 0.000000e+00 : f32
    %285 = vector.broadcast %cst_103 : f32 to vector<1x128xf32>
    %286 = arith.maximumf %284, %285 : vector<1x128xf32>
    %c0_104 = arith.constant 0 : index
    %c0_105 = arith.constant 0 : index
    %287 = vector.load %arg3[%c0_104, %c0_105] : memref<128x384xf32, #tpu.memory_space<vmem>>, vector<128x384xf32>
    %cst_106 = arith.constant dense<0.000000e+00> : vector<1x384xf32>
    %288 = tpu.matmul %286, %287, %cst_106 {dimension_numbers = #tpu.dot_dimension_numbers<[1], [0], [0], [1], [0, 0, 1, 1], [], []>} : vector<1x128xf32>, vector<128x384xf32>, vector<1x384xf32> -> vector<1x384xf32>
    %289 = arith.addf %288, %0 : vector<1x384xf32>
    %c0_107 = arith.constant 0 : index
    %c0_108 = arith.constant 0 : index
    %290 = vector.load %arg4[%c0_107, %c0_108] : memref<128x384xf32, #tpu.memory_space<vmem>>, vector<128x384xf32>
    %cst_109 = arith.constant dense<0.000000e+00> : vector<1x384xf32>
    %291 = tpu.matmul %263, %290, %cst_109 {dimension_numbers = #tpu.dot_dimension_numbers<[1], [0], [0], [1], [0, 0, 1, 1], [], []>} : vector<1x128xf32>, vector<128x384xf32>, vector<1x384xf32> -> vector<1x384xf32>
    %292 = arith.addf %291, %1 : vector<1x384xf32>
    %293 = vector.extract_strided_slice %289 {offsets = [0, 0], sizes = [1, 128], strides = [1, 1]} : vector<1x384xf32> to vector<1x128xf32>
    %294 = vector.extract_strided_slice %292 {offsets = [0, 0], sizes = [1, 128], strides = [1, 1]} : vector<1x384xf32> to vector<1x128xf32>
    %295 = arith.addf %293, %294 : vector<1x128xf32>
    %296 = arith.negf %295 : vector<1x128xf32>
    %297 = math.exp %296 : vector<1x128xf32>
    %cst_110 = arith.constant 1.000000e+00 : f32
    %298 = vector.broadcast %cst_110 : f32 to vector<1x128xf32>
    %299 = arith.addf %298, %297 : vector<1x128xf32>
    %300 = arith.divf %298, %299 : vector<1x128xf32>
    %301 = vector.extract_strided_slice %289 {offsets = [0, 128], sizes = [1, 128], strides = [1, 1]} : vector<1x384xf32> to vector<1x128xf32>
    %302 = vector.extract_strided_slice %292 {offsets = [0, 128], sizes = [1, 128], strides = [1, 1]} : vector<1x384xf32> to vector<1x128xf32>
    %303 = arith.addf %301, %302 : vector<1x128xf32>
    %304 = arith.negf %303 : vector<1x128xf32>
    %305 = math.exp %304 : vector<1x128xf32>
    %cst_111 = arith.constant 1.000000e+00 : f32
    %306 = vector.broadcast %cst_111 : f32 to vector<1x128xf32>
    %307 = arith.addf %306, %305 : vector<1x128xf32>
    %308 = arith.divf %306, %307 : vector<1x128xf32>
    %309 = vector.extract_strided_slice %289 {offsets = [0, 256], sizes = [1, 128], strides = [1, 1]} : vector<1x384xf32> to vector<1x128xf32>
    %310 = vector.extract_strided_slice %292 {offsets = [0, 256], sizes = [1, 128], strides = [1, 1]} : vector<1x384xf32> to vector<1x128xf32>
    %311 = arith.mulf %300, %310 : vector<1x128xf32>
    %312 = arith.addf %309, %311 : vector<1x128xf32>
    %313 = math.tanh %312 : vector<1x128xf32>
    %cst_112 = arith.constant 1.000000e+00 : f32
    %314 = vector.broadcast %cst_112 : f32 to vector<1x128xf32>
    %315 = arith.subf %314, %308 : vector<1x128xf32>
    %316 = arith.mulf %315, %313 : vector<1x128xf32>
    %317 = arith.mulf %308, %263 : vector<1x128xf32>
    %318 = arith.addf %316, %317 : vector<1x128xf32>
    %c0_113 = arith.constant 0 : index
    %c0_114 = arith.constant 0 : index
    %319 = vector.load %arg7[%c0_113, %c0_114] : memref<128x128xf32, #tpu.memory_space<vmem>>, vector<128x128xf32>
    %cst_115 = arith.constant dense<0.000000e+00> : vector<1x128xf32>
    %320 = tpu.matmul %318, %319, %cst_115 {dimension_numbers = #tpu.dot_dimension_numbers<[1], [0], [0], [1], [0, 0, 1, 1], [], []>} : vector<1x128xf32>, vector<128x128xf32>, vector<1x128xf32> -> vector<1x128xf32>
    %321 = arith.addf %320, %2 : vector<1x128xf32>
    %cst_116 = arith.constant dense<0xFF800000> : vector<1xf32>
    %322 = vector.multi_reduction <maximumf>, %321, %cst_116 [1] : vector<1x128xf32> to vector<1xf32>
    %323 = vector.shape_cast %322 : vector<1xf32> to vector<1x1xf32>
    %324 = vector.broadcast %323 : vector<1x1xf32> to vector<1x128xf32>
    %325 = arith.subf %321, %324 : vector<1x128xf32>
    %326 = math.exp %325 : vector<1x128xf32>
    %cst_117 = arith.constant dense<0.000000e+00> : vector<1xf32>
    %327 = vector.multi_reduction <add>, %326, %cst_117 [1] : vector<1x128xf32> to vector<1xf32>
    %328 = vector.shape_cast %327 : vector<1xf32> to vector<1x1xf32>
    %329 = math.log %328 : vector<1x1xf32>
    %330 = vector.broadcast %329 : vector<1x1xf32> to vector<1x128xf32>
    %331 = arith.subf %325, %330 : vector<1x128xf32>
    %332 = arith.index_cast %c5_i32 : i32 to index
    %c0_118 = arith.constant 0 : index
    %333 = vector.load %arg9[%332, %c0_118] : memref<8x128xf32, #tpu.memory_space<vmem>>, vector<1x128xf32>
    tpu.vector_store %arg9[%332, %c0_118], %331 {strides = array<i32>} : memref<8x128xf32, #tpu.memory_space<vmem>>, vector<1x128xf32>,
    %c6_i32 = arith.constant 6 : i32
    %334 = arith.index_cast %c6_i32 : i32 to index
    %335 = memref.load %arg0[%334] : memref<8xi32, #tpu.memory_space<smem>>
    %c0_i32_119 = arith.constant 0 : i32
    %336 = arith.maxsi %335, %c0_i32_119 : i32
    %c127_i32_120 = arith.constant 127 : i32
    %337 = arith.minsi %336, %c127_i32_120 : i32
    %338 = arith.index_cast %337 : i32 to index
    %c0_121 = arith.constant 0 : index
    %339 = vector.load %arg1[%338, %c0_121] : memref<128x128xf32, #tpu.memory_space<vmem>>, vector<1x128xf32>
    %cst_122 = arith.constant 0.000000e+00 : f32
    %340 = vector.broadcast %cst_122 : f32 to vector<1x128xf32>
    %341 = arith.maximumf %339, %340 : vector<1x128xf32>
    %c0_123 = arith.constant 0 : index
    %c0_124 = arith.constant 0 : index
    %342 = vector.load %arg3[%c0_123, %c0_124] : memref<128x384xf32, #tpu.memory_space<vmem>>, vector<128x384xf32>
    %cst_125 = arith.constant dense<0.000000e+00> : vector<1x384xf32>
    %343 = tpu.matmul %341, %342, %cst_125 {dimension_numbers = #tpu.dot_dimension_numbers<[1], [0], [0], [1], [0, 0, 1, 1], [], []>} : vector<1x128xf32>, vector<128x384xf32>, vector<1x384xf32> -> vector<1x384xf32>
    %344 = arith.addf %343, %0 : vector<1x384xf32>
    %c0_126 = arith.constant 0 : index
    %c0_127 = arith.constant 0 : index
    %345 = vector.load %arg4[%c0_126, %c0_127] : memref<128x384xf32, #tpu.memory_space<vmem>>, vector<128x384xf32>
    %cst_128 = arith.constant dense<0.000000e+00> : vector<1x384xf32>
    %346 = tpu.matmul %318, %345, %cst_128 {dimension_numbers = #tpu.dot_dimension_numbers<[1], [0], [0], [1], [0, 0, 1, 1], [], []>} : vector<1x128xf32>, vector<128x384xf32>, vector<1x384xf32> -> vector<1x384xf32>
    %347 = arith.addf %346, %1 : vector<1x384xf32>
    %348 = vector.extract_strided_slice %344 {offsets = [0, 0], sizes = [1, 128], strides = [1, 1]} : vector<1x384xf32> to vector<1x128xf32>
    %349 = vector.extract_strided_slice %347 {offsets = [0, 0], sizes = [1, 128], strides = [1, 1]} : vector<1x384xf32> to vector<1x128xf32>
    %350 = arith.addf %348, %349 : vector<1x128xf32>
    %351 = arith.negf %350 : vector<1x128xf32>
    %352 = math.exp %351 : vector<1x128xf32>
    %cst_129 = arith.constant 1.000000e+00 : f32
    %353 = vector.broadcast %cst_129 : f32 to vector<1x128xf32>
    %354 = arith.addf %353, %352 : vector<1x128xf32>
    %355 = arith.divf %353, %354 : vector<1x128xf32>
    %356 = vector.extract_strided_slice %344 {offsets = [0, 128], sizes = [1, 128], strides = [1, 1]} : vector<1x384xf32> to vector<1x128xf32>
    %357 = vector.extract_strided_slice %347 {offsets = [0, 128], sizes = [1, 128], strides = [1, 1]} : vector<1x384xf32> to vector<1x128xf32>
    %358 = arith.addf %356, %357 : vector<1x128xf32>
    %359 = arith.negf %358 : vector<1x128xf32>
    %360 = math.exp %359 : vector<1x128xf32>
    %cst_130 = arith.constant 1.000000e+00 : f32
    %361 = vector.broadcast %cst_130 : f32 to vector<1x128xf32>
    %362 = arith.addf %361, %360 : vector<1x128xf32>
    %363 = arith.divf %361, %362 : vector<1x128xf32>
    %364 = vector.extract_strided_slice %344 {offsets = [0, 256], sizes = [1, 128], strides = [1, 1]} : vector<1x384xf32> to vector<1x128xf32>
    %365 = vector.extract_strided_slice %347 {offsets = [0, 256], sizes = [1, 128], strides = [1, 1]} : vector<1x384xf32> to vector<1x128xf32>
    %366 = arith.mulf %355, %365 : vector<1x128xf32>
    %367 = arith.addf %364, %366 : vector<1x128xf32>
    %368 = math.tanh %367 : vector<1x128xf32>
    %cst_131 = arith.constant 1.000000e+00 : f32
    %369 = vector.broadcast %cst_131 : f32 to vector<1x128xf32>
    %370 = arith.subf %369, %363 : vector<1x128xf32>
    %371 = arith.mulf %370, %368 : vector<1x128xf32>
    %372 = arith.mulf %363, %318 : vector<1x128xf32>
    %373 = arith.addf %371, %372 : vector<1x128xf32>
    %c0_132 = arith.constant 0 : index
    %c0_133 = arith.constant 0 : index
    %374 = vector.load %arg7[%c0_132, %c0_133] : memref<128x128xf32, #tpu.memory_space<vmem>>, vector<128x128xf32>
    %cst_134 = arith.constant dense<0.000000e+00> : vector<1x128xf32>
    %375 = tpu.matmul %373, %374, %cst_134 {dimension_numbers = #tpu.dot_dimension_numbers<[1], [0], [0], [1], [0, 0, 1, 1], [], []>} : vector<1x128xf32>, vector<128x128xf32>, vector<1x128xf32> -> vector<1x128xf32>
    %376 = arith.addf %375, %2 : vector<1x128xf32>
    %cst_135 = arith.constant dense<0xFF800000> : vector<1xf32>
    %377 = vector.multi_reduction <maximumf>, %376, %cst_135 [1] : vector<1x128xf32> to vector<1xf32>
    %378 = vector.shape_cast %377 : vector<1xf32> to vector<1x1xf32>
    %379 = vector.broadcast %378 : vector<1x1xf32> to vector<1x128xf32>
    %380 = arith.subf %376, %379 : vector<1x128xf32>
    %381 = math.exp %380 : vector<1x128xf32>
    %cst_136 = arith.constant dense<0.000000e+00> : vector<1xf32>
    %382 = vector.multi_reduction <add>, %381, %cst_136 [1] : vector<1x128xf32> to vector<1xf32>
    %383 = vector.shape_cast %382 : vector<1xf32> to vector<1x1xf32>
    %384 = math.log %383 : vector<1x1xf32>
    %385 = vector.broadcast %384 : vector<1x1xf32> to vector<1x128xf32>
    %386 = arith.subf %380, %385 : vector<1x128xf32>
    %387 = arith.index_cast %c6_i32 : i32 to index
    %c0_137 = arith.constant 0 : index
    %388 = vector.load %arg9[%387, %c0_137] : memref<8x128xf32, #tpu.memory_space<vmem>>, vector<1x128xf32>
    tpu.vector_store %arg9[%387, %c0_137], %386 {strides = array<i32>} : memref<8x128xf32, #tpu.memory_space<vmem>>, vector<1x128xf32>,
    %c7_i32 = arith.constant 7 : i32
    %389 = arith.index_cast %c7_i32 : i32 to index
    %390 = memref.load %arg0[%389] : memref<8xi32, #tpu.memory_space<smem>>
    %c0_i32_138 = arith.constant 0 : i32
    %391 = arith.maxsi %390, %c0_i32_138 : i32
    %c127_i32_139 = arith.constant 127 : i32
    %392 = arith.minsi %391, %c127_i32_139 : i32
    %393 = arith.index_cast %392 : i32 to index
    %c0_140 = arith.constant 0 : index
    %394 = vector.load %arg1[%393, %c0_140] : memref<128x128xf32, #tpu.memory_space<vmem>>, vector<1x128xf32>
    %cst_141 = arith.constant 0.000000e+00 : f32
    %395 = vector.broadcast %cst_141 : f32 to vector<1x128xf32>
    %396 = arith.maximumf %394, %395 : vector<1x128xf32>
    %c0_142 = arith.constant 0 : index
    %c0_143 = arith.constant 0 : index
    %397 = vector.load %arg3[%c0_142, %c0_143] : memref<128x384xf32, #tpu.memory_space<vmem>>, vector<128x384xf32>
    %cst_144 = arith.constant dense<0.000000e+00> : vector<1x384xf32>
    %398 = tpu.matmul %396, %397, %cst_144 {dimension_numbers = #tpu.dot_dimension_numbers<[1], [0], [0], [1], [0, 0, 1, 1], [], []>} : vector<1x128xf32>, vector<128x384xf32>, vector<1x384xf32> -> vector<1x384xf32>
    %399 = arith.addf %398, %0 : vector<1x384xf32>
    %c0_145 = arith.constant 0 : index
    %c0_146 = arith.constant 0 : index
    %400 = vector.load %arg4[%c0_145, %c0_146] : memref<128x384xf32, #tpu.memory_space<vmem>>, vector<128x384xf32>
    %cst_147 = arith.constant dense<0.000000e+00> : vector<1x384xf32>
    %401 = tpu.matmul %373, %400, %cst_147 {dimension_numbers = #tpu.dot_dimension_numbers<[1], [0], [0], [1], [0, 0, 1, 1], [], []>} : vector<1x128xf32>, vector<128x384xf32>, vector<1x384xf32> -> vector<1x384xf32>
    %402 = arith.addf %401, %1 : vector<1x384xf32>
    %403 = vector.extract_strided_slice %399 {offsets = [0, 0], sizes = [1, 128], strides = [1, 1]} : vector<1x384xf32> to vector<1x128xf32>
    %404 = vector.extract_strided_slice %402 {offsets = [0, 0], sizes = [1, 128], strides = [1, 1]} : vector<1x384xf32> to vector<1x128xf32>
    %405 = arith.addf %403, %404 : vector<1x128xf32>
    %406 = arith.negf %405 : vector<1x128xf32>
    %407 = math.exp %406 : vector<1x128xf32>
    %cst_148 = arith.constant 1.000000e+00 : f32
    %408 = vector.broadcast %cst_148 : f32 to vector<1x128xf32>
    %409 = arith.addf %408, %407 : vector<1x128xf32>
    %410 = arith.divf %408, %409 : vector<1x128xf32>
    %411 = vector.extract_strided_slice %399 {offsets = [0, 128], sizes = [1, 128], strides = [1, 1]} : vector<1x384xf32> to vector<1x128xf32>
    %412 = vector.extract_strided_slice %402 {offsets = [0, 128], sizes = [1, 128], strides = [1, 1]} : vector<1x384xf32> to vector<1x128xf32>
    %413 = arith.addf %411, %412 : vector<1x128xf32>
    %414 = arith.negf %413 : vector<1x128xf32>
    %415 = math.exp %414 : vector<1x128xf32>
    %cst_149 = arith.constant 1.000000e+00 : f32
    %416 = vector.broadcast %cst_149 : f32 to vector<1x128xf32>
    %417 = arith.addf %416, %415 : vector<1x128xf32>
    %418 = arith.divf %416, %417 : vector<1x128xf32>
    %419 = vector.extract_strided_slice %399 {offsets = [0, 256], sizes = [1, 128], strides = [1, 1]} : vector<1x384xf32> to vector<1x128xf32>
    %420 = vector.extract_strided_slice %402 {offsets = [0, 256], sizes = [1, 128], strides = [1, 1]} : vector<1x384xf32> to vector<1x128xf32>
    %421 = arith.mulf %410, %420 : vector<1x128xf32>
    %422 = arith.addf %419, %421 : vector<1x128xf32>
    %423 = math.tanh %422 : vector<1x128xf32>
    %cst_150 = arith.constant 1.000000e+00 : f32
    %424 = vector.broadcast %cst_150 : f32 to vector<1x128xf32>
    %425 = arith.subf %424, %418 : vector<1x128xf32>
    %426 = arith.mulf %425, %423 : vector<1x128xf32>
    %427 = arith.mulf %418, %373 : vector<1x128xf32>
    %428 = arith.addf %426, %427 : vector<1x128xf32>
    %c0_151 = arith.constant 0 : index
    %c0_152 = arith.constant 0 : index
    %429 = vector.load %arg7[%c0_151, %c0_152] : memref<128x128xf32, #tpu.memory_space<vmem>>, vector<128x128xf32>
    %cst_153 = arith.constant dense<0.000000e+00> : vector<1x128xf32>
    %430 = tpu.matmul %428, %429, %cst_153 {dimension_numbers = #tpu.dot_dimension_numbers<[1], [0], [0], [1], [0, 0, 1, 1], [], []>} : vector<1x128xf32>, vector<128x128xf32>, vector<1x128xf32> -> vector<1x128xf32>
    %431 = arith.addf %430, %2 : vector<1x128xf32>
    %cst_154 = arith.constant dense<0xFF800000> : vector<1xf32>
    %432 = vector.multi_reduction <maximumf>, %431, %cst_154 [1] : vector<1x128xf32> to vector<1xf32>
    %433 = vector.shape_cast %432 : vector<1xf32> to vector<1x1xf32>
    %434 = vector.broadcast %433 : vector<1x1xf32> to vector<1x128xf32>
    %435 = arith.subf %431, %434 : vector<1x128xf32>
    %436 = math.exp %435 : vector<1x128xf32>
    %cst_155 = arith.constant dense<0.000000e+00> : vector<1xf32>
    %437 = vector.multi_reduction <add>, %436, %cst_155 [1] : vector<1x128xf32> to vector<1xf32>
    %438 = vector.shape_cast %437 : vector<1xf32> to vector<1x1xf32>
    %439 = math.log %438 : vector<1x1xf32>
    %440 = vector.broadcast %439 : vector<1x1xf32> to vector<1x128xf32>
    %441 = arith.subf %435, %440 : vector<1x128xf32>
    %442 = arith.index_cast %c7_i32 : i32 to index
    %c0_156 = arith.constant 0 : index
    %443 = vector.load %arg9[%442, %c0_156] : memref<8x128xf32, #tpu.memory_space<vmem>>, vector<1x128xf32>
    tpu.vector_store %arg9[%442, %c0_156], %441 {strides = array<i32>} : memref<8x128xf32, #tpu.memory_space<vmem>>, vector<1x128xf32>,
    %c8_i32 = arith.constant 8 : i32
    %c0_157 = arith.constant 0 : index
    %c0_158 = arith.constant 0 : index
    %444 = vector.load %arg10[%c0_157, %c0_158] : memref<1x128xf32, #tpu.memory_space<vmem>>, vector<1x128xf32>
    tpu.vector_store %arg10[%c0_157, %c0_158], %428 {strides = array<i32>} : memref<1x128xf32, #tpu.memory_space<vmem>>, vector<1x128xf32>,
    return
  }
}

</mosaic_0001>

<llo_original>
// kernel: decoder_rnn_decode.1
$region0: #{decoder_rnn_decode.1}
  #allocation0 [shape = 'u32[]', space=smem, size = 0x4, offset = 0x4, fixed_abs, tag = 'smem constant byte address 0x4 - core index']
  #allocation1 [shape = 'u32[144,128]{1,0:T(1,128)}', space=vmem, size = 0x12000, scoped, tag = 'internal scratch']
  %s0 = inlined_call_operand.vmem [shape: s32[8], index: 0, kind: input, shape index: {}]
  %s1 = inlined_call_operand.hbm [shape: f32[128,128], index: 1, kind: input, shape index: {}]
  %s2 = inlined_call_operand.vmem [shape: f32[1,128], index: 2, kind: input, shape index: {}]
  %s3 = inlined_call_operand.hbm [shape: f32[128,384], index: 3, kind: input, shape index: {}]
  %s4 = inlined_call_operand.hbm [shape: f32[128,384], index: 4, kind: input, shape index: {}]
  %s5 = inlined_call_operand.vmem [shape: f32[1,384], index: 5, kind: input, shape index: {}]
  %s6 = inlined_call_operand.vmem [shape: f32[1,384], index: 6, kind: input, shape index: {}]
  %s7 = inlined_call_operand.hbm [shape: f32[128,128], index: 7, kind: input, shape index: {}]
  %s8 = inlined_call_operand.vmem [shape: f32[1,128], index: 8, kind: input, shape index: {}]
  %s9 = inlined_call_operand.hbm [shape: f32[8,128], index: 9, kind: output, shape index: {0}]
  %s10 = inlined_call_operand.hbm [shape: f32[1,128], index: 10, kind: output, shape index: {1}]
  %11 = xla_tuple %s9, %s10
  %s12 = sld [smem:[#allocation0]]
  $region74: #{decoder_rnn_decode.1} parent=0
    _
  %s14 = ssub.s32 1, %s12
  %s15 = scalar_select 0, %s14, %s12
  $region1: #{decoder_rnn_decode.1} parent=0
    #allocation2 [shape = 'u8[512]{0}', space=smem, size = 0x200, scoped, tag = 'input window, operand 0, single buffered']
    #allocation3 [shape = 's32[1]{0}', space=sflag, size = 0x4, scoped, tag = 'scoped memory for decoder_rnn_decode.1']
    #allocation4 [shape = 's32[1]{0}', space=sflag, size = 0x4, scoped, tag = 'scoped memory for decoder_rnn_decode.1']
    #allocation5 [shape = 's32[1]{0}', space=sflag, size = 0x4, scoped, tag = 'scoped memory for decoder_rnn_decode.1']
    #allocation6 [shape = 'u8[65536]{0}', space=vmem, size = 0x10000, scoped, tag = 'input window, operand 1, single buffered']
    #allocation7 [shape = 'u8[196608]{0}', space=vmem, size = 0x30000, scoped, tag = 'input window, operand 3, single buffered']
    #allocation8 [shape = 's32[1]{0}', space=sflag, size = 0x4, scoped, tag = 'scoped memory for decoder_rnn_decode.1']
    #allocation9 [shape = 'u8[196608]{0}', space=vmem, size = 0x30000, scoped, tag = 'input window, operand 4, single buffered']
    #allocation10 [shape = 'u8[65536]{0}', space=vmem, size = 0x10000, scoped, tag = 'input window, operand 7, single buffered']
    #allocation11 [shape = 's32[1]{0}', space=sflag, size = 0x4, scoped, tag = 'scoped memory for decoder_rnn_decode.1']
    #allocation12 [shape = 'u8[4096]{0}', space=vmem, size = 0x1000, scoped, tag = 'output window, operand 0, single buffered']
    #allocation13 [shape = 'u8[512]{0}', space=vmem, size = 0x400, scoped, tag = 'output window, operand 1, single buffered']
    #allocation14 [shape = 's32[1]{0}', space=sflag, size = 0x4, scoped, tag = 'scoped memory for decoder_rnn_decode.1']
    %16 = vsyncpa [#allocation5], 0
    %17 = vsyncpa [#allocation3], 0
    %18 = vsyncpa [#allocation8], 0
    %19 = vsyncpa [#allocation11], 0
    %20 = vsyncpa [#allocation4], 0
    %21 = vsyncpa [#allocation14], 0
    // Predicated region
    $region2: #{decoder_rnn_decode.1} parent=1 // pred_check
      _
    $region3: #{decoder_rnn_decode.1} parent=1 // pred_check_branch
      %23 = sbr.rel (0) target = $region5
    $region4: #{decoder_rnn_decode.1} parent=1 // pred_region
      %s25 = ssub.s32 16, 16
      %26 = vsyncadd [#allocation5], %s25
      %s28 = sshll.u32 %s0, 4
      %s29 = int_to_ptr.vmem [resolvable:$true] %s28
      %31 = dma.vmem_to_smem %s29, 16, [#allocation2], [#allocation5]
    $region5: #{decoder_rnn_decode.1} parent=1 // pred_fallthru
      _
    // Predicated region
    $region6: #{decoder_rnn_decode.1} parent=1 // pred_check
      _
    $region7: #{decoder_rnn_decode.1} parent=1 // pred_check_branch
      %33 = sbr.rel (0) target = $region9
    $region8: #{decoder_rnn_decode.1} parent=1 // pred_region
      %s35 = ssub.s32 2048, 2048
      %36 = vsyncadd [#allocation3], %s35
      %s37 = sshll.u32 [#allocation6], 4
      %s38 = int_to_ptr.vmem [resolvable:$true] %s37
      %43 = dma.hbm_to_vmem [thread:$0]  %s1, 2048, %s38, [#allocation3], 128, 128, 8
    $region9: #{decoder_rnn_decode.1} parent=1 // pred_fallthru
      _
    // Predicated region
    $region10: #{decoder_rnn_decode.1} parent=1 // pred_check
      _
    $region11: #{decoder_rnn_decode.1} parent=1 // pred_check_branch
      %45 = sbr.rel (0) target = $region13
    $region12: #{decoder_rnn_decode.1} parent=1 // pred_region
      _
    $region13: #{decoder_rnn_decode.1} parent=1 // pred_fallthru
      _
    // Predicated region
    $region14: #{decoder_rnn_decode.1} parent=1 // pred_check
      _
    $region15: #{decoder_rnn_decode.1} parent=1 // pred_check_branch
      %47 = sbr.rel (0) target = $region17
    $region16: #{decoder_rnn_decode.1} parent=1 // pred_region
      %s49 = ssub.s32 6144, 6144
      %50 = vsyncadd [#allocation8], %s49
      %s51 = sshll.u32 [#allocation7], 4
      %s52 = int_to_ptr.vmem [resolvable:$true] %s51
      %57 = dma.hbm_to_vmem [thread:$0]  %s3, 6144, %s52, [#allocation8], 384, 384, 24
    $region17: #{decoder_rnn_decode.1} parent=1 // pred_fallthru
      _
    // Predicated region
    $region18: #{decoder_rnn_decode.1} parent=1 // pred_check
      _
    $region19: #{decoder_rnn_decode.1} parent=1 // pred_check_branch
      %59 = sbr.rel (0) target = $region21
    $region20: #{decoder_rnn_decode.1} parent=1 // pred_region
      %s61 = ssub.s32 6144, 6144
      %62 = vsyncadd [#allocation8], %s61
      %s63 = sshll.u32 [#allocation9], 4
      %s64 = int_to_ptr.vmem [resolvable:$true] %s63
      %69 = dma.hbm_to_vmem [thread:$0]  %s4, 6144, %s64, [#allocation8], 384, 384, 24
    $region21: #{decoder_rnn_decode.1} parent=1 // pred_fallthru
      _
    // Predicated region
    $region22: #{decoder_rnn_decode.1} parent=1 // pred_check
      _
    $region23: #{decoder_rnn_decode.1} parent=1 // pred_check_branch
      %71 = sbr.rel (0) target = $region25
    $region24: #{decoder_rnn_decode.1} parent=1 // pred_region
      _
    $region25: #{decoder_rnn_decode.1} parent=1 // pred_fallthru
      _
    // Predicated region
    $region26: #{decoder_rnn_decode.1} parent=1 // pred_check
      _
    $region27: #{decoder_rnn_decode.1} parent=1 // pred_check_branch
      %73 = sbr.rel (0) target = $region29
    $region28: #{decoder_rnn_decode.1} parent=1 // pred_region
      _
    $region29: #{decoder_rnn_decode.1} parent=1 // pred_fallthru
      _
    // Predicated region
    $region30: #{decoder_rnn_decode.1} parent=1 // pred_check
      _
    $region31: #{decoder_rnn_decode.1} parent=1 // pred_check_branch
      %75 = sbr.rel (0) target = $region33
    $region32: #{decoder_rnn_decode.1} parent=1 // pred_region
      %s77 = ssub.s32 2048, 2048
      %78 = vsyncadd [#allocation11], %s77
      %s79 = sshll.u32 [#allocation10], 4
      %s80 = int_to_ptr.vmem [resolvable:$true] %s79
      %85 = dma.hbm_to_vmem [thread:$0]  %s7, 2048, %s80, [#allocation11], 128, 128, 8
    $region33: #{decoder_rnn_decode.1} parent=1 // pred_fallthru
      _
    // Predicated region
    $region34: #{decoder_rnn_decode.1} parent=1 // pred_check
      _
    $region35: #{decoder_rnn_decode.1} parent=1 // pred_check_branch
      %87 = sbr.rel (0) target = $region37
    $region36: #{decoder_rnn_decode.1} parent=1 // pred_region
      _
    $region37: #{decoder_rnn_decode.1} parent=1 // pred_fallthru
      _
    // Predicated region
    $region38: #{decoder_rnn_decode.1} parent=1 // pred_check
      _
    $region39: #{decoder_rnn_decode.1} parent=1 // pred_check_branch
      %89 = sbr.rel (0) target = $region41
    $region40: #{decoder_rnn_decode.1} parent=1 // pred_region
      %90 = dma.done [#allocation5], 16
    $region41: #{decoder_rnn_decode.1} parent=1 // pred_fallthru
      _
    // Predicated region
    $region42: #{decoder_rnn_decode.1} parent=1 // pred_check
      _
    $region43: #{decoder_rnn_decode.1} parent=1 // pred_check_branch
      %92 = sbr.rel (0) target = $region45
    $region44: #{decoder_rnn_decode.1} parent=1 // pred_region
      %93 = dma.done [#allocation3], 2048
    $region45: #{decoder_rnn_decode.1} parent=1 // pred_fallthru
      _
    // Predicated region
    $region46: #{decoder_rnn_decode.1} parent=1 // pred_check
      _
    $region47: #{decoder_rnn_decode.1} parent=1 // pred_check_branch
      %95 = sbr.rel (0) target = $region49
    $region48: #{decoder_rnn_decode.1} parent=1 // pred_region
      %96 = dma.done [#allocation8], 6144
    $region49: #{decoder_rnn_decode.1} parent=1 // pred_fallthru
      _
    // Predicated region
    $region50: #{decoder_rnn_decode.1} parent=1 // pred_check
      _
    $region51: #{decoder_rnn_decode.1} parent=1 // pred_check_branch
      %98 = sbr.rel (0) target = $region53
    $region52: #{decoder_rnn_decode.1} parent=1 // pred_region
      %99 = dma.done [#allocation8], 6144
    $region53: #{decoder_rnn_decode.1} parent=1 // pred_fallthru
      _
    // Predicated region
    $region54: #{decoder_rnn_decode.1} parent=1 // pred_check
      _
    $region55: #{decoder_rnn_decode.1} parent=1 // pred_check_branch
      %101 = sbr.rel (0) target = $region57
    $region56: #{decoder_rnn_decode.1} parent=1 // pred_region
      %102 = dma.done [#allocation11], 2048
    $region57: #{decoder_rnn_decode.1} parent=1 // pred_fallthru
      _
    %103 = sfence
    %v104 = vld [vmem:[%s5] sm:$0x7]
    %v105 = vld [vmem:[%s6] sm:$0x7]
    %v106 = vld [vmem:[%s8] sm:$0x1]
    %v107 = vld [vmem:[%s2] sm:$0x1]
    %s108 = sld [smem:[#allocation2]]
    %p109 = scmp.gt.s32.totalorder %s108, 0
    %s110 = scalar_select %p109, %s108, 0
    %p111 = scmp.lt.s32.totalorder %s110, 127
    %s112 = scalar_select %p111, %s110, 127
    %s113 = scalar_lea.vmem [#allocation6], %s112
    %v114 = vld [vmem:[%s113] sm:$0x1]
    %v115 = vmax.f32 %v114, 0.0
    %v116 = vld [vmem:[#allocation7] sm:$0xff]
    %v117 = vld [vmem:[#allocation7 + $0x8] sm:$0xff]
    %v118 = vld [vmem:[#allocation7 + $0x10] sm:$0xff]
    %v119 = vld [vmem:[#allocation7 + $0x18] sm:$0xff]
    %v120 = vld [vmem:[#allocation7 + $0x20] sm:$0xff]
    %v121 = vld [vmem:[#allocation7 + $0x28] sm:$0xff]
    %v122 = vld [vmem:[#allocation7 + $0x30] sm:$0xff]
    %v123 = vld [vmem:[#allocation7 + $0x38] sm:$0xff]
    %v124 = vld [vmem:[#allocation7 + $0x40] sm:$0xff]
    %v125 = vld [vmem:[#allocation7 + $0x48] sm:$0xff]
    %v126 = vld [vmem:[#allocation7 + $0x50] sm:$0xff]
    %v127 = vld [vmem:[#allocation7 + $0x58] sm:$0xff]
    %v128 = vld [vmem:[#allocation7 + $0x60] sm:$0xff]
    %v129 = vld [vmem:[#allocation7 + $0x68] sm:$0xff]
    %v130 = vld [vmem:[#allocation7 + $0x70] sm:$0xff]
    %v131 = vld [vmem:[#allocation7 + $0x78] sm:$0xff]
    %v132 = vld [vmem:[#allocation7 + $0x80] sm:$0xff]
    %v133 = vld [vmem:[#allocation7 + $0x88] sm:$0xff]
    %v134 = vld [vmem:[#allocation7 + $0x90] sm:$0xff]
    %v135 = vld [vmem:[#allocation7 + $0x98] sm:$0xff]
    %v136 = vld [vmem:[#allocation7 + $0xa0] sm:$0xff]
    %v137 = vld [vmem:[#allocation7 + $0xa8] sm:$0xff]
    %v138 = vld [vmem:[#allocation7 + $0xb0] sm:$0xff]
    %v139 = vld [vmem:[#allocation7 + $0xb8] sm:$0xff]
    %v140 = vld [vmem:[#allocation7 + $0xc0] sm:$0xff]
    %v141 = vld [vmem:[#allocation7 + $0xc8] sm:$0xff]
    %v142 = vld [vmem:[#allocation7 + $0xd0] sm:$0xff]
    %v143 = vld [vmem:[#allocation7 + $0xd8] sm:$0xff]
    %v144 = vld [vmem:[#allocation7 + $0xe0] sm:$0xff]
    %v145 = vld [vmem:[#allocation7 + $0xe8] sm:$0xff]
    %v146 = vld [vmem:[#allocation7 + $0xf0] sm:$0xff]
    %v147 = vld [vmem:[#allocation7 + $0xf8] sm:$0xff]
    %v148 = vld [vmem:[#allocation7 + $0x100] sm:$0xff]
    %v149 = vld [vmem:[#allocation7 + $0x108] sm:$0xff]
    %v150 = vld [vmem:[#allocation7 + $0x110] sm:$0xff]
    %v151 = vld [vmem:[#allocation7 + $0x118] sm:$0xff]
    %v152 = vld [vmem:[#allocation7 + $0x120] sm:$0xff]
    %v153 = vld [vmem:[#allocation7 + $0x128] sm:$0xff]
    %v154 = vld [vmem:[#allocation7 + $0x130] sm:$0xff]
    %v155 = vld [vmem:[#allocation7 + $0x138] sm:$0xff]
    %v156 = vld [vmem:[#allocation7 + $0x140] sm:$0xff]
    %v157 = vld [vmem:[#allocation7 + $0x148] sm:$0xff]
    %v158 = vld [vmem:[#allocation7 + $0x150] sm:$0xff]
    %v159 = vld [vmem:[#allocation7 + $0x158] sm:$0xff]
    %v160 = vld [vmem:[#allocation7 + $0x160] sm:$0xff]
    %v161 = vld [vmem:[#allocation7 + $0x168] sm:$0xff]
    %v162 = vld [vmem:[#allocation7 + $0x170] sm:$0xff]
    %v163 = vld [vmem:[#allocation7 + $0x178] sm:$0xff]
    %v165 = vlaneseq
    %v166 = vshrl.u32 %v165, 7
    %v167 = vsub.s32 0, %v166
    %v168 = vrot.slane %v104, %v167
    %v169 = vlaneseq
    %v170 = vshrl.u32 %v169, 7
    %v171 = vsub.s32 1, %v170
    %v172 = vrot.slane %v104, %v171
    %v173 = vlaneseq
    %v174 = vshrl.u32 %v173, 7
    %v175 = vsub.s32 2, %v174
    %v176 = vrot.slane %v104, %v175
    %180 = vmatprep.subr.mxu0 %v117
    %181 = vmatpush1.msra.mxu0 %v116
    %182 = vmatprep.subr.mxu0 %v120
    %183 = vmatpush1.msra.mxu0 %v119
    %184 = vmatprep.subr.mxu0 %v123
    %185 = vmatpush1.msra.mxu0 %v122
    %186 = vmatprep.subr.mxu0 %v126
    %187 = vmatpush1.msra.mxu0 %v125
    %188 = vmatprep.subr.mxu0 %v129
    %189 = vmatpush1.msra.mxu0 %v128
    %190 = vmatprep.subr.mxu0 %v132
    %191 = vmatpush1.msra.mxu0 %v131
    %192 = vmatprep.subr.mxu0 %v135
    %193 = vmatpush1.msra.mxu0 %v134
    %194 = vmatprep.subr.mxu0 %v138
    %195 = vmatpush1.msra.mxu0 %v137
    %196 = vmatprep.subr.mxu0 %v141
    %197 = vmatpush1.msra.mxu0 %v140
    %198 = vmatprep.subr.mxu0 %v144
    %199 = vmatpush1.msra.mxu0 %v143
    %200 = vmatprep.subr.mxu0 %v147
    %201 = vmatpush1.msra.mxu0 %v146
    %202 = vmatprep.subr.mxu0 %v150
    %203 = vmatpush1.msra.mxu0 %v149
    %204 = vmatprep.subr.mxu0 %v153
    %205 = vmatpush1.msra.mxu0 %v152
    %206 = vmatprep.subr.mxu0 %v156
    %207 = vmatpush1.msra.mxu0 %v155
    %208 = vmatprep.subr.mxu0 %v159
    %209 = vmatpush1.msra.mxu0 %v158
    %210 = vmatprep.subr.mxu0 %v162
    %211 = vmatpush1.msra.mxu0 %v161
    %212 = vmatprep.subr.mxu0 0.0
    %213 = vmatpush1.msra.mxu0 0.0
    %214 = vmatprep.subr.mxu0 0.0
    %215 = vmatpush1.msra.mxu0 0.0
    %216 = vmatprep.subr.mxu0 0.0
    %217 = vmatpush1.msra.mxu0 0.0
    %218 = vmatprep.subr.mxu0 0.0
    %219 = vmatpush1.msra.mxu0 0.0
    %220 = vmatprep.subr.mxu0 0.0
    %221 = vmatpush1.msra.mxu0 0.0
    %222 = vmatprep.subr.mxu0 0.0
    %223 = vmatpush1.msra.mxu0 0.0
    %224 = vmatprep.subr.mxu0 0.0
    %225 = vmatpush1.msra.mxu0 0.0
    %226 = vmatprep.subr.mxu0 0.0
    %227 = vmatpush1.msra.mxu0 0.0
    %228 = vmatprep.subr.mxu0 0.0
    %229 = vmatpush1.msra.mxu0 0.0
    %230 = vmatprep.subr.mxu0 0.0
    %231 = vmatpush1.msra.mxu0 0.0
    %232 = vmatprep.subr.mxu0 0.0
    %233 = vmatpush1.msra.mxu0 0.0
    %234 = vmatprep.subr.mxu0 0.0
    %235 = vmatpush1.msra.mxu0 0.0
    %236 = vmatprep.subr.mxu0 0.0
    %237 = vmatpush1.msra.mxu0 0.0
    %238 = vmatprep.subr.mxu0 0.0
    %239 = vmatpush1.msra.mxu0 0.0
    %240 = vmatprep.subr.mxu0 0.0
    %241 = vmatpush1.msra.mxu0 0.0
    %242 = vmatprep.subr.mxu0 0.0
    %243 = vmatpush1.msra.mxu0 0.0
    %244 = vmatprep.mubr.f32.mxu0 0.0
    %245 = vmatmul.mubr.f32.gmra.mrb[0].mxu0 %v115
    %v246 = vpop.f32.mrb[0].mxu0
    %v247 = vadd.f32 %v168, %v246
    %v248 = vpop.f32.mrb[0].mxu0
    %v249 = vadd.f32 %v172, %v248
    %250 = vdwg.mxu0
    %251 = vmatprep.subr.mxu0 0.0
    %252 = vmatpush1.msra.mxu0 %v118
    %253 = vmatprep.subr.mxu0 0.0
    %254 = vmatpush1.msra.mxu0 %v121
    %255 = vmatprep.subr.mxu0 0.0
    %256 = vmatpush1.msra.mxu0 %v124
    %257 = vmatprep.subr.mxu0 0.0
    %258 = vmatpush1.msra.mxu0 %v127
    %259 = vmatprep.subr.mxu0 0.0
    %260 = vmatpush1.msra.mxu0 %v130
    %261 = vmatprep.subr.mxu0 0.0
    %262 = vmatpush1.msra.mxu0 %v133
    %263 = vmatprep.subr.mxu0 0.0
    %264 = vmatpush1.msra.mxu0 %v136
    %265 = vmatprep.subr.mxu0 0.0
    %266 = vmatpush1.msra.mxu0 %v139
    %267 = vmatprep.subr.mxu0 0.0
    %268 = vmatpush1.msra.mxu0 %v142
    %269 = vmatprep.subr.mxu0 0.0
    %270 = vmatpush1.msra.mxu0 %v145
    %271 = vmatprep.subr.mxu0 0.0
    %272 = vmatpush1.msra.mxu0 %v148
    %273 = vmatprep.subr.mxu0 0.0
    %274 = vmatpush1.msra.mxu0 %v151
    %275 = vmatprep.subr.mxu0 0.0
    %276 = vmatpush1.msra.mxu0 %v154
    %277 = vmatprep.subr.mxu0 0.0
    %278 = vmatpush1.msra.mxu0 %v157
    %279 = vmatprep.subr.mxu0 0.0
    %280 = vmatpush1.msra.mxu0 %v160
    %281 = vmatprep.subr.mxu0 0.0
    %282 = vmatpush1.msra.mxu0 %v163
    %283 = vmatprep.subr.mxu0 0.0
    %284 = vmatpush1.msra.mxu0 0.0
    %285 = vmatprep.subr.mxu0 0.0
    %286 = vmatpush1.msra.mxu0 0.0
    %287 = vmatprep.subr.mxu0 0.0
    %288 = vmatpush1.msra.mxu0 0.0
    %289 = vmatprep.subr.mxu0 0.0
    %290 = vmatpush1.msra.mxu0 0.0
    %291 = vmatprep.subr.mxu0 0.0
    %292 = vmatpush1.msra.mxu0 0.0
    %293 = vmatprep.subr.mxu0 0.0
    %294 = vmatpush1.msra.mxu0 0.0
    %295 = vmatprep.subr.mxu0 0.0
    %296 = vmatpush1.msra.mxu0 0.0
    %297 = vmatprep.subr.mxu0 0.0
    %298 = vmatpush1.msra.mxu0 0.0
    %299 = vmatprep.subr.mxu0 0.0
    %300 = vmatpush1.msra.mxu0 0.0
    %301 = vmatprep.subr.mxu0 0.0
    %302 = vmatpush1.msra.mxu0 0.0
    %303 = vmatprep.subr.mxu0 0.0
    %304 = vmatpush1.msra.mxu0 0.0
    %305 = vmatprep.subr.mxu0 0.0
    %306 = vmatpush1.msra.mxu0 0.0
    %307 = vmatprep.subr.mxu0 0.0
    %308 = vmatpush1.msra.mxu0 0.0
    %309 = vmatprep.subr.mxu0 0.0
    %310 = vmatpush1.msra.mxu0 0.0
    %311 = vmatprep.subr.mxu0 0.0
    %312 = vmatpush1.msra.mxu0 0.0
    %313 = vmatprep.subr.mxu0 0.0
    %314 = vmatpush1.msra.mxu0 0.0
    %315 = vmatprep.mubr.f32.mxu0 0.0
    %316 = vmatmul.mubr.f32.gmra.mrb[0].mxu0 %v115
    %v317 = vpop.f32.mrb[0].mxu0
    %v318 = vadd.f32 %v176, %v317
    %v319 = vpop.f32.mrb[0].mxu0
    %320 = vdwg.mxu0
    %v321 = vld [vmem:[#allocation9] sm:$0xff]
    %v322 = vld [vmem:[#allocation9 + $0x8] sm:$0xff]
    %v323 = vld [vmem:[#allocation9 + $0x10] sm:$0xff]
    %v324 = vld [vmem:[#allocation9 + $0x18] sm:$0xff]
    %v325 = vld [vmem:[#allocation9 + $0x20] sm:$0xff]
    %v326 = vld [vmem:[#allocation9 + $0x28] sm:$0xff]
    %v327 = vld [vmem:[#allocation9 + $0x30] sm:$0xff]
    %v328 = vld [vmem:[#allocation9 + $0x38] sm:$0xff]
    %v329 = vld [vmem:[#allocation9 + $0x40] sm:$0xff]
    %v330 = vld [vmem:[#allocation9 + $0x48] sm:$0xff]
    %v331 = vld [vmem:[#allocation9 + $0x50] sm:$0xff]
    %v332 = vld [vmem:[#allocation9 + $0x58] sm:$0xff]
    %v333 = vld [vmem:[#allocation9 + $0x60] sm:$0xff]
    %v334 = vld [vmem:[#allocation9 + $0x68] sm:$0xff]
    %v335 = vld [vmem:[#allocation9 + $0x70] sm:$0xff]
    %v336 = vld [vmem:[#allocation9 + $0x78] sm:$0xff]
    %v337 = vld [vmem:[#allocation9 + $0x80] sm:$0xff]
    %v338 = vld [vmem:[#allocation9 + $0x88] sm:$0xff]
    %v339 = vld [vmem:[#allocation9 + $0x90] sm:$0xff]
    %v340 = vld [vmem:[#allocation9 + $0x98] sm:$0xff]
    %v341 = vld [vmem:[#allocation9 + $0xa0] sm:$0xff]
    %v342 = vld [vmem:[#allocation9 + $0xa8] sm:$0xff]
    %v343 = vld [vmem:[#allocation9 + $0xb0] sm:$0xff]
    %v344 = vld [vmem:[#allocation9 + $0xb8] sm:$0xff]
    %v345 = vld [vmem:[#allocation9 + $0xc0] sm:$0xff]
    %v346 = vld [vmem:[#allocation9 + $0xc8] sm:$0xff]
    %v347 = vld [vmem:[#allocation9 + $0xd0] sm:$0xff]
    %v348 = vld [vmem:[#allocation9 + $0xd8] sm:$0xff]
    %v349 = vld [vmem:[#allocation9 + $0xe0] sm:$0xff]
    %v350 = vld [vmem:[#allocation9 + $0xe8] sm:$0xff]
    %v351 = vld [vmem:[#allocation9 + $0xf0] sm:$0xff]
    %v352 = vld [vmem:[#allocation9 + $0xf8] sm:$0xff]
    %v353 = vld [vmem:[#allocation9 + $0x100] sm:$0xff]
    %v354 = vld [vmem:[#allocation9 + $0x108] sm:$0xff]
    %v355 = vld [vmem:[#allocation9 + $0x110] sm:$0xff]
    %v356 = vld [vmem:[#allocation9 + $0x118] sm:$0xff]
    %v357 = vld [vmem:[#allocation9 + $0x120] sm:$0xff]
    %v358 = vld [vmem:[#allocation9 + $0x128] sm:$0xff]
    %v359 = vld [vmem:[#allocation9 + $0x130] sm:$0xff]
    %v360 = vld [vmem:[#allocation9 + $0x138] sm:$0xff]
    %v361 = vld [vmem:[#allocation9 + $0x140] sm:$0xff]
    %v362 = vld [vmem:[#allocation9 + $0x148] sm:$0xff]
    %v363 = vld [vmem:[#allocation9 + $0x150] sm:$0xff]
    %v364 = vld [vmem:[#allocation9 + $0x158] sm:$0xff]
    %v365 = vld [vmem:[#allocation9 + $0x160] sm:$0xff]
    %v366 = vld [vmem:[#allocation9 + $0x168] sm:$0xff]
    %v367 = vld [vmem:[#allocation9 + $0x170] sm:$0xff]
    %v368 = vld [vmem:[#allocation9 + $0x178] sm:$0xff]
    %v370 = vlaneseq
    %v371 = vshrl.u32 %v370, 7
    %v372 = vsub.s32 0, %v371
    %v373 = vrot.slane %v105, %v372
    %v374 = vlaneseq
    %v375 = vshrl.u32 %v374, 7
    %v376 = vsub.s32 1, %v375
    %v377 = vrot.slane %v105, %v376
    %v378 = vlaneseq
    %v379 = vshrl.u32 %v378, 7
    %v380 = vsub.s32 2, %v379
    %v381 = vrot.slane %v105, %v380
    %385 = vmatprep.subr.mxu0 %v322
    %386 = vmatpush1.msra.mxu0 %v321
    %387 = vmatprep.subr.mxu0 %v325
    %388 = vmatpush1.msra.mxu0 %v324
    %389 = vmatprep.subr.mxu0 %v328
    %390 = vmatpush1.msra.mxu0 %v327
    %391 = vmatprep.subr.mxu0 %v331
    %392 = vmatpush1.msra.mxu0 %v330
    %393 = vmatprep.subr.mxu0 %v334
    %394 = vmatpush1.msra.mxu0 %v333
    %395 = vmatprep.subr.mxu0 %v337
    %396 = vmatpush1.msra.mxu0 %v336
    %397 = vmatprep.subr.mxu0 %v340
    %398 = vmatpush1.msra.mxu0 %v339
    %399 = vmatprep.subr.mxu0 %v343
    %400 = vmatpush1.msra.mxu0 %v342
    %401 = vmatprep.subr.mxu0 %v346
    %402 = vmatpush1.msra.mxu0 %v345
    %403 = vmatprep.subr.mxu0 %v349
    %404 = vmatpush1.msra.mxu0 %v348
    %405 = vmatprep.subr.mxu0 %v352
    %406 = vmatpush1.msra.mxu0 %v351
    %407 = vmatprep.subr.mxu0 %v355
    %408 = vmatpush1.msra.mxu0 %v354
    %409 = vmatprep.subr.mxu0 %v358
    %410 = vmatpush1.msra.mxu0 %v357
    %411 = vmatprep.subr.mxu0 %v361
    %412 = vmatpush1.msra.mxu0 %v360
    %413 = vmatprep.subr.mxu0 %v364
    %414 = vmatpush1.msra.mxu0 %v363
    %415 = vmatprep.subr.mxu0 %v367
    %416 = vmatpush1.msra.mxu0 %v366
    %417 = vmatprep.subr.mxu0 0.0
    %418 = vmatpush1.msra.mxu0 0.0
    %419 = vmatprep.subr.mxu0 0.0
    %420 = vmatpush1.msra.mxu0 0.0
    %421 = vmatprep.subr.mxu0 0.0
    %422 = vmatpush1.msra.mxu0 0.0
    %423 = vmatprep.subr.mxu0 0.0
    %424 = vmatpush1.msra.mxu0 0.0
    %425 = vmatprep.subr.mxu0 0.0
    %426 = vmatpush1.msra.mxu0 0.0
    %427 = vmatprep.subr.mxu0 0.0
    %428 = vmatpush1.msra.mxu0 0.0
    %429 = vmatprep.subr.mxu0 0.0
    %430 = vmatpush1.msra.mxu0 0.0
    %431 = vmatprep.subr.mxu0 0.0
    %432 = vmatpush1.msra.mxu0 0.0
    %433 = vmatprep.subr.mxu0 0.0
    %434 = vmatpush1.msra.mxu0 0.0
    %435 = vmatprep.subr.mxu0 0.0
    %436 = vmatpush1.msra.mxu0 0.0
    %437 = vmatprep.subr.mxu0 0.0
    %438 = vmatpush1.msra.mxu0 0.0
    %439 = vmatprep.subr.mxu0 0.0
    %440 = vmatpush1.msra.mxu0 0.0
    %441 = vmatprep.subr.mxu0 0.0
    %442 = vmatpush1.msra.mxu0 0.0
    %443 = vmatprep.subr.mxu0 0.0
    %444 = vmatpush1.msra.mxu0 0.0
    %445 = vmatprep.subr.mxu0 0.0
    %446 = vmatpush1.msra.mxu0 0.0
    %447 = vmatprep.subr.mxu0 0.0
    %448 = vmatpush1.msra.mxu0 0.0
    %449 = vmatprep.mubr.f32.mxu0 0.0
    %450 = vmatmul.mubr.f32.gmra.mrb[0].mxu0 %v107
    %v451 = vpop.f32.mrb[0].mxu0
    %v452 = vadd.f32 %v373, %v451
    %v453 = vpop.f32.mrb[0].mxu0
    %v454 = vadd.f32 %v377, %v453
    %455 = vdwg.mxu0
    %456 = vmatprep.subr.mxu0 0.0
    %457 = vmatpush1.msra.mxu0 %v323
    %458 = vmatprep.subr.mxu0 0.0
    %459 = vmatpush1.msra.mxu0 %v326
    %460 = vmatprep.subr.mxu0 0.0
    %461 = vmatpush1.msra.mxu0 %v329
    %462 = vmatprep.subr.mxu0 0.0
    %463 = vmatpush1.msra.mxu0 %v332
    %464 = vmatprep.subr.mxu0 0.0
    %465 = vmatpush1.msra.mxu0 %v335
    %466 = vmatprep.subr.mxu0 0.0
    %467 = vmatpush1.msra.mxu0 %v338
    %468 = vmatprep.subr.mxu0 0.0
    %469 = vmatpush1.msra.mxu0 %v341
    %470 = vmatprep.subr.mxu0 0.0
    %471 = vmatpush1.msra.mxu0 %v344
    %472 = vmatprep.subr.mxu0 0.0
    %473 = vmatpush1.msra.mxu0 %v347
    %474 = vmatprep.subr.mxu0 0.0
    %475 = vmatpush1.msra.mxu0 %v350
    %476 = vmatprep.subr.mxu0 0.0
    %477 = vmatpush1.msra.mxu0 %v353
    %478 = vmatprep.subr.mxu0 0.0
    %479 = vmatpush1.msra.mxu0 %v356
    %480 = vmatprep.subr.mxu0 0.0
    %481 = vmatpush1.msra.mxu0 %v359
    %482 = vmatprep.subr.mxu0 0.0
    %483 = vmatpush1.msra.mxu0 %v362
    %484 = vmatprep.subr.mxu0 0.0
    %485 = vmatpush1.msra.mxu0 %v365
    %486 = vmatprep.subr.mxu0 0.0
    %487 = vmatpush1.msra.mxu0 %v368
    %488 = vmatprep.subr.mxu0 0.0
    %489 = vmatpush1.msra.mxu0 0.0
    %490 = vmatprep.subr.mxu0 0.0
    %491 = vmatpush1.msra.mxu0 0.0
    %492 = vmatprep.subr.mxu0 0.0
    %493 = vmatpush1.msra.mxu0 0.0
    %494 = vmatprep.subr.mxu0 0.0
    %495 = vmatpush1.msra.mxu0 0.0
    %496 = vmatprep.subr.mxu0 0.0
    %497 = vmatpush1.msra.mxu0 0.0
    %498 = vmatprep.subr.mxu0 0.0
    %499 = vmatpush1.msra.mxu0 0.0
    %500 = vmatprep.subr.mxu0 0.0
    %501 = vmatpush1.msra.mxu0 0.0
    %502 = vmatprep.subr.mxu0 0.0
    %503 = vmatpush1.msra.mxu0 0.0
    %504 = vmatprep.subr.mxu0 0.0
    %505 = vmatpush1.msra.mxu0 0.0
    %506 = vmatprep.subr.mxu0 0.0
    %507 = vmatpush1.msra.mxu0 0.0
    %508 = vmatprep.subr.mxu0 0.0
    %509 = vmatpush1.msra.mxu0 0.0
    %510 = vmatprep.subr.mxu0 0.0
    %511 = vmatpush1.msra.mxu0 0.0
    %512 = vmatprep.subr.mxu0 0.0
    %513 = vmatpush1.msra.mxu0 0.0
    %514 = vmatprep.subr.mxu0 0.0
    %515 = vmatpush1.msra.mxu0 0.0
    %516 = vmatprep.subr.mxu0 0.0
    %517 = vmatpush1.msra.mxu0 0.0
    %518 = vmatprep.subr.mxu0 0.0
    %519 = vmatpush1.msra.mxu0 0.0
    %520 = vmatprep.mubr.f32.mxu0 0.0
    %521 = vmatmul.mubr.f32.gmra.mrb[0].mxu0 %v107
    %v522 = vpop.f32.mrb[0].mxu0
    %v523 = vadd.f32 %v381, %v522
    %v524 = vpop.f32.mrb[0].mxu0
    %525 = vdwg.mxu0
    %v526 = vadd.f32 %v247, %v452
    %v527 = vxor.u32 %v526, 2147483648
    %v528 = vmul.f32 %v527, 1.442695
    %v529 = vpow.pop %v528
    %v530 = vadd.f32 %v529, 1.0
    %v531 = vrcp.pop %v530
    %v532 = vmul.f32 1.0, %v531
    %v533 = vadd.f32 %v249, %v454
    %v534 = vxor.u32 %v533, 2147483648
    %v535 = vmul.f32 %v534, 1.442695
    %v536 = vpow.pop %v535
    %v537 = vadd.f32 %v536, 1.0
    %v538 = vrcp.pop %v537
    %v539 = vmul.f32 1.0, %v538
    %v540 = vmul.f32 %v532, %v523
    %v541 = vadd.f32 %v318, %v540
    %v542 = vtanh.pop %v541
    %v543 = vsub.f32 1.0, %v539
    %v544 = vmul.f32 %v543, %v542
    %v545 = vmul.f32 %v539, %v107
    %v546 = vadd.f32 %v544, %v545
    %v547 = vld [vmem:[#allocation10] sm:$0xff]
    %v548 = vld [vmem:[#allocation10 + $0x8] sm:$0xff]
    %v549 = vld [vmem:[#allocation10 + $0x10] sm:$0xff]
    %v550 = vld [vmem:[#allocation10 + $0x18] sm:$0xff]
    %v551 = vld [vmem:[#allocation10 + $0x20] sm:$0xff]
    %v552 = vld [vmem:[#allocation10 + $0x28] sm:$0xff]
    %v553 = vld [vmem:[#allocation10 + $0x30] sm:$0xff]
    %v554 = vld [vmem:[#allocation10 + $0x38] sm:$0xff]
    %v555 = vld [vmem:[#allocation10 + $0x40] sm:$0xff]
    %v556 = vld [vmem:[#allocation10 + $0x48] sm:$0xff]
    %v557 = vld [vmem:[#allocation10 + $0x50] sm:$0xff]
    %v558 = vld [vmem:[#allocation10 + $0x58] sm:$0xff]
    %v559 = vld [vmem:[#allocation10 + $0x60] sm:$0xff]
    %v560 = vld [vmem:[#allocation10 + $0x68] sm:$0xff]
    %v561 = vld [vmem:[#allocation10 + $0x70] sm:$0xff]
    %v562 = vld [vmem:[#allocation10 + $0x78] sm:$0xff]
    %563 = vmatprep.subr.mxu0 0.0
    %564 = vmatpush1.msra.mxu0 %v547
    %565 = vmatprep.subr.mxu0 0.0
    %566 = vmatpush1.msra.mxu0 %v548
    %567 = vmatprep.subr.mxu0 0.0
    %568 = vmatpush1.msra.mxu0 %v549
    %569 = vmatprep.subr.mxu0 0.0
    %570 = vmatpush1.msra.mxu0 %v550
    %571 = vmatprep.subr.mxu0 0.0
    %572 = vmatpush1.msra.mxu0 %v551
    %573 = vmatprep.subr.mxu0 0.0
    %574 = vmatpush1.msra.mxu0 %v552
    %575 = vmatprep.subr.mxu0 0.0
    %576 = vmatpush1.msra.mxu0 %v553
    %577 = vmatprep.subr.mxu0 0.0
    %578 = vmatpush1.msra.mxu0 %v554
    %579 = vmatprep.subr.mxu0 0.0
    %580 = vmatpush1.msra.mxu0 %v555
    %581 = vmatprep.subr.mxu0 0.0
    %582 = vmatpush1.msra.mxu0 %v556
    %583 = vmatprep.subr.mxu0 0.0
    %584 = vmatpush1.msra.mxu0 %v557
    %585 = vmatprep.subr.mxu0 0.0
    %586 = vmatpush1.msra.mxu0 %v558
    %587 = vmatprep.subr.mxu0 0.0
    %588 = vmatpush1.msra.mxu0 %v559
    %589 = vmatprep.subr.mxu0 0.0
    %590 = vmatpush1.msra.mxu0 %v560
    %591 = vmatprep.subr.mxu0 0.0
    %592 = vmatpush1.msra.mxu0 %v561
    %593 = vmatprep.subr.mxu0 0.0
    %594 = vmatpush1.msra.mxu0 %v562
    %595 = vmatprep.subr.mxu0 0.0
    %596 = vmatpush1.msra.mxu0 0.0
    %597 = vmatprep.subr.mxu0 0.0
    %598 = vmatpush1.msra.mxu0 0.0
    %599 = vmatprep.subr.mxu0 0.0
    %600 = vmatpush1.msra.mxu0 0.0
    %601 = vmatprep.subr.mxu0 0.0
    %602 = vmatpush1.msra.mxu0 0.0
    %603 = vmatprep.subr.mxu0 0.0
    %604 = vmatpush1.msra.mxu0 0.0
    %605 = vmatprep.subr.mxu0 0.0
    %606 = vmatpush1.msra.mxu0 0.0
    %607 = vmatprep.subr.mxu0 0.0
    %608 = vmatpush1.msra.mxu0 0.0
    %609 = vmatprep.subr.mxu0 0.0
    %610 = vmatpush1.msra.mxu0 0.0
    %611 = vmatprep.subr.mxu0 0.0
    %612 = vmatpush1.msra.mxu0 0.0
    %613 = vmatprep.subr.mxu0 0.0
    %614 = vmatpush1.msra.mxu0 0.0
    %615 = vmatprep.subr.mxu0 0.0
    %616 = vmatpush1.msra.mxu0 0.0
    %617 = vmatprep.subr.mxu0 0.0
    %618 = vmatpush1.msra.mxu0 0.0
    %619 = vmatprep.subr.mxu0 0.0
    %620 = vmatpush1.msra.mxu0 0.0
    %621 = vmatprep.subr.mxu0 0.0
    %622 = vmatpush1.msra.mxu0 0.0
    %623 = vmatprep.subr.mxu0 0.0
    %624 = vmatpush1.msra.mxu0 0.0
    %625 = vmatprep.subr.mxu0 0.0
    %626 = vmatpush1.msra.mxu0 0.0
    %627 = vmatprep.mubr.f32.mxu0 0.0
    %628 = vmatmul.mubr.f32.gmra.mrb[0].mxu0 %v546
    %v629 = vpop.f32.mrb[0].mxu0
    %v630 = vadd.f32 %v106, %v629
    %v631 = vpop.f32.mrb[0].mxu0
    %632 = vdwg.mxu0
    %vm633 = vcmask 1040384
    %v634 = vsel %vm633, %v630, -inf
    %635 = vmax.xlane.f32.xlu0 %v634
    %v636 = vpop.xlane.xlu0 %635
    %v637 = vsub.f32 %v630, %v636
    %v638 = vmul.f32 %v637, 1.442695
    %v639 = vpow.pop %v638
    %v640 = vsel %vm633, %v639, 0.0
    %641 = vadd.xlane.f32.xlu0 %v640
    %v642 = vpop.xlane.xlu0 %641
    %v643 = vlog2.pop %v642
    %v644 = vmul.f32 %v643, 0.6931472
    %v645 = vsub.f32 %v637, %v644
    %646 = vst [vmem:[#allocation12] sm:$0x1] %v645
    %s647 = sld [smem:[#allocation2 + $0x1]]
    %p648 = scmp.gt.s32.totalorder %s647, 0
    %s649 = scalar_select %p648, %s647, 0
    %p650 = scmp.lt.s32.totalorder %s649, 127
    %s651 = scalar_select %p650, %s649, 127
    %s652 = scalar_lea.vmem [#allocation6], %s651
    %v653 = vld [vmem:[%s652] sm:$0x1]
    %v654 = vmax.f32 %v653, 0.0
    %v655 = vld [vmem:[#allocation7] sm:$0xff]
    %v656 = vld [vmem:[#allocation7 + $0x8] sm:$0xff]
    %v657 = vld [vmem:[#allocation7 + $0x10] sm:$0xff]
    %v658 = vld [vmem:[#allocation7 + $0x18] sm:$0xff]
    %v659 = vld [vmem:[#allocation7 + $0x20] sm:$0xff]
    %v660 = vld [vmem:[#allocation7 + $0x28] sm:$0xff]
    %v661 = vld [vmem:[#allocation7 + $0x30] sm:$0xff]
    %v662 = vld [vmem:[#allocation7 + $0x38] sm:$0xff]
    %v663 = vld [vmem:[#allocation7 + $0x40] sm:$0xff]
    %v664 = vld [vmem:[#allocation7 + $0x48] sm:$0xff]
    %v665 = vld [vmem:[#allocation7 + $0x50] sm:$0xff]
    %v666 = vld [vmem:[#allocation7 + $0x58] sm:$0xff]
    %v667 = vld [vmem:[#allocation7 + $0x60] sm:$0xff]
    %v668 = vld [vmem:[#allocation7 + $0x68] sm:$0xff]
    %v669 = vld [vmem:[#allocation7 + $0x70] sm:$0xff]
    %v670 = vld [vmem:[#allocation7 + $0x78] sm:$0xff]
    %v671 = vld [vmem:[#allocation7 + $0x80] sm:$0xff]
    %v672 = vld [vmem:[#allocation7 + $0x88] sm:$0xff]
    %v673 = vld [vmem:[#allocation7 + $0x90] sm:$0xff]
    %v674 = vld [vmem:[#allocation7 + $0x98] sm:$0xff]
    %v675 = vld [vmem:[#allocation7 + $0xa0] sm:$0xff]
    %v676 = vld [vmem:[#allocation7 + $0xa8] sm:$0xff]
    %v677 = vld [vmem:[#allocation7 + $0xb0] sm:$0xff]
    %v678 = vld [vmem:[#allocation7 + $0xb8] sm:$0xff]
    %v679 = vld [vmem:[#allocation7 + $0xc0] sm:$0xff]
    %v680 = vld [vmem:[#allocation7 + $0xc8] sm:$0xff]
    %v681 = vld [vmem:[#allocation7 + $0xd0] sm:$0xff]
    %v682 = vld [vmem:[#allocation7 + $0xd8] sm:$0xff]
    %v683 = vld [vmem:[#allocation7 + $0xe0] sm:$0xff]
    %v684 = vld [vmem:[#allocation7 + $0xe8] sm:$0xff]
    %v685 = vld [vmem:[#allocation7 + $0xf0] sm:$0xff]
    %v686 = vld [vmem:[#allocation7 + $0xf8] sm:$0xff]
    %v687 = vld [vmem:[#allocation7 + $0x100] sm:$0xff]
    %v688 = vld [vmem:[#allocation7 + $0x108] sm:$0xff]
    %v689 = vld [vmem:[#allocation7 + $0x110] sm:$0xff]
    %v690 = vld [vmem:[#allocation7 + $0x118] sm:$0xff]
    %v691 = vld [vmem:[#allocation7 + $0x120] sm:$0xff]
    %v692 = vld [vmem:[#allocation7 + $0x128] sm:$0xff]
    %v693 = vld [vmem:[#allocation7 + $0x130] sm:$0xff]
    %v694 = vld [vmem:[#allocation7 + $0x138] sm:$0xff]
    %v695 = vld [vmem:[#allocation7 + $0x140] sm:$0xff]
    %v696 = vld [vmem:[#allocation7 + $0x148] sm:$0xff]
    %v697 = vld [vmem:[#allocation7 + $0x150] sm:$0xff]
    %v698 = vld [vmem:[#allocation7 + $0x158] sm:$0xff]
    %v699 = vld [vmem:[#allocation7 + $0x160] sm:$0xff]
    %v700 = vld [vmem:[#allocation7 + $0x168] sm:$0xff]
    %v701 = vld [vmem:[#allocation7 + $0x170] sm:$0xff]
    %v702 = vld [vmem:[#allocation7 + $0x178] sm:$0xff]
    %703 = vmatprep.subr.mxu0 %v656
    %704 = vmatpush1.msra.mxu0 %v655
    %705 = vmatprep.subr.mxu0 %v659
    %706 = vmatpush1.msra.mxu0 %v658
    %707 = vmatprep.subr.mxu0 %v662
    %708 = vmatpush1.msra.mxu0 %v661
    %709 = vmatprep.subr.mxu0 %v665
    %710 = vmatpush1.msra.mxu0 %v664
    %711 = vmatprep.subr.mxu0 %v668
    %712 = vmatpush1.msra.mxu0 %v667
    %713 = vmatprep.subr.mxu0 %v671
    %714 = vmatpush1.msra.mxu0 %v670
    %715 = vmatprep.subr.mxu0 %v674
    %716 = vmatpush1.msra.mxu0 %v673
    %717 = vmatprep.subr.mxu0 %v677
    %718 = vmatpush1.msra.mxu0 %v676
    %719 = vmatprep.subr.mxu0 %v680
    %720 = vmatpush1.msra.mxu0 %v679
    %721 = vmatprep.subr.mxu0 %v683
    %722 = vmatpush1.msra.mxu0 %v682
    %723 = vmatprep.subr.mxu0 %v686
    %724 = vmatpush1.msra.mxu0 %v685
    %725 = vmatprep.subr.mxu0 %v689
    %726 = vmatpush1.msra.mxu0 %v688
    %727 = vmatprep.subr.mxu0 %v692
    %728 = vmatpush1.msra.mxu0 %v691
    %729 = vmatprep.subr.mxu0 %v695
    %730 = vmatpush1.msra.mxu0 %v694
    %731 = vmatprep.subr.mxu0 %v698
    %732 = vmatpush1.msra.mxu0 %v697
    %733 = vmatprep.subr.mxu0 %v701
    %734 = vmatpush1.msra.mxu0 %v700
    %735 = vmatprep.subr.mxu0 0.0
    %736 = vmatpush1.msra.mxu0 0.0
    %737 = vmatprep.subr.mxu0 0.0
    %738 = vmatpush1.msra.mxu0 0.0
    %739 = vmatprep.subr.mxu0 0.0
    %740 = vmatpush1.msra.mxu0 0.0
    %741 = vmatprep.subr.mxu0 0.0
    %742 = vmatpush1.msra.mxu0 0.0
    %743 = vmatprep.subr.mxu0 0.0
    %744 = vmatpush1.msra.mxu0 0.0
    %745 = vmatprep.subr.mxu0 0.0
    %746 = vmatpush1.msra.mxu0 0.0
    %747 = vmatprep.subr.mxu0 0.0
    %748 = vmatpush1.msra.mxu0 0.0
    %749 = vmatprep.subr.mxu0 0.0
    %750 = vmatpush1.msra.mxu0 0.0
    %751 = vmatprep.subr.mxu0 0.0
    %752 = vmatpush1.msra.mxu0 0.0
    %753 = vmatprep.subr.mxu0 0.0
    %754 = vmatpush1.msra.mxu0 0.0
    %755 = vmatprep.subr.mxu0 0.0
    %756 = vmatpush1.msra.mxu0 0.0
    %757 = vmatprep.subr.mxu0 0.0
    %758 = vmatpush1.msra.mxu0 0.0
    %759 = vmatprep.subr.mxu0 0.0
    %760 = vmatpush1.msra.mxu0 0.0
    %761 = vmatprep.subr.mxu0 0.0
    %762 = vmatpush1.msra.mxu0 0.0
    %763 = vmatprep.subr.mxu0 0.0
    %764 = vmatpush1.msra.mxu0 0.0
    %765 = vmatprep.subr.mxu0 0.0
    %766 = vmatpush1.msra.mxu0 0.0
    %767 = vmatprep.mubr.f32.mxu0 0.0
    %768 = vmatmul.mubr.f32.gmra.mrb[0].mxu0 %v654
    %v769 = vpop.f32.mrb[0].mxu0
    %v770 = vadd.f32 %v168, %v769
    %v771 = vpop.f32.mrb[0].mxu0
    %v772 = vadd.f32 %v172, %v771
    %773 = vdwg.mxu0
    %774 = vmatprep.subr.mxu0 0.0
    %775 = vmatpush1.msra.mxu0 %v657
    %776 = vmatprep.subr.mxu0 0.0
    %777 = vmatpush1.msra.mxu0 %v660
    %778 = vmatprep.subr.mxu0 0.0
    %779 = vmatpush1.msra.mxu0 %v663
    %780 = vmatprep.subr.mxu0 0.0
    %781 = vmatpush1.msra.mxu0 %v666
    %782 = vmatprep.subr.mxu0 0.0
    %783 = vmatpush1.msra.mxu0 %v669
    %784 = vmatprep.subr.mxu0 0.0
    %785 = vmatpush1.msra.mxu0 %v672
    %786 = vmatprep.subr.mxu0 0.0
    %787 = vmatpush1.msra.mxu0 %v675
    %788 = vmatprep.subr.mxu0 0.0
    %789 = vmatpush1.msra.mxu0 %v678
    %790 = vmatprep.subr.mxu0 0.0
    %791 = vmatpush1.msra.mxu0 %v681
    %792 = vmatprep.subr.mxu0 0.0
    %793 = vmatpush1.msra.mxu0 %v684
    %794 = vmatprep.subr.mxu0 0.0
    %795 = vmatpush1.msra.mxu0 %v687
    %796 = vmatprep.subr.mxu0 0.0
    %797 = vmatpush1.msra.mxu0 %v690
    %798 = vmatprep.subr.mxu0 0.0
    %799 = vmatpush1.msra.mxu0 %v693
    %800 = vmatprep.subr.mxu0 0.0
    %801 = vmatpush1.msra.mxu0 %v696
    %802 = vmatprep.subr.mxu0 0.0
    %803 = vmatpush1.msra.mxu0 %v699
    %804 = vmatprep.subr.mxu0 0.0
    %805 = vmatpush1.msra.mxu0 %v702
    %806 = vmatprep.subr.mxu0 0.0
    %807 = vmatpush1.msra.mxu0 0.0
    %808 = vmatprep.subr.mxu0 0.0
    %809 = vmatpush1.msra.mxu0 0.0
    %810 = vmatprep.subr.mxu0 0.0
    %811 = vmatpush1.msra.mxu0 0.0
    %812 = vmatprep.subr.mxu0 0.0
    %813 = vmatpush1.msra.mxu0 0.0
    %814 = vmatprep.subr.mxu0 0.0
    %815 = vmatpush1.msra.mxu0 0.0
    %816 = vmatprep.subr.mxu0 0.0
    %817 = vmatpush1.msra.mxu0 0.0
    %818 = vmatprep.subr.mxu0 0.0
    %819 = vmatpush1.msra.mxu0 0.0
    %820 = vmatprep.subr.mxu0 0.0
    %821 = vmatpush1.msra.mxu0 0.0
    %822 = vmatprep.subr.mxu0 0.0
    %823 = vmatpush1.msra.mxu0 0.0
    %824 = vmatprep.subr.mxu0 0.0
    %825 = vmatpush1.msra.mxu0 0.0
    %826 = vmatprep.subr.mxu0 0.0
    %827 = vmatpush1.msra.mxu0 0.0
    %828 = vmatprep.subr.mxu0 0.0
    %829 = vmatpush1.msra.mxu0 0.0
    %830 = vmatprep.subr.mxu0 0.0
    %831 = vmatpush1.msra.mxu0 0.0
    %832 = vmatprep.subr.mxu0 0.0
    %833 = vmatpush1.msra.mxu0 0.0
    %834 = vmatprep.subr.mxu0 0.0
    %835 = vmatpush1.msra.mxu0 0.0
    %836 = vmatprep.subr.mxu0 0.0
    %837 = vmatpush1.msra.mxu0 0.0
    %838 = vmatprep.mubr.f32.mxu0 0.0
    %839 = vmatmul.mubr.f32.gmra.mrb[0].mxu0 %v654
    %v840 = vpop.f32.mrb[0].mxu0
    %v841 = vadd.f32 %v176, %v840
    %v842 = vpop.f32.mrb[0].mxu0
    %843 = vdwg.mxu0
    %v844 = vld [vmem:[#allocation9] sm:$0xff]
    %v845 = vld [vmem:[#allocation9 + $0x8] sm:$0xff]
    %v846 = vld [vmem:[#allocation9 + $0x10] sm:$0xff]
    %v847 = vld [vmem:[#allocation9 + $0x18] sm:$0xff]
    %v848 = vld [vmem:[#allocation9 + $0x20] sm:$0xff]
    %v849 = vld [vmem:[#allocation9 + $0x28] sm:$0xff]
    %v850 = vld [vmem:[#allocation9 + $0x30] sm:$0xff]
    %v851 = vld [vmem:[#allocation9 + $0x38] sm:$0xff]
    %v852 = vld [vmem:[#allocation9 + $0x40] sm:$0xff]
    %v853 = vld [vmem:[#allocation9 + $0x48] sm:$0xff]
    %v854 = vld [vmem:[#allocation9 + $0x50] sm:$0xff]
    %v855 = vld [vmem:[#allocation9 + $0x58] sm:$0xff]
    %v856 = vld [vmem:[#allocation9 + $0x60] sm:$0xff]
    %v857 = vld [vmem:[#allocation9 + $0x68] sm:$0xff]
    %v858 = vld [vmem:[#allocation9 + $0x70] sm:$0xff]
    %v859 = vld [vmem:[#allocation9 + $0x78] sm:$0xff]
    %v860 = vld [vmem:[#allocation9 + $0x80] sm:$0xff]
    %v861 = vld [vmem:[#allocation9 + $0x88] sm:$0xff]
    %v862 = vld [vmem:[#allocation9 + $0x90] sm:$0xff]
    %v863 = vld [vmem:[#allocation9 + $0x98] sm:$0xff]
    %v864 = vld [vmem:[#allocation9 + $0xa0] sm:$0xff]
    %v865 = vld [vmem:[#allocation9 + $0xa8] sm:$0xff]
    %v866 = vld [vmem:[#allocation9 + $0xb0] sm:$0xff]
    %v867 = vld [vmem:[#allocation9 + $0xb8] sm:$0xff]
    %v868 = vld [vmem:[#allocation9 + $0xc0] sm:$0xff]
    %v869 = vld [vmem:[#allocation9 + $0xc8] sm:$0xff]
    %v870 = vld [vmem:[#allocation9 + $0xd0] sm:$0xff]
    %v871 = vld [vmem:[#allocation9 + $0xd8] sm:$0xff]
    %v872 = vld [vmem:[#allocation9 + $0xe0] sm:$0xff]
    %v873 = vld [vmem:[#allocation9 + $0xe8] sm:$0xff]
    %v874 = vld [vmem:[#allocation9 + $0xf0] sm:$0xff]
    %v875 = vld [vmem:[#allocation9 + $0xf8] sm:$0xff]
    %v876 = vld [vmem:[#allocation9 + $0x100] sm:$0xff]
    %v877 = vld [vmem:[#allocation9 + $0x108] sm:$0xff]
    %v878 = vld [vmem:[#allocation9 + $0x110] sm:$0xff]
    %v879 = vld [vmem:[#allocation9 + $0x118] sm:$0xff]
    %v880 = vld [vmem:[#allocation9 + $0x120] sm:$0xff]
    %v881 = vld [vmem:[#allocation9 + $0x128] sm:$0xff]
    %v882 = vld [vmem:[#allocation9 + $0x130] sm:$0xff]
    %v883 = vld [vmem:[#allocation9 + $0x138] sm:$0xff]
    %v884 = vld [vmem:[#allocation9 + $0x140] sm:$0xff]
    %v885 = vld [vmem:[#allocation9 + $0x148] sm:$0xff]
    %v886 = vld [vmem:[#allocation9 + $0x150] sm:$0xff]
    %v887 = vld [vmem:[#allocation9 + $0x158] sm:$0xff]
    %v888 = vld [vmem:[#allocation9 + $0x160] sm:$0xff]
    %v889 = vld [vmem:[#allocation9 + $0x168] sm:$0xff]
    %v890 = vld [vmem:[#allocation9 + $0x170] sm:$0xff]
    %v891 = vld [vmem:[#allocation9 + $0x178] sm:$0xff]
    %892 = vmatprep.subr.mxu0 %v845
    %893 = vmatpush1.msra.mxu0 %v844
    %894 = vmatprep.subr.mxu0 %v848
    %895 = vmatpush1.msra.mxu0 %v847
    %896 = vmatprep.subr.mxu0 %v851
    %897 = vmatpush1.msra.mxu0 %v850
    %898 = vmatprep.subr.mxu0 %v854
    %899 = vmatpush1.msra.mxu0 %v853
    %900 = vmatprep.subr.mxu0 %v857
    %901 = vmatpush1.msra.mxu0 %v856
    %902 = vmatprep.subr.mxu0 %v860
    %903 = vmatpush1.msra.mxu0 %v859
    %904 = vmatprep.subr.mxu0 %v863
    %905 = vmatpush1.msra.mxu0 %v862
    %906 = vmatprep.subr.mxu0 %v866
    %907 = vmatpush1.msra.mxu0 %v865
    %908 = vmatprep.subr.mxu0 %v869
    %909 = vmatpush1.msra.mxu0 %v868
    %910 = vmatprep.subr.mxu0 %v872
    %911 = vmatpush1.msra.mxu0 %v871
    %912 = vmatprep.subr.mxu0 %v875
    %913 = vmatpush1.msra.mxu0 %v874
    %914 = vmatprep.subr.mxu0 %v878
    %915 = vmatpush1.msra.mxu0 %v877
    %916 = vmatprep.subr.mxu0 %v881
    %917 = vmatpush1.msra.mxu0 %v880
    %918 = vmatprep.subr.mxu0 %v884
    %919 = vmatpush1.msra.mxu0 %v883
    %920 = vmatprep.subr.mxu0 %v887
    %921 = vmatpush1.msra.mxu0 %v886
    %922 = vmatprep.subr.mxu0 %v890
    %923 = vmatpush1.msra.mxu0 %v889
    %924 = vmatprep.subr.mxu0 0.0
    %925 = vmatpush1.msra.mxu0 0.0
    %926 = vmatprep.subr.mxu0 0.0
    %927 = vmatpush1.msra.mxu0 0.0
    %928 = vmatprep.subr.mxu0 0.0
    %929 = vmatpush1.msra.mxu0 0.0
    %930 = vmatprep.subr.mxu0 0.0
    %931 = vmatpush1.msra.mxu0 0.0
    %932 = vmatprep.subr.mxu0 0.0
    %933 = vmatpush1.msra.mxu0 0.0
    %934 = vmatprep.subr.mxu0 0.0
    %935 = vmatpush1.msra.mxu0 0.0
    %936 = vmatprep.subr.mxu0 0.0
    %937 = vmatpush1.msra.mxu0 0.0
    %938 = vmatprep.subr.mxu0 0.0
    %939 = vmatpush1.msra.mxu0 0.0
    %940 = vmatprep.subr.mxu0 0.0
    %941 = vmatpush1.msra.mxu0 0.0
    %942 = vmatprep.subr.mxu0 0.0
    %943 = vmatpush1.msra.mxu0 0.0
    %944 = vmatprep.subr.mxu0 0.0
    %945 = vmatpush1.msra.mxu0 0.0
    %946 = vmatprep.subr.mxu0 0.0
    %947 = vmatpush1.msra.mxu0 0.0
    %948 = vmatprep.subr.mxu0 0.0
    %949 = vmatpush1.msra.mxu0 0.0
    %950 = vmatprep.subr.mxu0 0.0
    %951 = vmatpush1.msra.mxu0 0.0
    %952 = vmatprep.subr.mxu0 0.0
    %953 = vmatpush1.msra.mxu0 0.0
    %954 = vmatprep.subr.mxu0 0.0
    %955 = vmatpush1.msra.mxu0 0.0
    %956 = vmatprep.mubr.f32.mxu0 0.0
    %957 = vmatmul.mubr.f32.gmra.mrb[0].mxu0 %v546
    %v958 = vpop.f32.mrb[0].mxu0
    %v959 = vadd.f32 %v373, %v958
    %v960 = vpop.f32.mrb[0].mxu0
    %v961 = vadd.f32 %v377, %v960
    %962 = vdwg.mxu0
    %963 = vmatprep.subr.mxu0 0.0
    %964 = vmatpush1.msra.mxu0 %v846
    %965 = vmatprep.subr.mxu0 0.0
    %966 = vmatpush1.msra.mxu0 %v849
    %967 = vmatprep.subr.mxu0 0.0
    %968 = vmatpush1.msra.mxu0 %v852
    %969 = vmatprep.subr.mxu0 0.0
    %970 = vmatpush1.msra.mxu0 %v855
    %971 = vmatprep.subr.mxu0 0.0
    %972 = vmatpush1.msra.mxu0 %v858
    %973 = vmatprep.subr.mxu0 0.0
    %974 = vmatpush1.msra.mxu0 %v861
    %975 = vmatprep.subr.mxu0 0.0
    %976 = vmatpush1.msra.mxu0 %v864
    %977 = vmatprep.subr.mxu0 0.0
    %978 = vmatpush1.msra.mxu0 %v867
    %979 = vmatprep.subr.mxu0 0.0
    %980 = vmatpush1.msra.mxu0 %v870
    %981 = vmatprep.subr.mxu0 0.0
    %982 = vmatpush1.msra.mxu0 %v873
    %983 = vmatprep.subr.mxu0 0.0
    %984 = vmatpush1.msra.mxu0 %v876
    %985 = vmatprep.subr.mxu0 0.0
    %986 = vmatpush1.msra.mxu0 %v879
    %987 = vmatprep.subr.mxu0 0.0
    %988 = vmatpush1.msra.mxu0 %v882
    %989 = vmatprep.subr.mxu0 0.0
    %990 = vmatpush1.msra.mxu0 %v885
    %991 = vmatprep.subr.mxu0 0.0
    %992 = vmatpush1.msra.mxu0 %v888
    %993 = vmatprep.subr.mxu0 0.0
    %994 = vmatpush1.msra.mxu0 %v891
    %995 = vmatprep.subr.mxu0 0.0
    %996 = vmatpush1.msra.mxu0 0.0
    %997 = vmatprep.subr.mxu0 0.0
    %998 = vmatpush1.msra.mxu0 0.0
    %999 = vmatprep.subr.mxu0 0.0
    %1000 = vmatpush1.msra.mxu0 0.0
    %1001 = vmatprep.subr.mxu0 0.0
    %1002 = vmatpush1.msra.mxu0 0.0
    %1003 = vmatprep.subr.mxu0 0.0
    %1004 = vmatpush1.msra.mxu0 0.0
    %1005 = vmatprep.subr.mxu0 0.0
    %1006 = vmatpush1.msra.mxu0 0.0
    %1007 = vmatprep.subr.mxu0 0.0
    %1008 = vmatpush1.msra.mxu0 0.0
    %1009 = vmatprep.subr.mxu0 0.0
    %1010 = vmatpush1.msra.mxu0 0.0
    %1011 = vmatprep.subr.mxu0 0.0
    %1012 = vmatpush1.msra.mxu0 0.0
    %1013 = vmatprep.subr.mxu0 0.0
    %1014 = vmatpush1.msra.mxu0 0.0
    %1015 = vmatprep.subr.mxu0 0.0
    %1016 = vmatpush1.msra.mxu0 0.0
    %1017 = vmatprep.subr.mxu0 0.0
    %1018 = vmatpush1.msra.mxu0 0.0
    %1019 = vmatprep.subr.mxu0 0.0
    %1020 = vmatpush1.msra.mxu0 0.0
    %1021 = vmatprep.subr.mxu0 0.0
    %1022 = vmatpush1.msra.mxu0 0.0
    %1023 = vmatprep.subr.mxu0 0.0
    %1024 = vmatpush1.msra.mxu0 0.0
    %1025 = vmatprep.subr.mxu0 0.0
    %1026 = vmatpush1.msra.mxu0 0.0
    %1027 = vmatprep.mubr.f32.mxu0 0.0
    %1028 = vmatmul.mubr.f32.gmra.mrb[0].mxu0 %v546
    %v1029 = vpop.f32.mrb[0].mxu0
    %v1030 = vadd.f32 %v381, %v1029
    %v1031 = vpop.f32.mrb[0].mxu0
    %1032 = vdwg.mxu0
    %v1033 = vadd.f32 %v770, %v959
    %v1034 = vxor.u32 %v1033, 2147483648
    %v1035 = vmul.f32 %v1034, 1.442695
    %v1036 = vpow.pop %v1035
    %v1037 = vadd.f32 %v1036, 1.0
    %v1038 = vrcp.pop %v1037
    %v1039 = vmul.f32 1.0, %v1038
    %v1040 = vadd.f32 %v772, %v961
    %v1041 = vxor.u32 %v1040, 2147483648
    %v1042 = vmul.f32 %v1041, 1.442695
    %v1043 = vpow.pop %v1042
    %v1044 = vadd.f32 %v1043, 1.0
    %v1045 = vrcp.pop %v1044
    %v1046 = vmul.f32 1.0, %v1045
    %v1047 = vmul.f32 %v1039, %v1030
    %v1048 = vadd.f32 %v841, %v1047
    %v1049 = vtanh.pop %v1048
    %v1050 = vsub.f32 1.0, %v1046
    %v1051 = vmul.f32 %v1050, %v1049
    %v1052 = vmul.f32 %v1046, %v546
    %v1053 = vadd.f32 %v1051, %v1052
    %v1054 = vld [vmem:[#allocation10] sm:$0xff]
    %v1055 = vld [vmem:[#allocation10 + $0x8] sm:$0xff]
    %v1056 = vld [vmem:[#allocation10 + $0x10] sm:$0xff]
    %v1057 = vld [vmem:[#allocation10 + $0x18] sm:$0xff]
    %v1058 = vld [vmem:[#allocation10 + $0x20] sm:$0xff]
    %v1059 = vld [vmem:[#allocation10 + $0x28] sm:$0xff]
    %v1060 = vld [vmem:[#allocation10 + $0x30] sm:$0xff]
    %v1061 = vld [vmem:[#allocation10 + $0x38] sm:$0xff]
    %v1062 = vld [vmem:[#allocation10 + $0x40] sm:$0xff]
    %v1063 = vld [vmem:[#allocation10 + $0x48] sm:$0xff]
    %v1064 = vld [vmem:[#allocation10 + $0x50] sm:$0xff]
    %v1065 = vld [vmem:[#allocation10 + $0x58] sm:$0xff]
    %v1066 = vld [vmem:[#allocation10 + $0x60] sm:$0xff]
    %v1067 = vld [vmem:[#allocation10 + $0x68] sm:$0xff]
    %v1068 = vld [vmem:[#allocation10 + $0x70] sm:$0xff]
    %v1069 = vld [vmem:[#allocation10 + $0x78] sm:$0xff]
    %1070 = vmatprep.subr.mxu0 0.0
    %1071 = vmatpush1.msra.mxu0 %v1054
    %1072 = vmatprep.subr.mxu0 0.0
    %1073 = vmatpush1.msra.mxu0 %v1055
    %1074 = vmatprep.subr.mxu0 0.0
    %1075 = vmatpush1.msra.mxu0 %v1056
    %1076 = vmatprep.subr.mxu0 0.0
    %1077 = vmatpush1.msra.mxu0 %v1057
    %1078 = vmatprep.subr.mxu0 0.0
    %1079 = vmatpush1.msra.mxu0 %v1058
    %1080 = vmatprep.subr.mxu0 0.0
    %1081 = vmatpush1.msra.mxu0 %v1059
    %1082 = vmatprep.subr.mxu0 0.0
    %1083 = vmatpush1.msra.mxu0 %v1060
    %1084 = vmatprep.subr.mxu0 0.0
    %1085 = vmatpush1.msra.mxu0 %v1061
    %1086 = vmatprep.subr.mxu0 0.0
    %1087 = vmatpush1.msra.mxu0 %v1062
    %1088 = vmatprep.subr.mxu0 0.0
    %1089 = vmatpush1.msra.mxu0 %v1063
    %1090 = vmatprep.subr.mxu0 0.0
    %1091 = vmatpush1.msra.mxu0 %v1064
    %1092 = vmatprep.subr.mxu0 0.0
    %1093 = vmatpush1.msra.mxu0 %v1065
    %1094 = vmatprep.subr.mxu0 0.0
    %1095 = vmatpush1.msra.mxu0 %v1066
    %1096 = vmatprep.subr.mxu0 0.0
    %1097 = vmatpush1.msra.mxu0 %v1067
    %1098 = vmatprep.subr.mxu0 0.0
    %1099 = vmatpush1.msra.mxu0 %v1068
    %1100 = vmatprep.subr.mxu0 0.0
    %1101 = vmatpush1.msra.mxu0 %v1069
    %1102 = vmatprep.subr.mxu0 0.0
    %1103 = vmatpush1.msra.mxu0 0.0
    %1104 = vmatprep.subr.mxu0 0.0
    %1105 = vmatpush1.msra.mxu0 0.0
    %1106 = vmatprep.subr.mxu0 0.0
    %1107 = vmatpush1.msra.mxu0 0.0
    %1108 = vmatprep.subr.mxu0 0.0
    %1109 = vmatpush1.msra.mxu0 0.0
    %1110 = vmatprep.subr.mxu0 0.0
    %1111 = vmatpush1.msra.mxu0 0.0
    %1112 = vmatprep.subr.mxu0 0.0
    %1113 = vmatpush1.msra.mxu0 0.0
    %1114 = vmatprep.subr.mxu0 0.0
    %1115 = vmatpush1.msra.mxu0 0.0
    %1116 = vmatprep.subr.mxu0 0.0
    %1117 = vmatpush1.msra.mxu0 0.0
    %1118 = vmatprep.subr.mxu0 0.0
    %1119 = vmatpush1.msra.mxu0 0.0
    %1120 = vmatprep.subr.mxu0 0.0
    %1121 = vmatpush1.msra.mxu0 0.0
    %1122 = vmatprep.subr.mxu0 0.0
    %1123 = vmatpush1.msra.mxu0 0.0
    %1124 = vmatprep.subr.mxu0 0.0
    %1125 = vmatpush1.msra.mxu0 0.0
    %1126 = vmatprep.subr.mxu0 0.0
    %1127 = vmatpush1.msra.mxu0 0.0
    %1128 = vmatprep.subr.mxu0 0.0
    %1129 = vmatpush1.msra.mxu0 0.0
    %1130 = vmatprep.subr.mxu0 0.0
    %1131 = vmatpush1.msra.mxu0 0.0
    %1132 = vmatprep.subr.mxu0 0.0
    %1133 = vmatpush1.msra.mxu0 0.0
    %1134 = vmatprep.mubr.f32.mxu0 0.0
    %1135 = vmatmul.mubr.f32.gmra.mrb[0].mxu0 %v1053
    %v1136 = vpop.f32.mrb[0].mxu0
    %v1137 = vadd.f32 %v106, %v1136
    %v1138 = vpop.f32.mrb[0].mxu0
    %1139 = vdwg.mxu0
    %v1140 = vsel %vm633, %v1137, -inf
    %1141 = vmax.xlane.f32.xlu0 %v1140
    %v1142 = vpop.xlane.xlu0 %1141
    %v1143 = vsub.f32 %v1137, %v1142
    %v1144 = vmul.f32 %v1143, 1.442695
    %v1145 = vpow.pop %v1144
    %v1146 = vsel %vm633, %v1145, 0.0
    %1147 = vadd.xlane.f32.xlu0 %v1146
    %v1148 = vpop.xlane.xlu0 %1147
    %v1149 = vlog2.pop %v1148
    %v1150 = vmul.f32 %v1149, 0.6931472
    %v1151 = vsub.f32 %v1143, %v1150
    %1152 = vst [vmem:[#allocation12 + $0x1] sm:$0x1] %v1151
    %s1153 = sld [smem:[#allocation2 + $0x2]]
    %p1154 = scmp.gt.s32.totalorder %s1153, 0
    %s1155 = scalar_select %p1154, %s1153, 0
    %p1156 = scmp.lt.s32.totalorder %s1155, 127
    %s1157 = scalar_select %p1156, %s1155, 127
    %s1158 = scalar_lea.vmem [#allocation6], %s1157
    %v1159 = vld [vmem:[%s1158] sm:$0x1]
    %v1160 = vmax.f32 %v1159, 0.0
    %v1161 = vld [vmem:[#allocation7] sm:$0xff]
    %v1162 = vld [vmem:[#allocation7 + $0x8] sm:$0xff]
    %v1163 = vld [vmem:[#allocation7 + $0x10] sm:$0xff]
    %v1164 = vld [vmem:[#allocation7 + $0x18] sm:$0xff]
    %v1165 = vld [vmem:[#allocation7 + $0x20] sm:$0xff]
    %v1166 = vld [vmem:[#allocation7 + $0x28] sm:$0xff]
    %v1167 = vld [vmem:[#allocation7 + $0x30] sm:$0xff]
    %v1168 = vld [vmem:[#allocation7 + $0x38] sm:$0xff]
    %v1169 = vld [vmem:[#allocation7 + $0x40] sm:$0xff]
    %v1170 = vld [vmem:[#allocation7 + $0x48] sm:$0xff]
    %v1171 = vld [vmem:[#allocation7 + $0x50] sm:$0xff]
    %v1172 = vld [vmem:[#allocation7 + $0x58] sm:$0xff]
    %v1173 = vld [vmem:[#allocation7 + $0x60] sm:$0xff]
    %v1174 = vld [vmem:[#allocation7 + $0x68] sm:$0xff]
    %v1175 = vld [vmem:[#allocation7 + $0x70] sm:$0xff]
    %v1176 = vld [vmem:[#allocation7 + $0x78] sm:$0xff]
    %v1177 = vld [vmem:[#allocation7 + $0x80] sm:$0xff]
    %v1178 = vld [vmem:[#allocation7 + $0x88] sm:$0xff]
    %v1179 = vld [vmem:[#allocation7 + $0x90] sm:$0xff]
    %v1180 = vld [vmem:[#allocation7 + $0x98] sm:$0xff]
    %v1181 = vld [vmem:[#allocation7 + $0xa0] sm:$0xff]
    %v1182 = vld [vmem:[#allocation7 + $0xa8] sm:$0xff]
    %v1183 = vld [vmem:[#allocation7 + $0xb0] sm:$0xff]
    %v1184 = vld [vmem:[#allocation7 + $0xb8] sm:$0xff]
    %v1185 = vld [vmem:[#allocation7 + $0xc0] sm:$0xff]
    %v1186 = vld [vmem:[#allocation7 + $0xc8] sm:$0xff]
    %v1187 = vld [vmem:[#allocation7 + $0xd0] sm:$0xff]
    %v1188 = vld [vmem:[#allocation7 + $0xd8] sm:$0xff]
    %v1189 = vld [vmem:[#allocation7 + $0xe0] sm:$0xff]
    %v1190 = vld [vmem:[#allocation7 + $0xe8] sm:$0xff]
    %v1191 = vld [vmem:[#allocation7 + $0xf0] sm:$0xff]
    %v1192 = vld [vmem:[#allocation7 + $0xf8] sm:$0xff]
    %v1193 = vld [vmem:[#allocation7 + $0x100] sm:$0xff]
    %v1194 = vld [vmem:[#allocation7 + $0x108] sm:$0xff]
    %v1195 = vld [vmem:[#allocation7 + $0x110] sm:$0xff]
    %v1196 = vld [vmem:[#allocation7 + $0x118] sm:$0xff]
    %v1197 = vld [vmem:[#allocation7 + $0x120] sm:$0xff]
    %v1198 = vld [vmem:[#allocation7 + $0x128] sm:$0xff]
    %v1199 = vld [vmem:[#allocation7 + $0x130] sm:$0xff]
    %v1200 = vld [vmem:[#allocation7 + $0x138] sm:$0xff]
    %v1201 = vld [vmem:[#allocation7 + $0x140] sm:$0xff]
    %v1202 = vld [vmem:[#allocation7 + $0x148] sm:$0xff]
    %v1203 = vld [vmem:[#allocation7 + $0x150] sm:$0xff]
    %v1204 = vld [vmem:[#allocation7 + $0x158] sm:$0xff]
    %v1205 = vld [vmem:[#allocation7 + $0x160] sm:$0xff]
    %v1206 = vld [vmem:[#allocation7 + $0x168] sm:$0xff]
    %v1207 = vld [vmem:[#allocation7 + $0x170] sm:$0xff]
    %v1208 = vld [vmem:[#allocation7 + $0x178] sm:$0xff]
    %1209 = vmatprep.subr.mxu0 %v1162
    %1210 = vmatpush1.msra.mxu0 %v1161
    %1211 = vmatprep.subr.mxu0 %v1165
    %1212 = vmatpush1.msra.mxu0 %v1164
    %1213 = vmatprep.subr.mxu0 %v1168
    %1214 = vmatpush1.msra.mxu0 %v1167
    %1215 = vmatprep.subr.mxu0 %v1171
    %1216 = vmatpush1.msra.mxu0 %v1170
    %1217 = vmatprep.subr.mxu0 %v1174
    %1218 = vmatpush1.msra.mxu0 %v1173
    %1219 = vmatprep.subr.mxu0 %v1177
    %1220 = vmatpush1.msra.mxu0 %v1176
    %1221 = vmatprep.subr.mxu0 %v1180
    %1222 = vmatpush1.msra.mxu0 %v1179
    %1223 = vmatprep.subr.mxu0 %v1183
    %1224 = vmatpush1.msra.mxu0 %v1182
    %1225 = vmatprep.subr.mxu0 %v1186
    %1226 = vmatpush1.msra.mxu0 %v1185
    %1227 = vmatprep.subr.mxu0 %v1189
    %1228 = vmatpush1.msra.mxu0 %v1188
    %1229 = vmatprep.subr.mxu0 %v1192
    %1230 = vmatpush1.msra.mxu0 %v1191
    %1231 = vmatprep.subr.mxu0 %v1195
    %1232 = vmatpush1.msra.mxu0 %v1194
    %1233 = vmatprep.subr.mxu0 %v1198
    %1234 = vmatpush1.msra.mxu0 %v1197
    %1235 = vmatprep.subr.mxu0 %v1201
    %1236 = vmatpush1.msra.mxu0 %v1200
    %1237 = vmatprep.subr.mxu0 %v1204
    %1238 = vmatpush1.msra.mxu0 %v1203
    %1239 = vmatprep.subr.mxu0 %v1207
    %1240 = vmatpush1.msra.mxu0 %v1206
    %1241 = vmatprep.subr.mxu0 0.0
    %1242 = vmatpush1.msra.mxu0 0.0
    %1243 = vmatprep.subr.mxu0 0.0
    %1244 = vmatpush1.msra.mxu0 0.0
    %1245 = vmatprep.subr.mxu0 0.0
    %1246 = vmatpush1.msra.mxu0 0.0
    %1247 = vmatprep.subr.mxu0 0.0
    %1248 = vmatpush1.msra.mxu0 0.0
    %1249 = vmatprep.subr.mxu0 0.0
    %1250 = vmatpush1.msra.mxu0 0.0
    %1251 = vmatprep.subr.mxu0 0.0
    %1252 = vmatpush1.msra.mxu0 0.0
    %1253 = vmatprep.subr.mxu0 0.0
    %1254 = vmatpush1.msra.mxu0 0.0
    %1255 = vmatprep.subr.mxu0 0.0
    %1256 = vmatpush1.msra.mxu0 0.0
    %1257 = vmatprep.subr.mxu0 0.0
    %1258 = vmatpush1.msra.mxu0 0.0
    %1259 = vmatprep.subr.mxu0 0.0
    %1260 = vmatpush1.msra.mxu0 0.0
    %1261 = vmatprep.subr.mxu0 0.0
    %1262 = vmatpush1.msra.mxu0 0.0
    %1263 = vmatprep.subr.mxu0 0.0
    %1264 = vmatpush1.msra.mxu0 0.0
    %1265 = vmatprep.subr.mxu0 0.0
    %1266 = vmatpush1.msra.mxu0 0.0
    %1267 = vmatprep.subr.mxu0 0.0
    %1268 = vmatpush1.msra.mxu0 0.0
    %1269 = vmatprep.subr.mxu0 0.0
    %1270 = vmatpush1.msra.mxu0 0.0
    %1271 = vmatprep.subr.mxu0 0.0
    %1272 = vmatpush1.msra.mxu0 0.0
    %1273 = vmatprep.mubr.f32.mxu0 0.0
    %1274 = vmatmul.mubr.f32.gmra.mrb[0].mxu0 %v1160
    %v1275 = vpop.f32.mrb[0].mxu0
    %v1276 = vadd.f32 %v168, %v1275
    %v1277 = vpop.f32.mrb[0].mxu0
    %v1278 = vadd.f32 %v172, %v1277
    %1279 = vdwg.mxu0
    %1280 = vmatprep.subr.mxu0 0.0
    %1281 = vmatpush1.msra.mxu0 %v1163
    %1282 = vmatprep.subr.mxu0 0.0
    %1283 = vmatpush1.msra.mxu0 %v1166
    %1284 = vmatprep.subr.mxu0 0.0
    %1285 = vmatpush1.msra.mxu0 %v1169
    %1286 = vmatprep.subr.mxu0 0.0
    %1287 = vmatpush1.msra.mxu0 %v1172
    %1288 = vmatprep.subr.mxu0 0.0
    %1289 = vmatpush1.msra.mxu0 %v1175
    %1290 = vmatprep.subr.mxu0 0.0
    %1291 = vmatpush1.msra.mxu0 %v1178
    %1292 = vmatprep.subr.mxu0 0.0
    %1293 = vmatpush1.msra.mxu0 %v1181
    %1294 = vmatprep.subr.mxu0 0.0
    %1295 = vmatpush1.msra.mxu0 %v1184
    %1296 = vmatprep.subr.mxu0 0.0
    %1297 = vmatpush1.msra.mxu0 %v1187
    %1298 = vmatprep.subr.mxu0 0.0
    %1299 = vmatpush1.msra.mxu0 %v1190
    %1300 = vmatprep.subr.mxu0 0.0
    %1301 = vmatpush1.msra.mxu0 %v1193
    %1302 = vmatprep.subr.mxu0 0.0
    %1303 = vmatpush1.msra.mxu0 %v1196
    %1304 = vmatprep.subr.mxu0 0.0
    %1305 = vmatpush1.msra.mxu0 %v1199
    %1306 = vmatprep.subr.mxu0 0.0
    %1307 = vmatpush1.msra.mxu0 %v1202
    %1308 = vmatprep.subr.mxu0 0.0
    %1309 = vmatpush1.msra.mxu0 %v1205
    %1310 = vmatprep.subr.mxu0 0.0
    %1311 = vmatpush1.msra.mxu0 %v1208
    %1312 = vmatprep.subr.mxu0 0.0
    %1313 = vmatpush1.msra.mxu0 0.0
    %1314 = vmatprep.subr.mxu0 0.0
    %1315 = vmatpush1.msra.mxu0 0.0
    %1316 = vmatprep.subr.mxu0 0.0
    %1317 = vmatpush1.msra.mxu0 0.0
    %1318 = vmatprep.subr.mxu0 0.0
    %1319 = vmatpush1.msra.mxu0 0.0
    %1320 = vmatprep.subr.mxu0 0.0
    %1321 = vmatpush1.msra.mxu0 0.0
    %1322 = vmatprep.subr.mxu0 0.0
    %1323 = vmatpush1.msra.mxu0 0.0
    %1324 = vmatprep.subr.mxu0 0.0
    %1325 = vmatpush1.msra.mxu0 0.0
    %1326 = vmatprep.subr.mxu0 0.0
    %1327 = vmatpush1.msra.mxu0 0.0
    %1328 = vmatprep.subr.mxu0 0.0
    %1329 = vmatpush1.msra.mxu0 0.0
    %1330 = vmatprep.subr.mxu0 0.0
    %1331 = vmatpush1.msra.mxu0 0.0
    %1332 = vmatprep.subr.mxu0 0.0
    %1333 = vmatpush1.msra.mxu0 0.0
    %1334 = vmatprep.subr.mxu0 0.0
    %1335 = vmatpush1.msra.mxu0 0.0
    %1336 = vmatprep.subr.mxu0 0.0
    %1337 = vmatpush1.msra.mxu0 0.0
    %1338 = vmatprep.subr.mxu0 0.0
    %1339 = vmatpush1.msra.mxu0 0.0
    %1340 = vmatprep.subr.mxu0 0.0
    %1341 = vmatpush1.msra.mxu0 0.0
    %1342 = vmatprep.subr.mxu0 0.0
    %1343 = vmatpush1.msra.mxu0 0.0
    %1344 = vmatprep.mubr.f32.mxu0 0.0
    %1345 = vmatmul.mubr.f32.gmra.mrb[0].mxu0 %v1160
    %v1346 = vpop.f32.mrb[0].mxu0
    %v1347 = vadd.f32 %v176, %v1346
    %v1348 = vpop.f32.mrb[0].mxu0
    %1349 = vdwg.mxu0
    %v1350 = vld [vmem:[#allocation9] sm:$0xff]
    %v1351 = vld [vmem:[#allocation9 + $0x8] sm:$0xff]
    %v1352 = vld [vmem:[#allocation9 + $0x10] sm:$0xff]
    %v1353 = vld [vmem:[#allocation9 + $0x18] sm:$0xff]
    %v1354 = vld [vmem:[#allocation9 + $0x20] sm:$0xff]
    %v1355 = vld [vmem:[#allocation9 + $0x28] sm:$0xff]
    %v1356 = vld [vmem:[#allocation9 + $0x30] sm:$0xff]
    %v1357 = vld [vmem:[#allocation9 + $0x38] sm:$0xff]
    %v1358 = vld [vmem:[#allocation9 + $0x40] sm:$0xff]
    %v1359 = vld [vmem:[#allocation9 + $0x48] sm:$0xff]
    %v1360 = vld [vmem:[#allocation9 + $0x50] sm:$0xff]
    %v1361 = vld [vmem:[#allocation9 + $0x58] sm:$0xff]
    %v1362 = vld [vmem:[#allocation9 + $0x60] sm:$0xff]
    %v1363 = vld [vmem:[#allocation9 + $0x68] sm:$0xff]
    %v1364 = vld [vmem:[#allocation9 + $0x70] sm:$0xff]
    %v1365 = vld [vmem:[#allocation9 + $0x78] sm:$0xff]
    %v1366 = vld [vmem:[#allocation9 + $0x80] sm:$0xff]
    %v1367 = vld [vmem:[#allocation9 + $0x88] sm:$0xff]
    %v1368 = vld [vmem:[#allocation9 + $0x90] sm:$0xff]
    %v1369 = vld [vmem:[#allocation9 + $0x98] sm:$0xff]
    %v1370 = vld [vmem:[#allocation9 + $0xa0] sm:$0xff]
    %v1371 = vld [vmem:[#allocation9 + $0xa8] sm:$0xff]
    %v1372 = vld [vmem:[#allocation9 + $0xb0] sm:$0xff]
    %v1373 = vld [vmem:[#allocation9 + $0xb8] sm:$0xff]
    %v1374 = vld [vmem:[#allocation9 + $0xc0] sm:$0xff]
    %v1375 = vld [vmem:[#allocation9 + $0xc8] sm:$0xff]
    %v1376 = vld [vmem:[#allocation9 + $0xd0] sm:$0xff]
    %v1377 = vld [vmem:[#allocation9 + $0xd8] sm:$0xff]
    %v1378 = vld [vmem:[#allocation9 + $0xe0] sm:$0xff]
    %v1379 = vld [vmem:[#allocation9 + $0xe8] sm:$0xff]
    %v1380 = vld [vmem:[#allocation9 + $0xf0] sm:$0xff]
    %v1381 = vld [vmem:[#allocation9 + $0xf8] sm:$0xff]
    %v1382 = vld [vmem:[#allocation9 + $0x100] sm:$0xff]
    %v1383 = vld [vmem:[#allocation9 + $0x108] sm:$0xff]
    %v1384 = vld [vmem:[#allocation9 + $0x110] sm:$0xff]
    %v1385 = vld [vmem:[#allocation9 + $0x118] sm:$0xff]
    %v1386 = vld [vmem:[#allocation9 + $0x120] sm:$0xff]
    %v1387 = vld [vmem:[#allocation9 + $0x128] sm:$0xff]
    %v1388 = vld [vmem:[#allocation9 + $0x130] sm:$0xff]
    %v1389 = vld [vmem:[#allocation9 + $0x138] sm:$0xff]
    %v1390 = vld [vmem:[#allocation9 + $0x140] sm:$0xff]
    %v1391 = vld [vmem:[#allocation9 + $0x148] sm:$0xff]
    %v1392 = vld [vmem:[#allocation9 + $0x150] sm:$0xff]
    %v1393 = vld [vmem:[#allocation9 + $0x158] sm:$0xff]
    %v1394 = vld [vmem:[#allocation9 + $0x160] sm:$0xff]
    %v1395 = vld [vmem:[#allocation9 + $0x168] sm:$0xff]
    %v1396 = vld [vmem:[#allocation9 + $0x170] sm:$0xff]
    %v1397 = vld [vmem:[#allocation9 + $0x178] sm:$0xff]
    %1398 = vmatprep.subr.mxu0 %v1351
    %1399 = vmatpush1.msra.mxu0 %v1350
    %1400 = vmatprep.subr.mxu0 %v1354
    %1401 = vmatpush1.msra.mxu0 %v1353
    %1402 = vmatprep.subr.mxu0 %v1357
    %1403 = vmatpush1.msra.mxu0 %v1356
    %1404 = vmatprep.subr.mxu0 %v1360
    %1405 = vmatpush1.msra.mxu0 %v1359
    %1406 = vmatprep.subr.mxu0 %v1363
    %1407 = vmatpush1.msra.mxu0 %v1362
    %1408 = vmatprep.subr.mxu0 %v1366
    %1409 = vmatpush1.msra.mxu0 %v1365
    %1410 = vmatprep.subr.mxu0 %v1369
    %1411 = vmatpush1.msra.mxu0 %v1368
    %1412 = vmatprep.subr.mxu0 %v1372
    %1413 = vmatpush1.msra.mxu0 %v1371
    %1414 = vmatprep.subr.mxu0 %v1375
    %1415 = vmatpush1.msra.mxu0 %v1374
    %1416 = vmatprep.subr.mxu0 %v1378
    %1417 = vmatpush1.msra.mxu0 %v1377
    %1418 = vmatprep.subr.mxu0 %v1381
    %1419 = vmatpush1.msra.mxu0 %v1380
    %1420 = vmatprep.subr.mxu0 %v1384
    %1421 = vmatpush1.msra.mxu0 %v1383
    %1422 = vmatprep.subr.mxu0 %v1387
    %1423 = vmatpush1.msra.mxu0 %v1386
    %1424 = vmatprep.subr.mxu0 %v1390
    %1425 = vmatpush1.msra.mxu0 %v1389
    %1426 = vmatprep.subr.mxu0 %v1393
    %1427 = vmatpush1.msra.mxu0 %v1392
    %1428 = vmatprep.subr.mxu0 %v1396
    %1429 = vmatpush1.msra.mxu0 %v1395
    %1430 = vmatprep.subr.mxu0 0.0
    %1431 = vmatpush1.msra.mxu0 0.0
    %1432 = vmatprep.subr.mxu0 0.0
    %1433 = vmatpush1.msra.mxu0 0.0
    %1434 = vmatprep.subr.mxu0 0.0
    %1435 = vmatpush1.msra.mxu0 0.0
    %1436 = vmatprep.subr.mxu0 0.0
    %1437 = vmatpush1.msra.mxu0 0.0
    %1438 = vmatprep.subr.mxu0 0.0
    %1439 = vmatpush1.msra.mxu0 0.0
    %1440 = vmatprep.subr.mxu0 0.0
    %1441 = vmatpush1.msra.mxu0 0.0
    %1442 = vmatprep.subr.mxu0 0.0
    %1443 = vmatpush1.msra.mxu0 0.0
    %1444 = vmatprep.subr.mxu0 0.0
    %1445 = vmatpush1.msra.mxu0 0.0
    %1446 = vmatprep.subr.mxu0 0.0
    %1447 = vmatpush1.msra.mxu0 0.0
    %1448 = vmatprep.subr.mxu0 0.0
    %1449 = vmatpush1.msra.mxu0 0.0
    %1450 = vmatprep.subr.mxu0 0.0
    %1451 = vmatpush1.msra.mxu0 0.0
    %1452 = vmatprep.subr.mxu0 0.0
    %1453 = vmatpush1.msra.mxu0 0.0
    %1454 = vmatprep.subr.mxu0 0.0
    %1455 = vmatpush1.msra.mxu0 0.0
    %1456 = vmatprep.subr.mxu0 0.0
    %1457 = vmatpush1.msra.mxu0 0.0
    %1458 = vmatprep.subr.mxu0 0.0
    %1459 = vmatpush1.msra.mxu0 0.0
    %1460 = vmatprep.subr.mxu0 0.0
    %1461 = vmatpush1.msra.mxu0 0.0
    %1462 = vmatprep.mubr.f32.mxu0 0.0
    %1463 = vmatmul.mubr.f32.gmra.mrb[0].mxu0 %v1053
    %v1464 = vpop.f32.mrb[0].mxu0
    %v1465 = vadd.f32 %v373, %v1464
    %v1466 = vpop.f32.mrb[0].mxu0
    %v1467 = vadd.f32 %v377, %v1466
    %1468 = vdwg.mxu0
    %1469 = vmatprep.subr.mxu0 0.0
    %1470 = vmatpush1.msra.mxu0 %v1352
    %1471 = vmatprep.subr.mxu0 0.0
    %1472 = vmatpush1.msra.mxu0 %v1355
    %1473 = vmatprep.subr.mxu0 0.0
    %1474 = vmatpush1.msra.mxu0 %v1358
    %1475 = vmatprep.subr.mxu0 0.0
    %1476 = vmatpush1.msra.mxu0 %v1361
    %1477 = vmatprep.subr.mxu0 0.0
    %1478 = vmatpush1.msra.mxu0 %v1364
    %1479 = vmatprep.subr.mxu0 0.0
    %1480 = vmatpush1.msra.mxu0 %v1367
    %1481 = vmatprep.subr.mxu0 0.0
    %1482 = vmatpush1.msra.mxu0 %v1370
    %1483 = vmatprep.subr.mxu0 0.0
    %1484 = vmatpush1.msra.mxu0 %v1373
    %1485 = vmatprep.subr.mxu0 0.0
    %1486 = vmatpush1.msra.mxu0 %v1376
    %1487 = vmatprep.subr.mxu0 0.0
    %1488 = vmatpush1.msra.mxu0 %v1379
    %1489 = vmatprep.subr.mxu0 0.0
    %1490 = vmatpush1.msra.mxu0 %v1382
    %1491 = vmatprep.subr.mxu0 0.0
    %1492 = vmatpush1.msra.mxu0 %v1385
    %1493 = vmatprep.subr.mxu0 0.0
    %1494 = vmatpush1.msra.mxu0 %v1388
    %1495 = vmatprep.subr.mxu0 0.0
    %1496 = vmatpush1.msra.mxu0 %v1391
    %1497 = vmatprep.subr.mxu0 0.0
    %1498 = vmatpush1.msra.mxu0 %v1394
    %1499 = vmatprep.subr.mxu0 0.0
    %1500 = vmatpush1.msra.mxu0 %v1397
    %1501 = vmatprep.subr.mxu0 0.0
    %1502 = vmatpush1.msra.mxu0 0.0
    %1503 = vmatprep.subr.mxu0 0.0
    %1504 = vmatpush1.msra.mxu0 0.0
    %1505 = vmatprep.subr.mxu0 0.0
    %1506 = vmatpush1.msra.mxu0 0.0
    %1507 = vmatprep.subr.mxu0 0.0
    %1508 = vmatpush1.msra.mxu0 0.0
    %1509 = vmatprep.subr.mxu0 0.0
    %1510 = vmatpush1.msra.mxu0 0.0
    %1511 = vmatprep.subr.mxu0 0.0
    %1512 = vmatpush1.msra.mxu0 0.0
    %1513 = vmatprep.subr.mxu0 0.0
    %1514 = vmatpush1.msra.mxu0 0.0
    %1515 = vmatprep.subr.mxu0 0.0
    %1516 = vmatpush1.msra.mxu0 0.0
    %1517 = vmatprep.subr.mxu0 0.0
    %1518 = vmatpush1.msra.mxu0 0.0
    %1519 = vmatprep.subr.mxu0 0.0
    %1520 = vmatpush1.msra.mxu0 0.0
    %1521 = vmatprep.subr.mxu0 0.0
    %1522 = vmatpush1.msra.mxu0 0.0
    %1523 = vmatprep.subr.mxu0 0.0
    %1524 = vmatpush1.msra.mxu0 0.0
    %1525 = vmatprep.subr.mxu0 0.0
    %1526 = vmatpush1.msra.mxu0 0.0
    %1527 = vmatprep.subr.mxu0 0.0
    %1528 = vmatpush1.msra.mxu0 0.0
    %1529 = vmatprep.subr.mxu0 0.0
    %1530 = vmatpush1.msra.mxu0 0.0
    %1531 = vmatprep.subr.mxu0 0.0
    %1532 = vmatpush1.msra.mxu0 0.0
    %1533 = vmatprep.mubr.f32.mxu0 0.0
    %1534 = vmatmul.mubr.f32.gmra.mrb[0].mxu0 %v1053
    %v1535 = vpop.f32.mrb[0].mxu0
    %v1536 = vadd.f32 %v381, %v1535
    %v1537 = vpop.f32.mrb[0].mxu0
    %1538 = vdwg.mxu0
    %v1539 = vadd.f32 %v1276, %v1465
    %v1540 = vxor.u32 %v1539, 2147483648
    %v1541 = vmul.f32 %v1540, 1.442695
    %v1542 = vpow.pop %v1541
    %v1543 = vadd.f32 %v1542, 1.0
    %v1544 = vrcp.pop %v1543
    %v1545 = vmul.f32 1.0, %v1544
    %v1546 = vadd.f32 %v1278, %v1467
    %v1547 = vxor.u32 %v1546, 2147483648
    %v1548 = vmul.f32 %v1547, 1.442695
    %v1549 = vpow.pop %v1548
    %v1550 = vadd.f32 %v1549, 1.0
    %v1551 = vrcp.pop %v1550
    %v1552 = vmul.f32 1.0, %v1551
    %v1553 = vmul.f32 %v1545, %v1536
    %v1554 = vadd.f32 %v1347, %v1553
    %v1555 = vtanh.pop %v1554
    %v1556 = vsub.f32 1.0, %v1552
    %v1557 = vmul.f32 %v1556, %v1555
    %v1558 = vmul.f32 %v1552, %v1053
    %v1559 = vadd.f32 %v1557, %v1558
    %v1560 = vld [vmem:[#allocation10] sm:$0xff]
    %v1561 = vld [vmem:[#allocation10 + $0x8] sm:$0xff]
    %v1562 = vld [vmem:[#allocation10 + $0x10] sm:$0xff]
    %v1563 = vld [vmem:[#allocation10 + $0x18] sm:$0xff]
    %v1564 = vld [vmem:[#allocation10 + $0x20] sm:$0xff]
    %v1565 = vld [vmem:[#allocation10 + $0x28] sm:$0xff]
    %v1566 = vld [vmem:[#allocation10 + $0x30] sm:$0xff]
    %v1567 = vld [vmem:[#allocation10 + $0x38] sm:$0xff]
    %v1568 = vld [vmem:[#allocation10 + $0x40] sm:$0xff]
    %v1569 = vld [vmem:[#allocation10 + $0x48] sm:$0xff]
    %v1570 = vld [vmem:[#allocation10 + $0x50] sm:$0xff]
    %v1571 = vld [vmem:[#allocation10 + $0x58] sm:$0xff]
    %v1572 = vld [vmem:[#allocation10 + $0x60] sm:$0xff]
    %v1573 = vld [vmem:[#allocation10 + $0x68] sm:$0xff]
    %v1574 = vld [vmem:[#allocation10 + $0x70] sm:$0xff]
    %v1575 = vld [vmem:[#allocation10 + $0x78] sm:$0xff]
    %1576 = vmatprep.subr.mxu0 0.0
    %1577 = vmatpush1.msra.mxu0 %v1560
    %1578 = vmatprep.subr.mxu0 0.0
    %1579 = vmatpush1.msra.mxu0 %v1561
    %1580 = vmatprep.subr.mxu0 0.0
    %1581 = vmatpush1.msra.mxu0 %v1562
    %1582 = vmatprep.subr.mxu0 0.0
    %1583 = vmatpush1.msra.mxu0 %v1563
    %1584 = vmatprep.subr.mxu0 0.0
    %1585 = vmatpush1.msra.mxu0 %v1564
    %1586 = vmatprep.subr.mxu0 0.0
    %1587 = vmatpush1.msra.mxu0 %v1565
    %1588 = vmatprep.subr.mxu0 0.0
    %1589 = vmatpush1.msra.mxu0 %v1566
    %1590 = vmatprep.subr.mxu0 0.0
    %1591 = vmatpush1.msra.mxu0 %v1567
    %1592 = vmatprep.subr.mxu0 0.0
    %1593 = vmatpush1.msra.mxu0 %v1568
    %1594 = vmatprep.subr.mxu0 0.0
    %1595 = vmatpush1.msra.mxu0 %v1569
    %1596 = vmatprep.subr.mxu0 0.0
    %1597 = vmatpush1.msra.mxu0 %v1570
    %1598 = vmatprep.subr.mxu0 0.0
    %1599 = vmatpush1.msra.mxu0 %v1571
    %1600 = vmatprep.subr.mxu0 0.0
    %1601 = vmatpush1.msra.mxu0 %v1572
    %1602 = vmatprep.subr.mxu0 0.0
    %1603 = vmatpush1.msra.mxu0 %v1573
    %1604 = vmatprep.subr.mxu0 0.0
    %1605 = vmatpush1.msra.mxu0 %v1574
    %1606 = vmatprep.subr.mxu0 0.0
    %1607 = vmatpush1.msra.mxu0 %v1575
    %1608 = vmatprep.subr.mxu0 0.0
    %1609 = vmatpush1.msra.mxu0 0.0
    %1610 = vmatprep.subr.mxu0 0.0
    %1611 = vmatpush1.msra.mxu0 0.0
    %1612 = vmatprep.subr.mxu0 0.0
    %1613 = vmatpush1.msra.mxu0 0.0
    %1614 = vmatprep.subr.mxu0 0.0
    %1615 = vmatpush1.msra.mxu0 0.0
    %1616 = vmatprep.subr.mxu0 0.0
    %1617 = vmatpush1.msra.mxu0 0.0
    %1618 = vmatprep.subr.mxu0 0.0
    %1619 = vmatpush1.msra.mxu0 0.0
    %1620 = vmatprep.subr.mxu0 0.0
    %1621 = vmatpush1.msra.mxu0 0.0
    %1622 = vmatprep.subr.mxu0 0.0
    %1623 = vmatpush1.msra.mxu0 0.0
    %1624 = vmatprep.subr.mxu0 0.0
    %1625 = vmatpush1.msra.mxu0 0.0
    %1626 = vmatprep.subr.mxu0 0.0
    %1627 = vmatpush1.msra.mxu0 0.0
    %1628 = vmatprep.subr.mxu0 0.0
    %1629 = vmatpush1.msra.mxu0 0.0
    %1630 = vmatprep.subr.mxu0 0.0
    %1631 = vmatpush1.msra.mxu0 0.0
    %1632 = vmatprep.subr.mxu0 0.0
    %1633 = vmatpush1.msra.mxu0 0.0
    %1634 = vmatprep.subr.mxu0 0.0
    %1635 = vmatpush1.msra.mxu0 0.0
    %1636 = vmatprep.subr.mxu0 0.0
    %1637 = vmatpush1.msra.mxu0 0.0
    %1638 = vmatprep.subr.mxu0 0.0
    %1639 = vmatpush1.msra.mxu0 0.0
    %1640 = vmatprep.mubr.f32.mxu0 0.0
    %1641 = vmatmul.mubr.f32.gmra.mrb[0].mxu0 %v1559
    %v1642 = vpop.f32.mrb[0].mxu0
    %v1643 = vadd.f32 %v106, %v1642
    %v1644 = vpop.f32.mrb[0].mxu0
    %1645 = vdwg.mxu0
    %v1646 = vsel %vm633, %v1643, -inf
    %1647 = vmax.xlane.f32.xlu0 %v1646
    %v1648 = vpop.xlane.xlu0 %1647
    %v1649 = vsub.f32 %v1643, %v1648
    %v1650 = vmul.f32 %v1649, 1.442695
    %v1651 = vpow.pop %v1650
    %v1652 = vsel %vm633, %v1651, 0.0
    %1653 = vadd.xlane.f32.xlu0 %v1652
    %v1654 = vpop.xlane.xlu0 %1653
    %v1655 = vlog2.pop %v1654
    %v1656 = vmul.f32 %v1655, 0.6931472
    %v1657 = vsub.f32 %v1649, %v1656
    %1658 = vst [vmem:[#allocation12 + $0x2] sm:$0x1] %v1657
    %s1659 = sld [smem:[#allocation2 + $0x3]]
    %p1660 = scmp.gt.s32.totalorder %s1659, 0
    %s1661 = scalar_select %p1660, %s1659, 0
    %p1662 = scmp.lt.s32.totalorder %s1661, 127
    %s1663 = scalar_select %p1662, %s1661, 127
    %s1664 = scalar_lea.vmem [#allocation6], %s1663
    %v1665 = vld [vmem:[%s1664] sm:$0x1]
    %v1666 = vmax.f32 %v1665, 0.0
    %v1667 = vld [vmem:[#allocation7] sm:$0xff]
    %v1668 = vld [vmem:[#allocation7 + $0x8] sm:$0xff]
    %v1669 = vld [vmem:[#allocation7 + $0x10] sm:$0xff]
    %v1670 = vld [vmem:[#allocation7 + $0x18] sm:$0xff]
    %v1671 = vld [vmem:[#allocation7 + $0x20] sm:$0xff]
    %v1672 = vld [vmem:[#allocation7 + $0x28] sm:$0xff]
    %v1673 = vld [vmem:[#allocation7 + $0x30] sm:$0xff]
    %v1674 = vld [vmem:[#allocation7 + $0x38] sm:$0xff]
    %v1675 = vld [vmem:[#allocation7 + $0x40] sm:$0xff]
    %v1676 = vld [vmem:[#allocation7 + $0x48] sm:$0xff]
    %v1677 = vld [vmem:[#allocation7 + $0x50] sm:$0xff]
    %v1678 = vld [vmem:[#allocation7 + $0x58] sm:$0xff]
    %v1679 = vld [vmem:[#allocation7 + $0x60] sm:$0xff]
    %v1680 = vld [vmem:[#allocation7 + $0x68] sm:$0xff]
    %v1681 = vld [vmem:[#allocation7 + $0x70] sm:$0xff]
    %v1682 = vld [vmem:[#allocation7 + $0x78] sm:$0xff]
    %v1683 = vld [vmem:[#allocation7 + $0x80] sm:$0xff]
    %v1684 = vld [vmem:[#allocation7 + $0x88] sm:$0xff]
    %v1685 = vld [vmem:[#allocation7 + $0x90] sm:$0xff]
    %v1686 = vld [vmem:[#allocation7 + $0x98] sm:$0xff]
    %v1687 = vld [vmem:[#allocation7 + $0xa0] sm:$0xff]
    %v1688 = vld [vmem:[#allocation7 + $0xa8] sm:$0xff]
    %v1689 = vld [vmem:[#allocation7 + $0xb0] sm:$0xff]
    %v1690 = vld [vmem:[#allocation7 + $0xb8] sm:$0xff]
    %v1691 = vld [vmem:[#allocation7 + $0xc0] sm:$0xff]
    %v1692 = vld [vmem:[#allocation7 + $0xc8] sm:$0xff]
    %v1693 = vld [vmem:[#allocation7 + $0xd0] sm:$0xff]
    %v1694 = vld [vmem:[#allocation7 + $0xd8] sm:$0xff]
    %v1695 = vld [vmem:[#allocation7 + $0xe0] sm:$0xff]
    %v1696 = vld [vmem:[#allocation7 + $0xe8] sm:$0xff]
    %v1697 = vld [vmem:[#allocation7 + $0xf0] sm:$0xff]
    %v1698 = vld [vmem:[#allocation7 + $0xf8] sm:$0xff]
    %v1699 = vld [vmem:[#allocation7 + $0x100] sm:$0xff]
    %v1700 = vld [vmem:[#allocation7 + $0x108] sm:$0xff]
    %v1701 = vld [vmem:[#allocation7 + $0x110] sm:$0xff]
    %v1702 = vld [vmem:[#allocation7 + $0x118] sm:$0xff]
    %v1703 = vld [vmem:[#allocation7 + $0x120] sm:$0xff]
    %v1704 = vld [vmem:[#allocation7 + $0x128] sm:$0xff]
    %v1705 = vld [vmem:[#allocation7 + $0x130] sm:$0xff]
    %v1706 = vld [vmem:[#allocation7 + $0x138] sm:$0xff]
    %v1707 = vld [vmem:[#allocation7 + $0x140] sm:$0xff]
    %v1708 = vld [vmem:[#allocation7 + $0x148] sm:$0xff]
    %v1709 = vld [vmem:[#allocation7 + $0x150] sm:$0xff]
    %v1710 = vld [vmem:[#allocation7 + $0x158] sm:$0xff]
    %v1711 = vld [vmem:[#allocation7 + $0x160] sm:$0xff]
    %v1712 = vld [vmem:[#allocation7 + $0x168] sm:$0xff]
    %v1713 = vld [vmem:[#allocation7 + $0x170] sm:$0xff]
    %v1714 = vld [vmem:[#allocation7 + $0x178] sm:$0xff]
    %1715 = vmatprep.subr.mxu0 %v1668
    %1716 = vmatpush1.msra.mxu0 %v1667
    %1717 = vmatprep.subr.mxu0 %v1671
    %1718 = vmatpush1.msra.mxu0 %v1670
    %1719 = vmatprep.subr.mxu0 %v1674
    %1720 = vmatpush1.msra.mxu0 %v1673
    %1721 = vmatprep.subr.mxu0 %v1677
    %1722 = vmatpush1.msra.mxu0 %v1676
    %1723 = vmatprep.subr.mxu0 %v1680
    %1724 = vmatpush1.msra.mxu0 %v1679
    %1725 = vmatprep.subr.mxu0 %v1683
    %1726 = vmatpush1.msra.mxu0 %v1682
    %1727 = vmatprep.subr.mxu0 %v1686
    %1728 = vmatpush1.msra.mxu0 %v1685
    %1729 = vmatprep.subr.mxu0 %v1689
    %1730 = vmatpush1.msra.mxu0 %v1688
    %1731 = vmatprep.subr.mxu0 %v1692
    %1732 = vmatpush1.msra.mxu0 %v1691
    %1733 = vmatprep.subr.mxu0 %v1695
    %1734 = vmatpush1.msra.mxu0 %v1694
    %1735 = vmatprep.subr.mxu0 %v1698
    %1736 = vmatpush1.msra.mxu0 %v1697
    %1737 = vmatprep.subr.mxu0 %v1701
    %1738 = vmatpush1.msra.mxu0 %v1700
    %1739 = vmatprep.subr.mxu0 %v1704
    %1740 = vmatpush1.msra.mxu0 %v1703
    %1741 = vmatprep.subr.mxu0 %v1707
    %1742 = vmatpush1.msra.mxu0 %v1706
    %1743 = vmatprep.subr.mxu0 %v1710
    %1744 = vmatpush1.msra.mxu0 %v1709
    %1745 = vmatprep.subr.mxu0 %v1713
    %1746 = vmatpush1.msra.mxu0 %v1712
    %1747 = vmatprep.subr.mxu0 0.0
    %1748 = vmatpush1.msra.mxu0 0.0
    %1749 = vmatprep.subr.mxu0 0.0
    %1750 = vmatpush1.msra.mxu0 0.0
    %1751 = vmatprep.subr.mxu0 0.0
    %1752 = vmatpush1.msra.mxu0 0.0
    %1753 = vmatprep.subr.mxu0 0.0
    %1754 = vmatpush1.msra.mxu0 0.0
    %1755 = vmatprep.subr.mxu0 0.0
    %1756 = vmatpush1.msra.mxu0 0.0
    %1757 = vmatprep.subr.mxu0 0.0
    %1758 = vmatpush1.msra.mxu0 0.0
    %1759 = vmatprep.subr.mxu0 0.0
    %1760 = vmatpush1.msra.mxu0 0.0
    %1761 = vmatprep.subr.mxu0 0.0
    %1762 = vmatpush1.msra.mxu0 0.0
    %1763 = vmatprep.subr.mxu0 0.0
    %1764 = vmatpush1.msra.mxu0 0.0
    %1765 = vmatprep.subr.mxu0 0.0
    %1766 = vmatpush1.msra.mxu0 0.0
    %1767 = vmatprep.subr.mxu0 0.0
    %1768 = vmatpush1.msra.mxu0 0.0
    %1769 = vmatprep.subr.mxu0 0.0
    %1770 = vmatpush1.msra.mxu0 0.0
    %1771 = vmatprep.subr.mxu0 0.0
    %1772 = vmatpush1.msra.mxu0 0.0
    %1773 = vmatprep.subr.mxu0 0.0
    %1774 = vmatpush1.msra.mxu0 0.0
    %1775 = vmatprep.subr.mxu0 0.0
    %1776 = vmatpush1.msra.mxu0 0.0
    %1777 = vmatprep.subr.mxu0 0.0
    %1778 = vmatpush1.msra.mxu0 0.0
    %1779 = vmatprep.mubr.f32.mxu0 0.0
    %1780 = vmatmul.mubr.f32.gmra.mrb[0].mxu0 %v1666
    %v1781 = vpop.f32.mrb[0].mxu0
    %v1782 = vadd.f32 %v168, %v1781
    %v1783 = vpop.f32.mrb[0].mxu0
    %v1784 = vadd.f32 %v172, %v1783
    %1785 = vdwg.mxu0
    %1786 = vmatprep.subr.mxu0 0.0
    %1787 = vmatpush1.msra.mxu0 %v1669
    %1788 = vmatprep.subr.mxu0 0.0
    %1789 = vmatpush1.msra.mxu0 %v1672
    %1790 = vmatprep.subr.mxu0 0.0
    %1791 = vmatpush1.msra.mxu0 %v1675
    %1792 = vmatprep.subr.mxu0 0.0
    %1793 = vmatpush1.msra.mxu0 %v1678
    %1794 = vmatprep.subr.mxu0 0.0
    %1795 = vmatpush1.msra.mxu0 %v1681
    %1796 = vmatprep.subr.mxu0 0.0
    %1797 = vmatpush1.msra.mxu0 %v1684
    %1798 = vmatprep.subr.mxu0 0.0
    %1799 = vmatpush1.msra.mxu0 %v1687
    %1800 = vmatprep.subr.mxu0 0.0
    %1801 = vmatpush1.msra.mxu0 %v1690
    %1802 = vmatprep.subr.mxu0 0.0
    %1803 = vmatpush1.msra.mxu0 %v1693
    %1804 = vmatprep.subr.mxu0 0.0
    %1805 = vmatpush1.msra.mxu0 %v1696
    %1806 = vmatprep.subr.mxu0 0.0
    %1807 = vmatpush1.msra.mxu0 %v1699
    %1808 = vmatprep.subr.mxu0 0.0
    %1809 = vmatpush1.msra.mxu0 %v1702
    %1810 = vmatprep.subr.mxu0 0.0
    %1811 = vmatpush1.msra.mxu0 %v1705
    %1812 = vmatprep.subr.mxu0 0.0
    %1813 = vmatpush1.msra.mxu0 %v1708
    %1814 = vmatprep.subr.mxu0 0.0
    %1815 = vmatpush1.msra.mxu0 %v1711
    %1816 = vmatprep.subr.mxu0 0.0
    %1817 = vmatpush1.msra.mxu0 %v1714
    %1818 = vmatprep.subr.mxu0 0.0
    %1819 = vmatpush1.msra.mxu0 0.0
    %1820 = vmatprep.subr.mxu0 0.0
    %1821 = vmatpush1.msra.mxu0 0.0
    %1822 = vmatprep.subr.mxu0 0.0
    %1823 = vmatpush1.msra.mxu0 0.0
    %1824 = vmatprep.subr.mxu0 0.0
    %1825 = vmatpush1.msra.mxu0 0.0
    %1826 = vmatprep.subr.mxu0 0.0
    %1827 = vmatpush1.msra.mxu0 0.0
    %1828 = vmatprep.subr.mxu0 0.0
    %1829 = vmatpush1.msra.mxu0 0.0
    %1830 = vmatprep.subr.mxu0 0.0
    %1831 = vmatpush1.msra.mxu0 0.0
    %1832 = vmatprep.subr.mxu0 0.0
    %1833 = vmatpush1.msra.mxu0 0.0
    %1834 = vmatprep.subr.mxu0 0.0
    %1835 = vmatpush1.msra.mxu0 0.0
    %1836 = vmatprep.subr.mxu0 0.0
    %1837 = vmatpush1.msra.mxu0 0.0
    %1838 = vmatprep.subr.mxu0 0.0
    %1839 = vmatpush1.msra.mxu0 0.0
    %1840 = vmatprep.subr.mxu0 0.0
    %1841 = vmatpush1.msra.mxu0 0.0
    %1842 = vmatprep.subr.mxu0 0.0
    %1843 = vmatpush1.msra.mxu0 0.0
    %1844 = vmatprep.subr.mxu0 0.0
    %1845 = vmatpush1.msra.mxu0 0.0
    %1846 = vmatprep.subr.mxu0 0.0
    %1847 = vmatpush1.msra.mxu0 0.0
    %1848 = vmatprep.subr.mxu0 0.0
    %1849 = vmatpush1.msra.mxu0 0.0
    %1850 = vmatprep.mubr.f32.mxu0 0.0
    %1851 = vmatmul.mubr.f32.gmra.mrb[0].mxu0 %v1666
    %v1852 = vpop.f32.mrb[0].mxu0
    %v1853 = vadd.f32 %v176, %v1852
    %v1854 = vpop.f32.mrb[0].mxu0
    %1855 = vdwg.mxu0
    %v1856 = vld [vmem:[#allocation9] sm:$0xff]
    %v1857 = vld [vmem:[#allocation9 + $0x8] sm:$0xff]
    %v1858 = vld [vmem:[#allocation9 + $0x10] sm:$0xff]
    %v1859 = vld [vmem:[#allocation9 + $0x18] sm:$0xff]
    %v1860 = vld [vmem:[#allocation9 + $0x20] sm:$0xff]
    %v1861 = vld [vmem:[#allocation9 + $0x28] sm:$0xff]
    %v1862 = vld [vmem:[#allocation9 + $0x30] sm:$0xff]
    %v1863 = vld [vmem:[#allocation9 + $0x38] sm:$0xff]
    %v1864 = vld [vmem:[#allocation9 + $0x40] sm:$0xff]
    %v1865 = vld [vmem:[#allocation9 + $0x48] sm:$0xff]
    %v1866 = vld [vmem:[#allocation9 + $0x50] sm:$0xff]
    %v1867 = vld [vmem:[#allocation9 + $0x58] sm:$0xff]
    %v1868 = vld [vmem:[#allocation9 + $0x60] sm:$0xff]
    %v1869 = vld [vmem:[#allocation9 + $0x68] sm:$0xff]
    %v1870 = vld [vmem:[#allocation9 + $0x70] sm:$0xff]
    %v1871 = vld [vmem:[#allocation9 + $0x78] sm:$0xff]
    %v1872 = vld [vmem:[#allocation9 + $0x80] sm:$0xff]
    %v1873 = vld [vmem:[#allocation9 + $0x88] sm:$0xff]
    %v1874 = vld [vmem:[#allocation9 + $0x90] sm:$0xff]
    %v1875 = vld [vmem:[#allocation9 + $0x98] sm:$0xff]
    %v1876 = vld [vmem:[#allocation9 + $0xa0] sm:$0xff]
    %v1877 = vld [vmem:[#allocation9 + $0xa8] sm:$0xff]
    %v1878 = vld [vmem:[#allocation9 + $0xb0] sm:$0xff]
    %v1879 = vld [vmem:[#allocation9 + $0xb8] sm:$0xff]
    %v1880 = vld [vmem:[#allocation9 + $0xc0] sm:$0xff]
    %v1881 = vld [vmem:[#allocation9 + $0xc8] sm:$0xff]
    %v1882 = vld [vmem:[#allocation9 + $0xd0] sm:$0xff]
    %v1883 = vld [vmem:[#allocation9 + $0xd8] sm:$0xff]
    %v1884 = vld [vmem:[#allocation9 + $0xe0] sm:$0xff]
    %v1885 = vld [vmem:[#allocation9 + $0xe8] sm:$0xff]
    %v1886 = vld [vmem:[#allocation9 + $0xf0] sm:$0xff]
    %v1887 = vld [vmem:[#allocation9 + $0xf8] sm:$0xff]
    %v1888 = vld [vmem:[#allocation9 + $0x100] sm:$0xff]
    %v1889 = vld [vmem:[#allocation9 + $0x108] sm:$0xff]
    %v1890 = vld [vmem:[#allocation9 + $0x110] sm:$0xff]
    %v1891 = vld [vmem:[#allocation9 + $0x118] sm:$0xff]
    %v1892 = vld [vmem:[#allocation9 + $0x120] sm:$0xff]
    %v1893 = vld [vmem:[#allocation9 + $0x128] sm:$0xff]
    %v1894 = vld [vmem:[#allocation9 + $0x130] sm:$0xff]
    %v1895 = vld [vmem:[#allocation9 + $0x138] sm:$0xff]
    %v1896 = vld [vmem:[#allocation9 + $0x140] sm:$0xff]
    %v1897 = vld [vmem:[#allocation9 + $0x148] sm:$0xff]
    %v1898 = vld [vmem:[#allocation9 + $0x150] sm:$0xff]
    %v1899 = vld [vmem:[#allocation9 + $0x158] sm:$0xff]
    %v1900 = vld [vmem:[#allocation9 + $0x160] sm:$0xff]
    %v1901 = vld [vmem:[#allocation9 + $0x168] sm:$0xff]
    %v1902 = vld [vmem:[#allocation9 + $0x170] sm:$0xff]
    %v1903 = vld [vmem:[#allocation9 + $0x178] sm:$0xff]
    %1904 = vmatprep.subr.mxu0 %v1857
    %1905 = vmatpush1.msra.mxu0 %v1856
    %1906 = vmatprep.subr.mxu0 %v1860
    %1907 = vmatpush1.msra.mxu0 %v1859
    %1908 = vmatprep.subr.mxu0 %v1863
    %1909 = vmatpush1.msra.mxu0 %v1862
    %1910 = vmatprep.subr.mxu0 %v1866
    %1911 = vmatpush1.msra.mxu0 %v1865
    %1912 = vmatprep.subr.mxu0 %v1869
    %1913 = vmatpush1.msra.mxu0 %v1868
    %1914 = vmatprep.subr.mxu0 %v1872
    %1915 = vmatpush1.msra.mxu0 %v1871
    %1916 = vmatprep.subr.mxu0 %v1875
    %1917 = vmatpush1.msra.mxu0 %v1874
    %1918 = vmatprep.subr.mxu0 %v1878
    %1919 = vmatpush1.msra.mxu0 %v1877
    %1920 = vmatprep.subr.mxu0 %v1881
    %1921 = vmatpush1.msra.mxu0 %v1880
    %1922 = vmatprep.subr.mxu0 %v1884
    %1923 = vmatpush1.msra.mxu0 %v1883
    %1924 = vmatprep.subr.mxu0 %v1887
    %1925 = vmatpush1.msra.mxu0 %v1886
    %1926 = vmatprep.subr.mxu0 %v1890
    %1927 = vmatpush1.msra.mxu0 %v1889
    %1928 = vmatprep.subr.mxu0 %v1893
    %1929 = vmatpush1.msra.mxu0 %v1892
    %1930 = vmatprep.subr.mxu0 %v1896
    %1931 = vmatpush1.msra.mxu0 %v1895
    %1932 = vmatprep.subr.mxu0 %v1899
    %1933 = vmatpush1.msra.mxu0 %v1898
    %1934 = vmatprep.subr.mxu0 %v1902
    %1935 = vmatpush1.msra.mxu0 %v1901
    %1936 = vmatprep.subr.mxu0 0.0
    %1937 = vmatpush1.msra.mxu0 0.0
    %1938 = vmatprep.subr.mxu0 0.0
    %1939 = vmatpush1.msra.mxu0 0.0
    %1940 = vmatprep.subr.mxu0 0.0
    %1941 = vmatpush1.msra.mxu0 0.0
    %1942 = vmatprep.subr.mxu0 0.0
    %1943 = vmatpush1.msra.mxu0 0.0
    %1944 = vmatprep.subr.mxu0 0.0
    %1945 = vmatpush1.msra.mxu0 0.0
    %1946 = vmatprep.subr.mxu0 0.0
    %1947 = vmatpush1.msra.mxu0 0.0
    %1948 = vmatprep.subr.mxu0 0.0
    %1949 = vmatpush1.msra.mxu0 0.0
    %1950 = vmatprep.subr.mxu0 0.0
    %1951 = vmatpush1.msra.mxu0 0.0
    %1952 = vmatprep.subr.mxu0 0.0
    %1953 = vmatpush1.msra.mxu0 0.0
    %1954 = vmatprep.subr.mxu0 0.0
    %1955 = vmatpush1.msra.mxu0 0.0
    %1956 = vmatprep.subr.mxu0 0.0
    %1957 = vmatpush1.msra.mxu0 0.0
    %1958 = vmatprep.subr.mxu0 0.0
    %1959 = vmatpush1.msra.mxu0 0.0
    %1960 = vmatprep.subr.mxu0 0.0
    %1961 = vmatpush1.msra.mxu0 0.0
    %1962 = vmatprep.subr.mxu0 0.0
    %1963 = vmatpush1.msra.mxu0 0.0
    %1964 = vmatprep.subr.mxu0 0.0
    %1965 = vmatpush1.msra.mxu0 0.0
    %1966 = vmatprep.subr.mxu0 0.0
    %1967 = vmatpush1.msra.mxu0 0.0
    %1968 = vmatprep.mubr.f32.mxu0 0.0
    %1969 = vmatmul.mubr.f32.gmra.mrb[0].mxu0 %v1559
    %v1970 = vpop.f32.mrb[0].mxu0
    %v1971 = vadd.f32 %v373, %v1970
    %v1972 = vpop.f32.mrb[0].mxu0
    %v1973 = vadd.f32 %v377, %v1972
    %1974 = vdwg.mxu0
    %1975 = vmatprep.subr.mxu0 0.0
    %1976 = vmatpush1.msra.mxu0 %v1858
    %1977 = vmatprep.subr.mxu0 0.0
    %1978 = vmatpush1.msra.mxu0 %v1861
    %1979 = vmatprep.subr.mxu0 0.0
    %1980 = vmatpush1.msra.mxu0 %v1864
    %1981 = vmatprep.subr.mxu0 0.0
    %1982 = vmatpush1.msra.mxu0 %v1867
    %1983 = vmatprep.subr.mxu0 0.0
    %1984 = vmatpush1.msra.mxu0 %v1870
    %1985 = vmatprep.subr.mxu0 0.0
    %1986 = vmatpush1.msra.mxu0 %v1873
    %1987 = vmatprep.subr.mxu0 0.0
    %1988 = vmatpush1.msra.mxu0 %v1876
    %1989 = vmatprep.subr.mxu0 0.0
    %1990 = vmatpush1.msra.mxu0 %v1879
    %1991 = vmatprep.subr.mxu0 0.0
    %1992 = vmatpush1.msra.mxu0 %v1882
    %1993 = vmatprep.subr.mxu0 0.0
    %1994 = vmatpush1.msra.mxu0 %v1885
    %1995 = vmatprep.subr.mxu0 0.0
    %1996 = vmatpush1.msra.mxu0 %v1888
    %1997 = vmatprep.subr.mxu0 0.0
    %1998 = vmatpush1.msra.mxu0 %v1891
    %1999 = vmatprep.subr.mxu0 0.0
    %2000 = vmatpush1.msra.mxu0 %v1894
    %2001 = vmatprep.subr.mxu0 0.0
    %2002 = vmatpush1.msra.mxu0 %v1897
    %2003 = vmatprep.subr.mxu0 0.0
    %2004 = vmatpush1.msra.mxu0 %v1900
    %2005 = vmatprep.subr.mxu0 0.0
    %2006 = vmatpush1.msra.mxu0 %v1903
    %2007 = vmatprep.subr.mxu0 0.0
    %2008 = vmatpush1.msra.mxu0 0.0
    %2009 = vmatprep.subr.mxu0 0.0
    %2010 = vmatpush1.msra.mxu0 0.0
    %2011 = vmatprep.subr.mxu0 0.0
    %2012 = vmatpush1.msra.mxu0 0.0
    %2013 = vmatprep.subr.mxu0 0.0
    %2014 = vmatpush1.msra.mxu0 0.0
    %2015 = vmatprep.subr.mxu0 0.0
    %2016 = vmatpush1.msra.mxu0 0.0
    %2017 = vmatprep.subr.mxu0 0.0
    %2018 = vmatpush1.msra.mxu0 0.0
    %2019 = vmatprep.subr.mxu0 0.0
    %2020 = vmatpush1.msra.mxu0 0.0
    %2021 = vmatprep.subr.mxu0 0.0
    %2022 = vmatpush1.msra.mxu0 0.0
    %2023 = vmatprep.subr.mxu0 0.0
    %2024 = vmatpush1.msra.mxu0 0.0
    %2025 = vmatprep.subr.mxu0 0.0
    %2026 = vmatpush1.msra.mxu0 0.0
    %2027 = vmatprep.subr.mxu0 0.0
    %2028 = vmatpush1.msra.mxu0 0.0
    %2029 = vmatprep.subr.mxu0 0.0
    %2030 = vmatpush1.msra.mxu0 0.0
    %2031 = vmatprep.subr.mxu0 0.0
    %2032 = vmatpush1.msra.mxu0 0.0
    %2033 = vmatprep.subr.mxu0 0.0
    %2034 = vmatpush1.msra.mxu0 0.0
    %2035 = vmatprep.subr.mxu0 0.0
    %2036 = vmatpush1.msra.mxu0 0.0
    %2037 = vmatprep.subr.mxu0 0.0
    %2038 = vmatpush1.msra.mxu0 0.0
    %2039 = vmatprep.mubr.f32.mxu0 0.0
    %2040 = vmatmul.mubr.f32.gmra.mrb[0].mxu0 %v1559
    %v2041 = vpop.f32.mrb[0].mxu0
    %v2042 = vadd.f32 %v381, %v2041
    %v2043 = vpop.f32.mrb[0].mxu0
    %2044 = vdwg.mxu0
    %v2045 = vadd.f32 %v1782, %v1971
    %v2046 = vxor.u32 %v2045, 2147483648
    %v2047 = vmul.f32 %v2046, 1.442695
    %v2048 = vpow.pop %v2047
    %v2049 = vadd.f32 %v2048, 1.0
    %v2050 = vrcp.pop %v2049
    %v2051 = vmul.f32 1.0, %v2050
    %v2052 = vadd.f32 %v1784, %v1973
    %v2053 = vxor.u32 %v2052, 2147483648
    %v2054 = vmul.f32 %v2053, 1.442695
    %v2055 = vpow.pop %v2054
    %v2056 = vadd.f32 %v2055, 1.0
    %v2057 = vrcp.pop %v2056
    %v2058 = vmul.f32 1.0, %v2057
    %v2059 = vmul.f32 %v2051, %v2042
    %v2060 = vadd.f32 %v1853, %v2059
    %v2061 = vtanh.pop %v2060
    %v2062 = vsub.f32 1.0, %v2058
    %v2063 = vmul.f32 %v2062, %v2061
    %v2064 = vmul.f32 %v2058, %v1559
    %v2065 = vadd.f32 %v2063, %v2064
    %v2066 = vld [vmem:[#allocation10] sm:$0xff]
    %v2067 = vld [vmem:[#allocation10 + $0x8] sm:$0xff]
    %v2068 = vld [vmem:[#allocation10 + $0x10] sm:$0xff]
    %v2069 = vld [vmem:[#allocation10 + $0x18] sm:$0xff]
    %v2070 = vld [vmem:[#allocation10 + $0x20] sm:$0xff]
    %v2071 = vld [vmem:[#allocation10 + $0x28] sm:$0xff]
    %v2072 = vld [vmem:[#allocation10 + $0x30] sm:$0xff]
    %v2073 = vld [vmem:[#allocation10 + $0x38] sm:$0xff]
    %v2074 = vld [vmem:[#allocation10 + $0x40] sm:$0xff]
    %v2075 = vld [vmem:[#allocation10 + $0x48] sm:$0xff]
    %v2076 = vld [vmem:[#allocation10 + $0x50] sm:$0xff]
    %v2077 = vld [vmem:[#allocation10 + $0x58] sm:$0xff]
    %v2078 = vld [vmem:[#allocation10 + $0x60] sm:$0xff]
    %v2079 = vld [vmem:[#allocation10 + $0x68] sm:$0xff]
    %v2080 = vld [vmem:[#allocation10 + $0x70] sm:$0xff]
    %v2081 = vld [vmem:[#allocation10 + $0x78] sm:$0xff]
    %2082 = vmatprep.subr.mxu0 0.0
    %2083 = vmatpush1.msra.mxu0 %v2066
    %2084 = vmatprep.subr.mxu0 0.0
    %2085 = vmatpush1.msra.mxu0 %v2067
    %2086 = vmatprep.subr.mxu0 0.0
    %2087 = vmatpush1.msra.mxu0 %v2068
    %2088 = vmatprep.subr.mxu0 0.0
    %2089 = vmatpush1.msra.mxu0 %v2069
    %2090 = vmatprep.subr.mxu0 0.0
    %2091 = vmatpush1.msra.mxu0 %v2070
    %2092 = vmatprep.subr.mxu0 0.0
    %2093 = vmatpush1.msra.mxu0 %v2071
    %2094 = vmatprep.subr.mxu0 0.0
    %2095 = vmatpush1.msra.mxu0 %v2072
    %2096 = vmatprep.subr.mxu0 0.0
    %2097 = vmatpush1.msra.mxu0 %v2073
    %2098 = vmatprep.subr.mxu0 0.0
    %2099 = vmatpush1.msra.mxu0 %v2074
    %2100 = vmatprep.subr.mxu0 0.0
    %2101 = vmatpush1.msra.mxu0 %v2075
    %2102 = vmatprep.subr.mxu0 0.0
    %2103 = vmatpush1.msra.mxu0 %v2076
    %2104 = vmatprep.subr.mxu0 0.0
    %2105 = vmatpush1.msra.mxu0 %v2077
    %2106 = vmatprep.subr.mxu0 0.0
    %2107 = vmatpush1.msra.mxu0 %v2078
    %2108 = vmatprep.subr.mxu0 0.0
    %2109 = vmatpush1.msra.mxu0 %v2079
    %2110 = vmatprep.subr.mxu0 0.0
    %2111 = vmatpush1.msra.mxu0 %v2080
    %2112 = vmatprep.subr.mxu0 0.0
    %2113 = vmatpush1.msra.mxu0 %v2081
    %2114 = vmatprep.subr.mxu0 0.0
    %2115 = vmatpush1.msra.mxu0 0.0
    %2116 = vmatprep.subr.mxu0 0.0
    %2117 = vmatpush1.msra.mxu0 0.0
    %2118 = vmatprep.subr.mxu0 0.0
    %2119 = vmatpush1.msra.mxu0 0.0
    %2120 = vmatprep.subr.mxu0 0.0
    %2121 = vmatpush1.msra.mxu0 0.0
    %2122 = vmatprep.subr.mxu0 0.0
    %2123 = vmatpush1.msra.mxu0 0.0
    %2124 = vmatprep.subr.mxu0 0.0
    %2125 = vmatpush1.msra.mxu0 0.0
    %2126 = vmatprep.subr.mxu0 0.0
    %2127 = vmatpush1.msra.mxu0 0.0
    %2128 = vmatprep.subr.mxu0 0.0
    %2129 = vmatpush1.msra.mxu0 0.0
    %2130 = vmatprep.subr.mxu0 0.0
    %2131 = vmatpush1.msra.mxu0 0.0
    %2132 = vmatprep.subr.mxu0 0.0
    %2133 = vmatpush1.msra.mxu0 0.0
    %2134 = vmatprep.subr.mxu0 0.0
    %2135 = vmatpush1.msra.mxu0 0.0
    %2136 = vmatprep.subr.mxu0 0.0
    %2137 = vmatpush1.msra.mxu0 0.0
    %2138 = vmatprep.subr.mxu0 0.0
    %2139 = vmatpush1.msra.mxu0 0.0
    %2140 = vmatprep.subr.mxu0 0.0
    %2141 = vmatpush1.msra.mxu0 0.0
    %2142 = vmatprep.subr.mxu0 0.0
    %2143 = vmatpush1.msra.mxu0 0.0
    %2144 = vmatprep.subr.mxu0 0.0
    %2145 = vmatpush1.msra.mxu0 0.0
    %2146 = vmatprep.mubr.f32.mxu0 0.0
    %2147 = vmatmul.mubr.f32.gmra.mrb[0].mxu0 %v2065
    %v2148 = vpop.f32.mrb[0].mxu0
    %v2149 = vadd.f32 %v106, %v2148
    %v2150 = vpop.f32.mrb[0].mxu0
    %2151 = vdwg.mxu0
    %v2152 = vsel %vm633, %v2149, -inf
    %2153 = vmax.xlane.f32.xlu0 %v2152
    %v2154 = vpop.xlane.xlu0 %2153
    %v2155 = vsub.f32 %v2149, %v2154
    %v2156 = vmul.f32 %v2155, 1.442695
    %v2157 = vpow.pop %v2156
    %v2158 = vsel %vm633, %v2157, 0.0
    %2159 = vadd.xlane.f32.xlu0 %v2158
    %v2160 = vpop.xlane.xlu0 %2159
    %v2161 = vlog2.pop %v2160
    %v2162 = vmul.f32 %v2161, 0.6931472
    %v2163 = vsub.f32 %v2155, %v2162
    %2164 = vst [vmem:[#allocation12 + $0x3] sm:$0x1] %v2163
    %s2165 = sld [smem:[#allocation2 + $0x4]]
    %p2166 = scmp.gt.s32.totalorder %s2165, 0
    %s2167 = scalar_select %p2166, %s2165, 0
    %p2168 = scmp.lt.s32.totalorder %s2167, 127
    %s2169 = scalar_select %p2168, %s2167, 127
    %s2170 = scalar_lea.vmem [#allocation6], %s2169
    %v2171 = vld [vmem:[%s2170] sm:$0x1]
    %v2172 = vmax.f32 %v2171, 0.0
    %v2173 = vld [vmem:[#allocation7] sm:$0xff]
    %v2174 = vld [vmem:[#allocation7 + $0x8] sm:$0xff]
    %v2175 = vld [vmem:[#allocation7 + $0x10] sm:$0xff]
    %v2176 = vld [vmem:[#allocation7 + $0x18] sm:$0xff]
    %v2177 = vld [vmem:[#allocation7 + $0x20] sm:$0xff]
    %v2178 = vld [vmem:[#allocation7 + $0x28] sm:$0xff]
    %v2179 = vld [vmem:[#allocation7 + $0x30] sm:$0xff]
    %v2180 = vld [vmem:[#allocation7 + $0x38] sm:$0xff]
    %v2181 = vld [vmem:[#allocation7 + $0x40] sm:$0xff]
    %v2182 = vld [vmem:[#allocation7 + $0x48] sm:$0xff]
    %v2183 = vld [vmem:[#allocation7 + $0x50] sm:$0xff]
    %v2184 = vld [vmem:[#allocation7 + $0x58] sm:$0xff]
    %v2185 = vld [vmem:[#allocation7 + $0x60] sm:$0xff]
    %v2186 = vld [vmem:[#allocation7 + $0x68] sm:$0xff]
    %v2187 = vld [vmem:[#allocation7 + $0x70] sm:$0xff]
    %v2188 = vld [vmem:[#allocation7 + $0x78] sm:$0xff]
    %v2189 = vld [vmem:[#allocation7 + $0x80] sm:$0xff]
    %v2190 = vld [vmem:[#allocation7 + $0x88] sm:$0xff]
    %v2191 = vld [vmem:[#allocation7 + $0x90] sm:$0xff]
    %v2192 = vld [vmem:[#allocation7 + $0x98] sm:$0xff]
    %v2193 = vld [vmem:[#allocation7 + $0xa0] sm:$0xff]
    %v2194 = vld [vmem:[#allocation7 + $0xa8] sm:$0xff]
    %v2195 = vld [vmem:[#allocation7 + $0xb0] sm:$0xff]
    %v2196 = vld [vmem:[#allocation7 + $0xb8] sm:$0xff]
    %v2197 = vld [vmem:[#allocation7 + $0xc0] sm:$0xff]
    %v2198 = vld [vmem:[#allocation7 + $0xc8] sm:$0xff]
    %v2199 = vld [vmem:[#allocation7 + $0xd0] sm:$0xff]
    %v2200 = vld [vmem:[#allocation7 + $0xd8] sm:$0xff]
    %v2201 = vld [vmem:[#allocation7 + $0xe0] sm:$0xff]
    %v2202 = vld [vmem:[#allocation7 + $0xe8] sm:$0xff]
    %v2203 = vld [vmem:[#allocation7 + $0xf0] sm:$0xff]
    %v2204 = vld [vmem:[#allocation7 + $0xf8] sm:$0xff]
    %v2205 = vld [vmem:[#allocation7 + $0x100] sm:$0xff]
    %v2206 = vld [vmem:[#allocation7 + $0x108] sm:$0xff]
    %v2207 = vld [vmem:[#allocation7 + $0x110] sm:$0xff]
    %v2208 = vld [vmem:[#allocation7 + $0x118] sm:$0xff]
    %v2209 = vld [vmem:[#allocation7 + $0x120] sm:$0xff]
    %v2210 = vld [vmem:[#allocation7 + $0x128] sm:$0xff]
    %v2211 = vld [vmem:[#allocation7 + $0x130] sm:$0xff]
    %v2212 = vld [vmem:[#allocation7 + $0x138] sm:$0xff]
    %v2213 = vld [vmem:[#allocation7 + $0x140] sm:$0xff]
    %v2214 = vld [vmem:[#allocation7 + $0x148] sm:$0xff]
    %v2215 = vld [vmem:[#allocation7 + $0x150] sm:$0xff]
    %v2216 = vld [vmem:[#allocation7 + $0x158] sm:$0xff]
    %v2217 = vld [vmem:[#allocation7 + $0x160] sm:$0xff]
    %v2218 = vld [vmem:[#allocation7 + $0x168] sm:$0xff]
    %v2219 = vld [vmem:[#allocation7 + $0x170] sm:$0xff]
    %v2220 = vld [vmem:[#allocation7 + $0x178] sm:$0xff]
    %2221 = vmatprep.subr.mxu0 %v2174
    %2222 = vmatpush1.msra.mxu0 %v2173
    %2223 = vmatprep.subr.mxu0 %v2177
    %2224 = vmatpush1.msra.mxu0 %v2176
    %2225 = vmatprep.subr.mxu0 %v2180
    %2226 = vmatpush1.msra.mxu0 %v2179
    %2227 = vmatprep.subr.mxu0 %v2183
    %2228 = vmatpush1.msra.mxu0 %v2182
    %2229 = vmatprep.subr.mxu0 %v2186
    %2230 = vmatpush1.msra.mxu0 %v2185
    %2231 = vmatprep.subr.mxu0 %v2189
    %2232 = vmatpush1.msra.mxu0 %v2188
    %2233 = vmatprep.subr.mxu0 %v2192
    %2234 = vmatpush1.msra.mxu0 %v2191
    %2235 = vmatprep.subr.mxu0 %v2195
    %2236 = vmatpush1.msra.mxu0 %v2194
    %2237 = vmatprep.subr.mxu0 %v2198
    %2238 = vmatpush1.msra.mxu0 %v2197
    %2239 = vmatprep.subr.mxu0 %v2201
    %2240 = vmatpush1.msra.mxu0 %v2200
    %2241 = vmatprep.subr.mxu0 %v2204
    %2242 = vmatpush1.msra.mxu0 %v2203
    %2243 = vmatprep.subr.mxu0 %v2207
    %2244 = vmatpush1.msra.mxu0 %v2206
    %2245 = vmatprep.subr.mxu0 %v2210
    %2246 = vmatpush1.msra.mxu0 %v2209
    %2247 = vmatprep.subr.mxu0 %v2213
    %2248 = vmatpush1.msra.mxu0 %v2212
    %2249 = vmatprep.subr.mxu0 %v2216
    %2250 = vmatpush1.msra.mxu0 %v2215
    %2251 = vmatprep.subr.mxu0 %v2219
    %2252 = vmatpush1.msra.mxu0 %v2218
    %2253 = vmatprep.subr.mxu0 0.0
    %2254 = vmatpush1.msra.mxu0 0.0
    %2255 = vmatprep.subr.mxu0 0.0
    %2256 = vmatpush1.msra.mxu0 0.0
    %2257 = vmatprep.subr.mxu0 0.0
    %2258 = vmatpush1.msra.mxu0 0.0
    %2259 = vmatprep.subr.mxu0 0.0
    %2260 = vmatpush1.msra.mxu0 0.0
    %2261 = vmatprep.subr.mxu0 0.0
    %2262 = vmatpush1.msra.mxu0 0.0
    %2263 = vmatprep.subr.mxu0 0.0
    %2264 = vmatpush1.msra.mxu0 0.0
    %2265 = vmatprep.subr.mxu0 0.0
    %2266 = vmatpush1.msra.mxu0 0.0
    %2267 = vmatprep.subr.mxu0 0.0
    %2268 = vmatpush1.msra.mxu0 0.0
    %2269 = vmatprep.subr.mxu0 0.0
    %2270 = vmatpush1.msra.mxu0 0.0
    %2271 = vmatprep.subr.mxu0 0.0
    %2272 = vmatpush1.msra.mxu0 0.0
    %2273 = vmatprep.subr.mxu0 0.0
    %2274 = vmatpush1.msra.mxu0 0.0
    %2275 = vmatprep.subr.mxu0 0.0
    %2276 = vmatpush1.msra.mxu0 0.0
    %2277 = vmatprep.subr.mxu0 0.0
    %2278 = vmatpush1.msra.mxu0 0.0
    %2279 = vmatprep.subr.mxu0 0.0
    %2280 = vmatpush1.msra.mxu0 0.0
    %2281 = vmatprep.subr.mxu0 0.0
    %2282 = vmatpush1.msra.mxu0 0.0
    %2283 = vmatprep.subr.mxu0 0.0
    %2284 = vmatpush1.msra.mxu0 0.0
    %2285 = vmatprep.mubr.f32.mxu0 0.0
    %2286 = vmatmul.mubr.f32.gmra.mrb[0].mxu0 %v2172
    %v2287 = vpop.f32.mrb[0].mxu0
    %v2288 = vadd.f32 %v168, %v2287
    %v2289 = vpop.f32.mrb[0].mxu0
    %v2290 = vadd.f32 %v172, %v2289
    %2291 = vdwg.mxu0
    %2292 = vmatprep.subr.mxu0 0.0
    %2293 = vmatpush1.msra.mxu0 %v2175
    %2294 = vmatprep.subr.mxu0 0.0
    %2295 = vmatpush1.msra.mxu0 %v2178
    %2296 = vmatprep.subr.mxu0 0.0
    %2297 = vmatpush1.msra.mxu0 %v2181
    %2298 = vmatprep.subr.mxu0 0.0
    %2299 = vmatpush1.msra.mxu0 %v2184
    %2300 = vmatprep.subr.mxu0 0.0
    %2301 = vmatpush1.msra.mxu0 %v2187
    %2302 = vmatprep.subr.mxu0 0.0
    %2303 = vmatpush1.msra.mxu0 %v2190
    %2304 = vmatprep.subr.mxu0 0.0
    %2305 = vmatpush1.msra.mxu0 %v2193
    %2306 = vmatprep.subr.mxu0 0.0
    %2307 = vmatpush1.msra.mxu0 %v2196
    %2308 = vmatprep.subr.mxu0 0.0
    %2309 = vmatpush1.msra.mxu0 %v2199
    %2310 = vmatprep.subr.mxu0 0.0
    %2311 = vmatpush1.msra.mxu0 %v2202
    %2312 = vmatprep.subr.mxu0 0.0
    %2313 = vmatpush1.msra.mxu0 %v2205
    %2314 = vmatprep.subr.mxu0 0.0
    %2315 = vmatpush1.msra.mxu0 %v2208
    %2316 = vmatprep.subr.mxu0 0.0
    %2317 = vmatpush1.msra.mxu0 %v2211
    %2318 = vmatprep.subr.mxu0 0.0
    %2319 = vmatpush1.msra.mxu0 %v2214
    %2320 = vmatprep.subr.mxu0 0.0
    %2321 = vmatpush1.msra.mxu0 %v2217
    %2322 = vmatprep.subr.mxu0 0.0
    %2323 = vmatpush1.msra.mxu0 %v2220
    %2324 = vmatprep.subr.mxu0 0.0
    %2325 = vmatpush1.msra.mxu0 0.0
    %2326 = vmatprep.subr.mxu0 0.0
    %2327 = vmatpush1.msra.mxu0 0.0
    %2328 = vmatprep.subr.mxu0 0.0
    %2329 = vmatpush1.msra.mxu0 0.0
    %2330 = vmatprep.subr.mxu0 0.0
    %2331 = vmatpush1.msra.mxu0 0.0
    %2332 = vmatprep.subr.mxu0 0.0
    %2333 = vmatpush1.msra.mxu0 0.0
    %2334 = vmatprep.subr.mxu0 0.0
    %2335 = vmatpush1.msra.mxu0 0.0
    %2336 = vmatprep.subr.mxu0 0.0
    %2337 = vmatpush1.msra.mxu0 0.0
    %2338 = vmatprep.subr.mxu0 0.0
    %2339 = vmatpush1.msra.mxu0 0.0
    %2340 = vmatprep.subr.mxu0 0.0
    %2341 = vmatpush1.msra.mxu0 0.0
    %2342 = vmatprep.subr.mxu0 0.0
    %2343 = vmatpush1.msra.mxu0 0.0
    %2344 = vmatprep.subr.mxu0 0.0
    %2345 = vmatpush1.msra.mxu0 0.0
    %2346 = vmatprep.subr.mxu0 0.0
    %2347 = vmatpush1.msra.mxu0 0.0
    %2348 = vmatprep.subr.mxu0 0.0
    %2349 = vmatpush1.msra.mxu0 0.0
    %2350 = vmatprep.subr.mxu0 0.0
    %2351 = vmatpush1.msra.mxu0 0.0
    %2352 = vmatprep.subr.mxu0 0.0
    %2353 = vmatpush1.msra.mxu0 0.0
    %2354 = vmatprep.subr.mxu0 0.0
    %2355 = vmatpush1.msra.mxu0 0.0
    %2356 = vmatprep.mubr.f32.mxu0 0.0
    %2357 = vmatmul.mubr.f32.gmra.mrb[0].mxu0 %v2172
    %v2358 = vpop.f32.mrb[0].mxu0
    %v2359 = vadd.f32 %v176, %v2358
    %v2360 = vpop.f32.mrb[0].mxu0
    %2361 = vdwg.mxu0
    %v2362 = vld [vmem:[#allocation9] sm:$0xff]
    %v2363 = vld [vmem:[#allocation9 + $0x8] sm:$0xff]
    %v2364 = vld [vmem:[#allocation9 + $0x10] sm:$0xff]
    %v2365 = vld [vmem:[#allocation9 + $0x18] sm:$0xff]
    %v2366 = vld [vmem:[#allocation9 + $0x20] sm:$0xff]
    %v2367 = vld [vmem:[#allocation9 + $0x28] sm:$0xff]
    %v2368 = vld [vmem:[#allocation9 + $0x30] sm:$0xff]
    %v2369 = vld [vmem:[#allocation9 + $0x38] sm:$0xff]
    %v2370 = vld [vmem:[#allocation9 + $0x40] sm:$0xff]
    %v2371 = vld [vmem:[#allocation9 + $0x48] sm:$0xff]
    %v2372 = vld [vmem:[#allocation9 + $0x50] sm:$0xff]
    %v2373 = vld [vmem:[#allocation9 + $0x58] sm:$0xff]
    %v2374 = vld [vmem:[#allocation9 + $0x60] sm:$0xff]
    %v2375 = vld [vmem:[#allocation9 + $0x68] sm:$0xff]
    %v2376 = vld [vmem:[#allocation9 + $0x70] sm:$0xff]
    %v2377 = vld [vmem:[#allocation9 + $0x78] sm:$0xff]
    %v2378 = vld [vmem:[#allocation9 + $0x80] sm:$0xff]
    %v2379 = vld [vmem:[#allocation9 + $0x88] sm:$0xff]
    %v2380 = vld [vmem:[#allocation9 + $0x90] sm:$0xff]
    %v2381 = vld [vmem:[#allocation9 + $0x98] sm:$0xff]
    %v2382 = vld [vmem:[#allocation9 + $0xa0] sm:$0xff]
    %v2383 = vld [vmem:[#allocation9 + $0xa8] sm:$0xff]
    %v2384 = vld [vmem:[#allocation9 + $0xb0] sm:$0xff]
    %v2385 = vld [vmem:[#allocation9 + $0xb8] sm:$0xff]
    %v2386 = vld [vmem:[#allocation9 + $0xc0] sm:$0xff]
    %v2387 = vld [vmem:[#allocation9 + $0xc8] sm:$0xff]
    %v2388 = vld [vmem:[#allocation9 + $0xd0] sm:$0xff]
    %v2389 = vld [vmem:[#allocation9 + $0xd8] sm:$0xff]
    %v2390 = vld [vmem:[#allocation9 + $0xe0] sm:$0xff]
    %v2391 = vld [vmem:[#allocation9 + $0xe8] sm:$0xff]
    %v2392 = vld [vmem:[#allocation9 + $0xf0] sm:$0xff]
    %v2393 = vld [vmem:[#allocation9 + $0xf8] sm:$0xff]
    %v2394 = vld [vmem:[#allocation9 + $0x100] sm:$0xff]
    %v2395 = vld [vmem:[#allocation9 + $0x108] sm:$0xff]
    %v2396 = vld [vmem:[#allocation9 + $0x110] sm:$0xff]
    %v2397 = vld [vmem:[#allocation9 + $0x118] sm:$0xff]
    %v2398 = vld [vmem:[#allocation9 + $0x120] sm:$0xff]
    %v2399 = vld [vmem:[#allocation9 + $0x128] sm:$0xff]
    %v2400 = vld [vmem:[#allocation9 + $0x130] sm:$0xff]
    %v2401 = vld [vmem:[#allocation9 + $0x138] sm:$0xff]
    %v2402 = vld [vmem:[#allocation9 + $0x140] sm:$0xff]
    %v2403 = vld [vmem:[#allocation9 + $0x148] sm:$0xff]
    %v2404 = vld [vmem:[#allocation9 + $0x150] sm:$0xff]
    %v2405 = vld [vmem:[#allocation9 + $0x158] sm:$0xff]
    %v2406 = vld [vmem:[#allocation9 + $0x160] sm:$0xff]
    %v2407 = vld [vmem:[#allocation9 + $0x168] sm:$0xff]
    %v2408 = vld [vmem:[#allocation9 + $0x170] sm:$0xff]
    %v2409 = vld [vmem:[#allocation9 + $0x178] sm:$0xff]
    %2410 = vmatprep.subr.mxu0 %v2363
    %2411 = vmatpush1.msra.mxu0 %v2362
    %2412 = vmatprep.subr.mxu0 %v2366
    %2413 = vmatpush1.msra.mxu0 %v2365
    %2414 = vmatprep.subr.mxu0 %v2369
    %2415 = vmatpush1.msra.mxu0 %v2368
    %2416 = vmatprep.subr.mxu0 %v2372
    %2417 = vmatpush1.msra.mxu0 %v2371
    %2418 = vmatprep.subr.mxu0 %v2375
    %2419 = vmatpush1.msra.mxu0 %v2374
    %2420 = vmatprep.subr.mxu0 %v2378
    %2421 = vmatpush1.msra.mxu0 %v2377
    %2422 = vmatprep.subr.mxu0 %v2381
    %2423 = vmatpush1.msra.mxu0 %v2380
    %2424 = vmatprep.subr.mxu0 %v2384
    %2425 = vmatpush1.msra.mxu0 %v2383
    %2426 = vmatprep.subr.mxu0 %v2387
    %2427 = vmatpush1.msra.mxu0 %v2386
    %2428 = vmatprep.subr.mxu0 %v2390
    %2429 = vmatpush1.msra.mxu0 %v2389
    %2430 = vmatprep.subr.mxu0 %v2393
    %2431 = vmatpush1.msra.mxu0 %v2392
    %2432 = vmatprep.subr.mxu0 %v2396
    %2433 = vmatpush1.msra.mxu0 %v2395
    %2434 = vmatprep.subr.mxu0 %v2399
    %2435 = vmatpush1.msra.mxu0 %v2398
    %2436 = vmatprep.subr.mxu0 %v2402
    %2437 = vmatpush1.msra.mxu0 %v2401
    %2438 = vmatprep.subr.mxu0 %v2405
    %2439 = vmatpush1.msra.mxu0 %v2404
    %2440 = vmatprep.subr.mxu0 %v2408
    %2441 = vmatpush1.msra.mxu0 %v2407
    %2442 = vmatprep.subr.mxu0 0.0
    %2443 = vmatpush1.msra.mxu0 0.0
    %2444 = vmatprep.subr.mxu0 0.0
    %2445 = vmatpush1.msra.mxu0 0.0
    %2446 = vmatprep.subr.mxu0 0.0
    %2447 = vmatpush1.msra.mxu0 0.0
    %2448 = vmatprep.subr.mxu0 0.0
    %2449 = vmatpush1.msra.mxu0 0.0
    %2450 = vmatprep.subr.mxu0 0.0
    %2451 = vmatpush1.msra.mxu0 0.0
    %2452 = vmatprep.subr.mxu0 0.0
    %2453 = vmatpush1.msra.mxu0 0.0
    %2454 = vmatprep.subr.mxu0 0.0
    %2455 = vmatpush1.msra.mxu0 0.0
    %2456 = vmatprep.subr.mxu0 0.0
    %2457 = vmatpush1.msra.mxu0 0.0
    %2458 = vmatprep.subr.mxu0 0.0
    %2459 = vmatpush1.msra.mxu0 0.0
    %2460 = vmatprep.subr.mxu0 0.0
    %2461 = vmatpush1.msra.mxu0 0.0
    %2462 = vmatprep.subr.mxu0 0.0
    %2463 = vmatpush1.msra.mxu0 0.0
    %2464 = vmatprep.subr.mxu0 0.0
    %2465 = vmatpush1.msra.mxu0 0.0
    %2466 = vmatprep.subr.mxu0 0.0
    %2467 = vmatpush1.msra.mxu0 0.0
    %2468 = vmatprep.subr.mxu0 0.0
    %2469 = vmatpush1.msra.mxu0 0.0
    %2470 = vmatprep.subr.mxu0 0.0
    %2471 = vmatpush1.msra.mxu0 0.0
    %2472 = vmatprep.subr.mxu0 0.0
    %2473 = vmatpush1.msra.mxu0 0.0
    %2474 = vmatprep.mubr.f32.mxu0 0.0
    %2475 = vmatmul.mubr.f32.gmra.mrb[0].mxu0 %v2065
    %v2476 = vpop.f32.mrb[0].mxu0
    %v2477 = vadd.f32 %v373, %v2476
    %v2478 = vpop.f32.mrb[0].mxu0
    %v2479 = vadd.f32 %v377, %v2478
    %2480 = vdwg.mxu0
    %2481 = vmatprep.subr.mxu0 0.0
    %2482 = vmatpush1.msra.mxu0 %v2364
    %2483 = vmatprep.subr.mxu0 0.0
    %2484 = vmatpush1.msra.mxu0 %v2367
    %2485 = vmatprep.subr.mxu0 0.0
    %2486 = vmatpush1.msra.mxu0 %v2370
    %2487 = vmatprep.subr.mxu0 0.0
    %2488 = vmatpush1.msra.mxu0 %v2373
    %2489 = vmatprep.subr.mxu0 0.0
    %2490 = vmatpush1.msra.mxu0 %v2376
    %2491 = vmatprep.subr.mxu0 0.0
    %2492 = vmatpush1.msra.mxu0 %v2379
    %2493 = vmatprep.subr.mxu0 0.0
    %2494 = vmatpush1.msra.mxu0 %v2382
    %2495 = vmatprep.subr.mxu0 0.0
    %2496 = vmatpush1.msra.mxu0 %v2385
    %2497 = vmatprep.subr.mxu0 0.0
    %2498 = vmatpush1.msra.mxu0 %v2388
    %2499 = vmatprep.subr.mxu0 0.0
    %2500 = vmatpush1.msra.mxu0 %v2391
    %2501 = vmatprep.subr.mxu0 0.0
    %2502 = vmatpush1.msra.mxu0 %v2394
    %2503 = vmatprep.subr.mxu0 0.0
    %2504 = vmatpush1.msra.mxu0 %v2397
    %2505 = vmatprep.subr.mxu0 0.0
    %2506 = vmatpush1.msra.mxu0 %v2400
    %2507 = vmatprep.subr.mxu0 0.0
    %2508 = vmatpush1.msra.mxu0 %v2403
    %2509 = vmatprep.subr.mxu0 0.0
    %2510 = vmatpush1.msra.mxu0 %v2406
    %2511 = vmatprep.subr.mxu0 0.0
    %2512 = vmatpush1.msra.mxu0 %v2409
    %2513 = vmatprep.subr.mxu0 0.0
    %2514 = vmatpush1.msra.mxu0 0.0
    %2515 = vmatprep.subr.mxu0 0.0
    %2516 = vmatpush1.msra.mxu0 0.0
    %2517 = vmatprep.subr.mxu0 0.0
    %2518 = vmatpush1.msra.mxu0 0.0
    %2519 = vmatprep.subr.mxu0 0.0
    %2520 = vmatpush1.msra.mxu0 0.0
    %2521 = vmatprep.subr.mxu0 0.0
    %2522 = vmatpush1.msra.mxu0 0.0
    %2523 = vmatprep.subr.mxu0 0.0
    %2524 = vmatpush1.msra.mxu0 0.0
    %2525 = vmatprep.subr.mxu0 0.0
    %2526 = vmatpush1.msra.mxu0 0.0
    %2527 = vmatprep.subr.mxu0 0.0
    %2528 = vmatpush1.msra.mxu0 0.0
    %2529 = vmatprep.subr.mxu0 0.0
    %2530 = vmatpush1.msra.mxu0 0.0
    %2531 = vmatprep.subr.mxu0 0.0
    %2532 = vmatpush1.msra.mxu0 0.0
    %2533 = vmatprep.subr.mxu0 0.0
    %2534 = vmatpush1.msra.mxu0 0.0
    %2535 = vmatprep.subr.mxu0 0.0
    %2536 = vmatpush1.msra.mxu0 0.0
    %2537 = vmatprep.subr.mxu0 0.0
    %2538 = vmatpush1.msra.mxu0 0.0
    %2539 = vmatprep.subr.mxu0 0.0
    %2540 = vmatpush1.msra.mxu0 0.0
    %2541 = vmatprep.subr.mxu0 0.0
    %2542 = vmatpush1.msra.mxu0 0.0
    %2543 = vmatprep.subr.mxu0 0.0
    %2544 = vmatpush1.msra.mxu0 0.0
    %2545 = vmatprep.mubr.f32.mxu0 0.0
    %2546 = vmatmul.mubr.f32.gmra.mrb[0].mxu0 %v2065
    %v2547 = vpop.f32.mrb[0].mxu0
    %v2548 = vadd.f32 %v381, %v2547
    %v2549 = vpop.f32.mrb[0].mxu0
    %2550 = vdwg.mxu0
    %v2551 = vadd.f32 %v2288, %v2477
    %v2552 = vxor.u32 %v2551, 2147483648
    %v2553 = vmul.f32 %v2552, 1.442695
    %v2554 = vpow.pop %v2553
    %v2555 = vadd.f32 %v2554, 1.0
    %v2556 = vrcp.pop %v2555
    %v2557 = vmul.f32 1.0, %v2556
    %v2558 = vadd.f32 %v2290, %v2479
    %v2559 = vxor.u32 %v2558, 2147483648
    %v2560 = vmul.f32 %v2559, 1.442695
    %v2561 = vpow.pop %v2560
    %v2562 = vadd.f32 %v2561, 1.0
    %v2563 = vrcp.pop %v2562
    %v2564 = vmul.f32 1.0, %v2563
    %v2565 = vmul.f32 %v2557, %v2548
    %v2566 = vadd.f32 %v2359, %v2565
    %v2567 = vtanh.pop %v2566
    %v2568 = vsub.f32 1.0, %v2564
    %v2569 = vmul.f32 %v2568, %v2567
    %v2570 = vmul.f32 %v2564, %v2065
    %v2571 = vadd.f32 %v2569, %v2570
    %v2572 = vld [vmem:[#allocation10] sm:$0xff]
    %v2573 = vld [vmem:[#allocation10 + $0x8] sm:$0xff]
    %v2574 = vld [vmem:[#allocation10 + $0x10] sm:$0xff]
    %v2575 = vld [vmem:[#allocation10 + $0x18] sm:$0xff]
    %v2576 = vld [vmem:[#allocation10 + $0x20] sm:$0xff]
    %v2577 = vld [vmem:[#allocation10 + $0x28] sm:$0xff]
    %v2578 = vld [vmem:[#allocation10 + $0x30] sm:$0xff]
    %v2579 = vld [vmem:[#allocation10 + $0x38] sm:$0xff]
    %v2580 = vld [vmem:[#allocation10 + $0x40] sm:$0xff]
    %v2581 = vld [vmem:[#allocation10 + $0x48] sm:$0xff]
    %v2582 = vld [vmem:[#allocation10 + $0x50] sm:$0xff]
    %v2583 = vld [vmem:[#allocation10 + $0x58] sm:$0xff]
    %v2584 = vld [vmem:[#allocation10 + $0x60] sm:$0xff]
    %v2585 = vld [vmem:[#allocation10 + $0x68] sm:$0xff]
    %v2586 = vld [vmem:[#allocation10 + $0x70] sm:$0xff]
    %v2587 = vld [vmem:[#allocation10 + $0x78] sm:$0xff]
    %2588 = vmatprep.subr.mxu0 0.0
    %2589 = vmatpush1.msra.mxu0 %v2572
    %2590 = vmatprep.subr.mxu0 0.0
    %2591 = vmatpush1.msra.mxu0 %v2573
    %2592 = vmatprep.subr.mxu0 0.0
    %2593 = vmatpush1.msra.mxu0 %v2574
    %2594 = vmatprep.subr.mxu0 0.0
    %2595 = vmatpush1.msra.mxu0 %v2575
    %2596 = vmatprep.subr.mxu0 0.0
    %2597 = vmatpush1.msra.mxu0 %v2576
    %2598 = vmatprep.subr.mxu0 0.0
    %2599 = vmatpush1.msra.mxu0 %v2577
    %2600 = vmatprep.subr.mxu0 0.0
    %2601 = vmatpush1.msra.mxu0 %v2578
    %2602 = vmatprep.subr.mxu0 0.0
    %2603 = vmatpush1.msra.mxu0 %v2579
    %2604 = vmatprep.subr.mxu0 0.0
    %2605 = vmatpush1.msra.mxu0 %v2580
    %2606 = vmatprep.subr.mxu0 0.0
    %2607 = vmatpush1.msra.mxu0 %v2581
    %2608 = vmatprep.subr.mxu0 0.0
    %2609 = vmatpush1.msra.mxu0 %v2582
    %2610 = vmatprep.subr.mxu0 0.0
    %2611 = vmatpush1.msra.mxu0 %v2583
    %2612 = vmatprep.subr.mxu0 0.0
    %2613 = vmatpush1.msra.mxu0 %v2584
    %2614 = vmatprep.subr.mxu0 0.0
    %2615 = vmatpush1.msra.mxu0 %v2585
    %2616 = vmatprep.subr.mxu0 0.0
    %2617 = vmatpush1.msra.mxu0 %v2586
    %2618 = vmatprep.subr.mxu0 0.0
    %2619 = vmatpush1.msra.mxu0 %v2587
    %2620 = vmatprep.subr.mxu0 0.0
    %2621 = vmatpush1.msra.mxu0 0.0
    %2622 = vmatprep.subr.mxu0 0.0
    %2623 = vmatpush1.msra.mxu0 0.0
    %2624 = vmatprep.subr.mxu0 0.0
    %2625 = vmatpush1.msra.mxu0 0.0
    %2626 = vmatprep.subr.mxu0 0.0
    %2627 = vmatpush1.msra.mxu0 0.0
    %2628 = vmatprep.subr.mxu0 0.0
    %2629 = vmatpush1.msra.mxu0 0.0
    %2630 = vmatprep.subr.mxu0 0.0
    %2631 = vmatpush1.msra.mxu0 0.0
    %2632 = vmatprep.subr.mxu0 0.0
    %2633 = vmatpush1.msra.mxu0 0.0
    %2634 = vmatprep.subr.mxu0 0.0
    %2635 = vmatpush1.msra.mxu0 0.0
    %2636 = vmatprep.subr.mxu0 0.0
    %2637 = vmatpush1.msra.mxu0 0.0
    %2638 = vmatprep.subr.mxu0 0.0
    %2639 = vmatpush1.msra.mxu0 0.0
    %2640 = vmatprep.subr.mxu0 0.0
    %2641 = vmatpush1.msra.mxu0 0.0
    %2642 = vmatprep.subr.mxu0 0.0
    %2643 = vmatpush1.msra.mxu0 0.0
    %2644 = vmatprep.subr.mxu0 0.0
    %2645 = vmatpush1.msra.mxu0 0.0
    %2646 = vmatprep.subr.mxu0 0.0
    %2647 = vmatpush1.msra.mxu0 0.0
    %2648 = vmatprep.subr.mxu0 0.0
    %2649 = vmatpush1.msra.mxu0 0.0
    %2650 = vmatprep.subr.mxu0 0.0
    %2651 = vmatpush1.msra.mxu0 0.0
    %2652 = vmatprep.mubr.f32.mxu0 0.0
    %2653 = vmatmul.mubr.f32.gmra.mrb[0].mxu0 %v2571
    %v2654 = vpop.f32.mrb[0].mxu0
    %v2655 = vadd.f32 %v106, %v2654
    %v2656 = vpop.f32.mrb[0].mxu0
    %2657 = vdwg.mxu0
    %v2658 = vsel %vm633, %v2655, -inf
    %2659 = vmax.xlane.f32.xlu0 %v2658
    %v2660 = vpop.xlane.xlu0 %2659
    %v2661 = vsub.f32 %v2655, %v2660
    %v2662 = vmul.f32 %v2661, 1.442695
    %v2663 = vpow.pop %v2662
    %v2664 = vsel %vm633, %v2663, 0.0
    %2665 = vadd.xlane.f32.xlu0 %v2664
    %v2666 = vpop.xlane.xlu0 %2665
    %v2667 = vlog2.pop %v2666
    %v2668 = vmul.f32 %v2667, 0.6931472
    %v2669 = vsub.f32 %v2661, %v2668
    %2670 = vst [vmem:[#allocation12 + $0x4] sm:$0x1] %v2669
    %s2671 = sld [smem:[#allocation2 + $0x5]]
    %p2672 = scmp.gt.s32.totalorder %s2671, 0
    %s2673 = scalar_select %p2672, %s2671, 0
    %p2674 = scmp.lt.s32.totalorder %s2673, 127
    %s2675 = scalar_select %p2674, %s2673, 127
    %s2676 = scalar_lea.vmem [#allocation6], %s2675
    %v2677 = vld [vmem:[%s2676] sm:$0x1]
    %v2678 = vmax.f32 %v2677, 0.0
    %v2679 = vld [vmem:[#allocation7] sm:$0xff]
    %v2680 = vld [vmem:[#allocation7 + $0x8] sm:$0xff]
    %v2681 = vld [vmem:[#allocation7 + $0x10] sm:$0xff]
    %v2682 = vld [vmem:[#allocation7 + $0x18] sm:$0xff]
    %v2683 = vld [vmem:[#allocation7 + $0x20] sm:$0xff]
    %v2684 = vld [vmem:[#allocation7 + $0x28] sm:$0xff]
    %v2685 = vld [vmem:[#allocation7 + $0x30] sm:$0xff]
    %v2686 = vld [vmem:[#allocation7 + $0x38] sm:$0xff]
    %v2687 = vld [vmem:[#allocation7 + $0x40] sm:$0xff]
    %v2688 = vld [vmem:[#allocation7 + $0x48] sm:$0xff]
    %v2689 = vld [vmem:[#allocation7 + $0x50] sm:$0xff]
    %v2690 = vld [vmem:[#allocation7 + $0x58] sm:$0xff]
    %v2691 = vld [vmem:[#allocation7 + $0x60] sm:$0xff]
    %v2692 = vld [vmem:[#allocation7 + $0x68] sm:$0xff]
    %v2693 = vld [vmem:[#allocation7 + $0x70] sm:$0xff]
    %v2694 = vld [vmem:[#allocation7 + $0x78] sm:$0xff]
    %v2695 = vld [vmem:[#allocation7 + $0x80] sm:$0xff]
    %v2696 = vld [vmem:[#allocation7 + $0x88] sm:$0xff]
    %v2697 = vld [vmem:[#allocation7 + $0x90] sm:$0xff]
    %v2698 = vld [vmem:[#allocation7 + $0x98] sm:$0xff]
    %v2699 = vld [vmem:[#allocation7 + $0xa0] sm:$0xff]
    %v2700 = vld [vmem:[#allocation7 + $0xa8] sm:$0xff]
    %v2701 = vld [vmem:[#allocation7 + $0xb0] sm:$0xff]
    %v2702 = vld [vmem:[#allocation7 + $0xb8] sm:$0xff]
    %v2703 = vld [vmem:[#allocation7 + $0xc0] sm:$0xff]
    %v2704 = vld [vmem:[#allocation7 + $0xc8] sm:$0xff]
    %v2705 = vld [vmem:[#allocation7 + $0xd0] sm:$0xff]
    %v2706 = vld [vmem:[#allocation7 + $0xd8] sm:$0xff]
    %v2707 = vld [vmem:[#allocation7 + $0xe0] sm:$0xff]
    %v2708 = vld [vmem:[#allocation7 + $0xe8] sm:$0xff]
    %v2709 = vld [vmem:[#allocation7 + $0xf0] sm:$0xff]
    %v2710 = vld [vmem:[#allocation7 + $0xf8] sm:$0xff]
    %v2711 = vld [vmem:[#allocation7 + $0x100] sm:$0xff]
    %v2712 = vld [vmem:[#allocation7 + $0x108] sm:$0xff]
    %v2713 = vld [vmem:[#allocation7 + $0x110] sm:$0xff]
    %v2714 = vld [vmem:[#allocation7 + $0x118] sm:$0xff]
    %v2715 = vld [vmem:[#allocation7 + $0x120] sm:$0xff]
    %v2716 = vld [vmem:[#allocation7 + $0x128] sm:$0xff]
    %v2717 = vld [vmem:[#allocation7 + $0x130] sm:$0xff]
    %v2718 = vld [vmem:[#allocation7 + $0x138] sm:$0xff]
    %v2719 = vld [vmem:[#allocation7 + $0x140] sm:$0xff]
    %v2720 = vld [vmem:[#allocation7 + $0x148] sm:$0xff]
    %v2721 = vld [vmem:[#allocation7 + $0x150] sm:$0xff]
    %v2722 = vld [vmem:[#allocation7 + $0x158] sm:$0xff]
    %v2723 = vld [vmem:[#allocation7 + $0x160] sm:$0xff]
    %v2724 = vld [vmem:[#allocation7 + $0x168] sm:$0xff]
    %v2725 = vld [vmem:[#allocation7 + $0x170] sm:$0xff]
    %v2726 = vld [vmem:[#allocation7 + $0x178] sm:$0xff]
    %2727 = vmatprep.subr.mxu0 %v2680
    %2728 = vmatpush1.msra.mxu0 %v2679
    %2729 = vmatprep.subr.mxu0 %v2683
    %2730 = vmatpush1.msra.mxu0 %v2682
    %2731 = vmatprep.subr.mxu0 %v2686
    %2732 = vmatpush1.msra.mxu0 %v2685
    %2733 = vmatprep.subr.mxu0 %v2689
    %2734 = vmatpush1.msra.mxu0 %v2688
    %2735 = vmatprep.subr.mxu0 %v2692
    %2736 = vmatpush1.msra.mxu0 %v2691
    %2737 = vmatprep.subr.mxu0 %v2695
    %2738 = vmatpush1.msra.mxu0 %v2694
    %2739 = vmatprep.subr.mxu0 %v2698
    %2740 = vmatpush1.msra.mxu0 %v2697
    %2741 = vmatprep.subr.mxu0 %v2701
    %2742 = vmatpush1.msra.mxu0 %v2700
    %2743 = vmatprep.subr.mxu0 %v2704
    %2744 = vmatpush1.msra.mxu0 %v2703
    %2745 = vmatprep.subr.mxu0 %v2707
    %2746 = vmatpush1.msra.mxu0 %v2706
    %2747 = vmatprep.subr.mxu0 %v2710
    %2748 = vmatpush1.msra.mxu0 %v2709
    %2749 = vmatprep.subr.mxu0 %v2713
    %2750 = vmatpush1.msra.mxu0 %v2712
    %2751 = vmatprep.subr.mxu0 %v2716
    %2752 = vmatpush1.msra.mxu0 %v2715
    %2753 = vmatprep.subr.mxu0 %v2719
    %2754 = vmatpush1.msra.mxu0 %v2718
    %2755 = vmatprep.subr.mxu0 %v2722
    %2756 = vmatpush1.msra.mxu0 %v2721
    %2757 = vmatprep.subr.mxu0 %v2725
    %2758 = vmatpush1.msra.mxu0 %v2724
    %2759 = vmatprep.subr.mxu0 0.0
    %2760 = vmatpush1.msra.mxu0 0.0
    %2761 = vmatprep.subr.mxu0 0.0
    %2762 = vmatpush1.msra.mxu0 0.0
    %2763 = vmatprep.subr.mxu0 0.0
    %2764 = vmatpush1.msra.mxu0 0.0
    %2765 = vmatprep.subr.mxu0 0.0
    %2766 = vmatpush1.msra.mxu0 0.0
    %2767 = vmatprep.subr.mxu0 0.0
    %2768 = vmatpush1.msra.mxu0 0.0
    %2769 = vmatprep.subr.mxu0 0.0
    %2770 = vmatpush1.msra.mxu0 0.0
    %2771 = vmatprep.subr.mxu0 0.0
    %2772 = vmatpush1.msra.mxu0 0.0
    %2773 = vmatprep.subr.mxu0 0.0
    %2774 = vmatpush1.msra.mxu0 0.0
    %2775 = vmatprep.subr.mxu0 0.0
    %2776 = vmatpush1.msra.mxu0 0.0
    %2777 = vmatprep.subr.mxu0 0.0
    %2778 = vmatpush1.msra.mxu0 0.0
    %2779 = vmatprep.subr.mxu0 0.0
    %2780 = vmatpush1.msra.mxu0 0.0
    %2781 = vmatprep.subr.mxu0 0.0
    %2782 = vmatpush1.msra.mxu0 0.0
    %2783 = vmatprep.subr.mxu0 0.0
    %2784 = vmatpush1.msra.mxu0 0.0
    %2785 = vmatprep.subr.mxu0 0.0
    %2786 = vmatpush1.msra.mxu0 0.0
    %2787 = vmatprep.subr.mxu0 0.0
    %2788 = vmatpush1.msra.mxu0 0.0
    %2789 = vmatprep.subr.mxu0 0.0
    %2790 = vmatpush1.msra.mxu0 0.0
    %2791 = vmatprep.mubr.f32.mxu0 0.0
    %2792 = vmatmul.mubr.f32.gmra.mrb[0].mxu0 %v2678
    %v2793 = vpop.f32.mrb[0].mxu0
    %v2794 = vadd.f32 %v168, %v2793
    %v2795 = vpop.f32.mrb[0].mxu0
    %v2796 = vadd.f32 %v172, %v2795
    %2797 = vdwg.mxu0
    %2798 = vmatprep.subr.mxu0 0.0
    %2799 = vmatpush1.msra.mxu0 %v2681
    %2800 = vmatprep.subr.mxu0 0.0
    %2801 = vmatpush1.msra.mxu0 %v2684
    %2802 = vmatprep.subr.mxu0 0.0
    %2803 = vmatpush1.msra.mxu0 %v2687
    %2804 = vmatprep.subr.mxu0 0.0
    %2805 = vmatpush1.msra.mxu0 %v2690
    %2806 = vmatprep.subr.mxu0 0.0
    %2807 = vmatpush1.msra.mxu0 %v2693
    %2808 = vmatprep.subr.mxu0 0.0
    %2809 = vmatpush1.msra.mxu0 %v2696
    %2810 = vmatprep.subr.mxu0 0.0
    %2811 = vmatpush1.msra.mxu0 %v2699
    %2812 = vmatprep.subr.mxu0 0.0
    %2813 = vmatpush1.msra.mxu0 %v2702
    %2814 = vmatprep.subr.mxu0 0.0
    %2815 = vmatpush1.msra.mxu0 %v2705
    %2816 = vmatprep.subr.mxu0 0.0
    %2817 = vmatpush1.msra.mxu0 %v2708
    %2818 = vmatprep.subr.mxu0 0.0
    %2819 = vmatpush1.msra.mxu0 %v2711
    %2820 = vmatprep.subr.mxu0 0.0
    %2821 = vmatpush1.msra.mxu0 %v2714
    %2822 = vmatprep.subr.mxu0 0.0
    %2823 = vmatpush1.msra.mxu0 %v2717
    %2824 = vmatprep.subr.mxu0 0.0
    %2825 = vmatpush1.msra.mxu0 %v2720
    %2826 = vmatprep.subr.mxu0 0.0
    %2827 = vmatpush1.msra.mxu0 %v2723
    %2828 = vmatprep.subr.mxu0 0.0
    %2829 = vmatpush1.msra.mxu0 %v2726
    %2830 = vmatprep.subr.mxu0 0.0
    %2831 = vmatpush1.msra.mxu0 0.0
    %2832 = vmatprep.subr.mxu0 0.0
    %2833 = vmatpush1.msra.mxu0 0.0
    %2834 = vmatprep.subr.mxu0 0.0
    %2835 = vmatpush1.msra.mxu0 0.0
    %2836 = vmatprep.subr.mxu0 0.0
    %2837 = vmatpush1.msra.mxu0 0.0
    %2838 = vmatprep.subr.mxu0 0.0
    %2839 = vmatpush1.msra.mxu0 0.0
    %2840 = vmatprep.subr.mxu0 0.0
    %2841 = vmatpush1.msra.mxu0 0.0
    %2842 = vmatprep.subr.mxu0 0.0
    %2843 = vmatpush1.msra.mxu0 0.0
    %2844 = vmatprep.subr.mxu0 0.0
    %2845 = vmatpush1.msra.mxu0 0.0
    %2846 = vmatprep.subr.mxu0 0.0
    %2847 = vmatpush1.msra.mxu0 0.0
    %2848 = vmatprep.subr.mxu0 0.0
    %2849 = vmatpush1.msra.mxu0 0.0
    %2850 = vmatprep.subr.mxu0 0.0
    %2851 = vmatpush1.msra.mxu0 0.0
    %2852 = vmatprep.subr.mxu0 0.0
    %2853 = vmatpush1.msra.mxu0 0.0
    %2854 = vmatprep.subr.mxu0 0.0
    %2855 = vmatpush1.msra.mxu0 0.0
    %2856 = vmatprep.subr.mxu0 0.0
    %2857 = vmatpush1.msra.mxu0 0.0
    %2858 = vmatprep.subr.mxu0 0.0
    %2859 = vmatpush1.msra.mxu0 0.0
    %2860 = vmatprep.subr.mxu0 0.0
    %2861 = vmatpush1.msra.mxu0 0.0
    %2862 = vmatprep.mubr.f32.mxu0 0.0
    %2863 = vmatmul.mubr.f32.gmra.mrb[0].mxu0 %v2678
    %v2864 = vpop.f32.mrb[0].mxu0
    %v2865 = vadd.f32 %v176, %v2864
    %v2866 = vpop.f32.mrb[0].mxu0
    %2867 = vdwg.mxu0
    %v2868 = vld [vmem:[#allocation9] sm:$0xff]
    %v2869 = vld [vmem:[#allocation9 + $0x8] sm:$0xff]
    %v2870 = vld [vmem:[#allocation9 + $0x10] sm:$0xff]
    %v2871 = vld [vmem:[#allocation9 + $0x18] sm:$0xff]
    %v2872 = vld [vmem:[#allocation9 + $0x20] sm:$0xff]
    %v2873 = vld [vmem:[#allocation9 + $0x28] sm:$0xff]
    %v2874 = vld [vmem:[#allocation9 + $0x30] sm:$0xff]
    %v2875 = vld [vmem:[#allocation9 + $0x38] sm:$0xff]
    %v2876 = vld [vmem:[#allocation9 + $0x40] sm:$0xff]
    %v2877 = vld [vmem:[#allocation9 + $0x48] sm:$0xff]
    %v2878 = vld [vmem:[#allocation9 + $0x50] sm:$0xff]
    %v2879 = vld [vmem:[#allocation9 + $0x58] sm:$0xff]
    %v2880 = vld [vmem:[#allocation9 + $0x60] sm:$0xff]
    %v2881 = vld [vmem:[#allocation9 + $0x68] sm:$0xff]
    %v2882 = vld [vmem:[#allocation9 + $0x70] sm:$0xff]
    %v2883 = vld [vmem:[#allocation9 + $0x78] sm:$0xff]
    %v2884 = vld [vmem:[#allocation9 + $0x80] sm:$0xff]
    %v2885 = vld [vmem:[#allocation9 + $0x88] sm:$0xff]
    %v2886 = vld [vmem:[#allocation9 + $0x90] sm:$0xff]
    %v2887 = vld [vmem:[#allocation9 + $0x98] sm:$0xff]
    %v2888 = vld [vmem:[#allocation9 + $0xa0] sm:$0xff]
    %v2889 = vld [vmem:[#allocation9 + $0xa8] sm:$0xff]
    %v2890 = vld [vmem:[#allocation9 + $0xb0] sm:$0xff]
    %v2891 = vld [vmem:[#allocation9 + $0xb8] sm:$0xff]
    %v2892 = vld [vmem:[#allocation9 + $0xc0] sm:$0xff]
    %v2893 = vld [vmem:[#allocation9 + $0xc8] sm:$0xff]
    %v2894 = vld [vmem:[#allocation9 + $0xd0] sm:$0xff]
    %v2895 = vld [vmem:[#allocation9 + $0xd8] sm:$0xff]
    %v2896 = vld [vmem:[#allocation9 + $0xe0] sm:$0xff]
    %v2897 = vld [vmem:[#allocation9 + $0xe8] sm:$0xff]
    %v2898 = vld [vmem:[#allocation9 + $0xf0] sm:$0xff]
    %v2899 = vld [vmem:[#allocation9 + $0xf8] sm:$0xff]
    %v2900 = vld [vmem:[#allocation9 + $0x100] sm:$0xff]
    %v2901 = vld [vmem:[#allocation9 + $0x108] sm:$0xff]
    %v2902 = vld [vmem:[#allocation9 + $0x110] sm:$0xff]
    %v2903 = vld [vmem:[#allocation9 + $0x118] sm:$0xff]
    %v2904 = vld [vmem:[#allocation9 + $0x120] sm:$0xff]
    %v2905 = vld [vmem:[#allocation9 + $0x128] sm:$0xff]
    %v2906 = vld [vmem:[#allocation9 + $0x130] sm:$0xff]
    %v2907 = vld [vmem:[#allocation9 + $0x138] sm:$0xff]
    %v2908 = vld [vmem:[#allocation9 + $0x140] sm:$0xff]
    %v2909 = vld [vmem:[#allocation9 + $0x148] sm:$0xff]
    %v2910 = vld [vmem:[#allocation9 + $0x150] sm:$0xff]
    %v2911 = vld [vmem:[#allocation9 + $0x158] sm:$0xff]
    %v2912 = vld [vmem:[#allocation9 + $0x160] sm:$0xff]
    %v2913 = vld [vmem:[#allocation9 + $0x168] sm:$0xff]
    %v2914 = vld [vmem:[#allocation9 + $0x170] sm:$0xff]
    %v2915 = vld [vmem:[#allocation9 + $0x178] sm:$0xff]
    %2916 = vmatprep.subr.mxu0 %v2869
    %2917 = vmatpush1.msra.mxu0 %v2868
    %2918 = vmatprep.subr.mxu0 %v2872
    %2919 = vmatpush1.msra.mxu0 %v2871
    %2920 = vmatprep.subr.mxu0 %v2875
    %2921 = vmatpush1.msra.mxu0 %v2874
    %2922 = vmatprep.subr.mxu0 %v2878
    %2923 = vmatpush1.msra.mxu0 %v2877
    %2924 = vmatprep.subr.mxu0 %v2881
    %2925 = vmatpush1.msra.mxu0 %v2880
    %2926 = vmatprep.subr.mxu0 %v2884
    %2927 = vmatpush1.msra.mxu0 %v2883
    %2928 = vmatprep.subr.mxu0 %v2887
    %2929 = vmatpush1.msra.mxu0 %v2886
    %2930 = vmatprep.subr.mxu0 %v2890
    %2931 = vmatpush1.msra.mxu0 %v2889
    %2932 = vmatprep.subr.mxu0 %v2893
    %2933 = vmatpush1.msra.mxu0 %v2892
    %2934 = vmatprep.subr.mxu0 %v2896
    %2935 = vmatpush1.msra.mxu0 %v2895
    %2936 = vmatprep.subr.mxu0 %v2899
    %2937 = vmatpush1.msra.mxu0 %v2898
    %2938 = vmatprep.subr.mxu0 %v2902
    %2939 = vmatpush1.msra.mxu0 %v2901
    %2940 = vmatprep.subr.mxu0 %v2905
    %2941 = vmatpush1.msra.mxu0 %v2904
    %2942 = vmatprep.subr.mxu0 %v2908
    %2943 = vmatpush1.msra.mxu0 %v2907
    %2944 = vmatprep.subr.mxu0 %v2911
    %2945 = vmatpush1.msra.mxu0 %v2910
    %2946 = vmatprep.subr.mxu0 %v2914
    %2947 = vmatpush1.msra.mxu0 %v2913
    %2948 = vmatprep.subr.mxu0 0.0
    %2949 = vmatpush1.msra.mxu0 0.0
    %2950 = vmatprep.subr.mxu0 0.0
    %2951 = vmatpush1.msra.mxu0 0.0
    %2952 = vmatprep.subr.mxu0 0.0
    %2953 = vmatpush1.msra.mxu0 0.0
    %2954 = vmatprep.subr.mxu0 0.0
    %2955 = vmatpush1.msra.mxu0 0.0
    %2956 = vmatprep.subr.mxu0 0.0
    %2957 = vmatpush1.msra.mxu0 0.0
    %2958 = vmatprep.subr.mxu0 0.0
    %2959 = vmatpush1.msra.mxu0 0.0
    %2960 = vmatprep.subr.mxu0 0.0
    %2961 = vmatpush1.msra.mxu0 0.0
    %2962 = vmatprep.subr.mxu0 0.0
    %2963 = vmatpush1.msra.mxu0 0.0
    %2964 = vmatprep.subr.mxu0 0.0
    %2965 = vmatpush1.msra.mxu0 0.0
    %2966 = vmatprep.subr.mxu0 0.0
    %2967 = vmatpush1.msra.mxu0 0.0
    %2968 = vmatprep.subr.mxu0 0.0
    %2969 = vmatpush1.msra.mxu0 0.0
    %2970 = vmatprep.subr.mxu0 0.0
    %2971 = vmatpush1.msra.mxu0 0.0
    %2972 = vmatprep.subr.mxu0 0.0
    %2973 = vmatpush1.msra.mxu0 0.0
    %2974 = vmatprep.subr.mxu0 0.0
    %2975 = vmatpush1.msra.mxu0 0.0
    %2976 = vmatprep.subr.mxu0 0.0
    %2977 = vmatpush1.msra.mxu0 0.0
    %2978 = vmatprep.subr.mxu0 0.0
    %2979 = vmatpush1.msra.mxu0 0.0
    %2980 = vmatprep.mubr.f32.mxu0 0.0
    %2981 = vmatmul.mubr.f32.gmra.mrb[0].mxu0 %v2571
    %v2982 = vpop.f32.mrb[0].mxu0
    %v2983 = vadd.f32 %v373, %v2982
    %v2984 = vpop.f32.mrb[0].mxu0
    %v2985 = vadd.f32 %v377, %v2984
    %2986 = vdwg.mxu0
    %2987 = vmatprep.subr.mxu0 0.0
    %2988 = vmatpush1.msra.mxu0 %v2870
    %2989 = vmatprep.subr.mxu0 0.0
    %2990 = vmatpush1.msra.mxu0 %v2873
    %2991 = vmatprep.subr.mxu0 0.0
    %2992 = vmatpush1.msra.mxu0 %v2876
    %2993 = vmatprep.subr.mxu0 0.0
    %2994 = vmatpush1.msra.mxu0 %v2879
    %2995 = vmatprep.subr.mxu0 0.0
    %2996 = vmatpush1.msra.mxu0 %v2882
    %2997 = vmatprep.subr.mxu0 0.0
    %2998 = vmatpush1.msra.mxu0 %v2885
    %2999 = vmatprep.subr.mxu0 0.0
    %3000 = vmatpush1.msra.mxu0 %v2888
    %3001 = vmatprep.subr.mxu0 0.0
    %3002 = vmatpush1.msra.mxu0 %v2891
    %3003 = vmatprep.subr.mxu0 0.0
    %3004 = vmatpush1.msra.mxu0 %v2894
    %3005 = vmatprep.subr.mxu0 0.0
    %3006 = vmatpush1.msra.mxu0 %v2897
    %3007 = vmatprep.subr.mxu0 0.0
    %3008 = vmatpush1.msra.mxu0 %v2900
    %3009 = vmatprep.subr.mxu0 0.0
    %3010 = vmatpush1.msra.mxu0 %v2903
    %3011 = vmatprep.subr.mxu0 0.0
    %3012 = vmatpush1.msra.mxu0 %v2906
    %3013 = vmatprep.subr.mxu0 0.0
    %3014 = vmatpush1.msra.mxu0 %v2909
    %3015 = vmatprep.subr.mxu0 0.0
    %3016 = vmatpush1.msra.mxu0 %v2912
    %3017 = vmatprep.subr.mxu0 0.0
    %3018 = vmatpush1.msra.mxu0 %v2915
    %3019 = vmatprep.subr.mxu0 0.0
    %3020 = vmatpush1.msra.mxu0 0.0
    %3021 = vmatprep.subr.mxu0 0.0
    %3022 = vmatpush1.msra.mxu0 0.0
    %3023 = vmatprep.subr.mxu0 0.0
    %3024 = vmatpush1.msra.mxu0 0.0
    %3025 = vmatprep.subr.mxu0 0.0
    %3026 = vmatpush1.msra.mxu0 0.0
    %3027 = vmatprep.subr.mxu0 0.0
    %3028 = vmatpush1.msra.mxu0 0.0
    %3029 = vmatprep.subr.mxu0 0.0
    %3030 = vmatpush1.msra.mxu0 0.0
    %3031 = vmatprep.subr.mxu0 0.0
    %3032 = vmatpush1.msra.mxu0 0.0
    %3033 = vmatprep.subr.mxu0 0.0
    %3034 = vmatpush1.msra.mxu0 0.0
    %3035 = vmatprep.subr.mxu0 0.0
    %3036 = vmatpush1.msra.mxu0 0.0
    %3037 = vmatprep.subr.mxu0 0.0
    %3038 = vmatpush1.msra.mxu0 0.0
    %3039 = vmatprep.subr.mxu0 0.0
    %3040 = vmatpush1.msra.mxu0 0.0
    %3041 = vmatprep.subr.mxu0 0.0
    %3042 = vmatpush1.msra.mxu0 0.0
    %3043 = vmatprep.subr.mxu0 0.0
    %3044 = vmatpush1.msra.mxu0 0.0
    %3045 = vmatprep.subr.mxu0 0.0
    %3046 = vmatpush1.msra.mxu0 0.0
    %3047 = vmatprep.subr.mxu0 0.0
    %3048 = vmatpush1.msra.mxu0 0.0
    %3049 = vmatprep.subr.mxu0 0.0
    %3050 = vmatpush1.msra.mxu0 0.0
    %3051 = vmatprep.mubr.f32.mxu0 0.0
    %3052 = vmatmul.mubr.f32.gmra.mrb[0].mxu0 %v2571
    %v3053 = vpop.f32.mrb[0].mxu0
    %v3054 = vadd.f32 %v381, %v3053
    %v3055 = vpop.f32.mrb[0].mxu0
    %3056 = vdwg.mxu0
    %v3057 = vadd.f32 %v2794, %v2983
    %v3058 = vxor.u32 %v3057, 2147483648
    %v3059 = vmul.f32 %v3058, 1.442695
    %v3060 = vpow.pop %v3059
    %v3061 = vadd.f32 %v3060, 1.0
    %v3062 = vrcp.pop %v3061
    %v3063 = vmul.f32 1.0, %v3062
    %v3064 = vadd.f32 %v2796, %v2985
    %v3065 = vxor.u32 %v3064, 2147483648
    %v3066 = vmul.f32 %v3065, 1.442695
    %v3067 = vpow.pop %v3066
    %v3068 = vadd.f32 %v3067, 1.0
    %v3069 = vrcp.pop %v3068
    %v3070 = vmul.f32 1.0, %v3069
    %v3071 = vmul.f32 %v3063, %v3054
    %v3072 = vadd.f32 %v2865, %v3071
    %v3073 = vtanh.pop %v3072
    %v3074 = vsub.f32 1.0, %v3070
    %v3075 = vmul.f32 %v3074, %v3073
    %v3076 = vmul.f32 %v3070, %v2571
    %v3077 = vadd.f32 %v3075, %v3076
    %v3078 = vld [vmem:[#allocation10] sm:$0xff]
    %v3079 = vld [vmem:[#allocation10 + $0x8] sm:$0xff]
    %v3080 = vld [vmem:[#allocation10 + $0x10] sm:$0xff]
    %v3081 = vld [vmem:[#allocation10 + $0x18] sm:$0xff]
    %v3082 = vld [vmem:[#allocation10 + $0x20] sm:$0xff]
    %v3083 = vld [vmem:[#allocation10 + $0x28] sm:$0xff]
    %v3084 = vld [vmem:[#allocation10 + $0x30] sm:$0xff]
    %v3085 = vld [vmem:[#allocation10 + $0x38] sm:$0xff]
    %v3086 = vld [vmem:[#allocation10 + $0x40] sm:$0xff]
    %v3087 = vld [vmem:[#allocation10 + $0x48] sm:$0xff]
    %v3088 = vld [vmem:[#allocation10 + $0x50] sm:$0xff]
    %v3089 = vld [vmem:[#allocation10 + $0x58] sm:$0xff]
    %v3090 = vld [vmem:[#allocation10 + $0x60] sm:$0xff]
    %v3091 = vld [vmem:[#allocation10 + $0x68] sm:$0xff]
    %v3092 = vld [vmem:[#allocation10 + $0x70] sm:$0xff]
    %v3093 = vld [vmem:[#allocation10 + $0x78] sm:$0xff]
    %3094 = vmatprep.subr.mxu0 0.0
    %3095 = vmatpush1.msra.mxu0 %v3078
    %3096 = vmatprep.subr.mxu0 0.0
    %3097 = vmatpush1.msra.mxu0 %v3079
    %3098 = vmatprep.subr.mxu0 0.0
    %3099 = vmatpush1.msra.mxu0 %v3080
    %3100 = vmatprep.subr.mxu0 0.0
    %3101 = vmatpush1.msra.mxu0 %v3081
    %3102 = vmatprep.subr.mxu0 0.0
    %3103 = vmatpush1.msra.mxu0 %v3082
    %3104 = vmatprep.subr.mxu0 0.0
    %3105 = vmatpush1.msra.mxu0 %v3083
    %3106 = vmatprep.subr.mxu0 0.0
    %3107 = vmatpush1.msra.mxu0 %v3084
    %3108 = vmatprep.subr.mxu0 0.0
    %3109 = vmatpush1.msra.mxu0 %v3085
    %3110 = vmatprep.subr.mxu0 0.0
    %3111 = vmatpush1.msra.mxu0 %v3086
    %3112 = vmatprep.subr.mxu0 0.0
    %3113 = vmatpush1.msra.mxu0 %v3087
    %3114 = vmatprep.subr.mxu0 0.0
    %3115 = vmatpush1.msra.mxu0 %v3088
    %3116 = vmatprep.subr.mxu0 0.0
    %3117 = vmatpush1.msra.mxu0 %v3089
    %3118 = vmatprep.subr.mxu0 0.0
    %3119 = vmatpush1.msra.mxu0 %v3090
    %3120 = vmatprep.subr.mxu0 0.0
    %3121 = vmatpush1.msra.mxu0 %v3091
    %3122 = vmatprep.subr.mxu0 0.0
    %3123 = vmatpush1.msra.mxu0 %v3092
    %3124 = vmatprep.subr.mxu0 0.0
    %3125 = vmatpush1.msra.mxu0 %v3093
    %3126 = vmatprep.subr.mxu0 0.0
    %3127 = vmatpush1.msra.mxu0 0.0
    %3128 = vmatprep.subr.mxu0 0.0
    %3129 = vmatpush1.msra.mxu0 0.0
    %3130 = vmatprep.subr.mxu0 0.0
    %3131 = vmatpush1.msra.mxu0 0.0
    %3132 = vmatprep.subr.mxu0 0.0
    %3133 = vmatpush1.msra.mxu0 0.0
    %3134 = vmatprep.subr.mxu0 0.0
    %3135 = vmatpush1.msra.mxu0 0.0
    %3136 = vmatprep.subr.mxu0 0.0
    %3137 = vmatpush1.msra.mxu0 0.0
    %3138 = vmatprep.subr.mxu0 0.0
    %3139 = vmatpush1.msra.mxu0 0.0
    %3140 = vmatprep.subr.mxu0 0.0
    %3141 = vmatpush1.msra.mxu0 0.0
    %3142 = vmatprep.subr.mxu0 0.0
    %3143 = vmatpush1.msra.mxu0 0.0
    %3144 = vmatprep.subr.mxu0 0.0
    %3145 = vmatpush1.msra.mxu0 0.0
    %3146 = vmatprep.subr.mxu0 0.0
    %3147 = vmatpush1.msra.mxu0 0.0
    %3148 = vmatprep.subr.mxu0 0.0
    %3149 = vmatpush1.msra.mxu0 0.0
    %3150 = vmatprep.subr.mxu0 0.0
    %3151 = vmatpush1.msra.mxu0 0.0
    %3152 = vmatprep.subr.mxu0 0.0
    %3153 = vmatpush1.msra.mxu0 0.0
    %3154 = vmatprep.subr.mxu0 0.0
    %3155 = vmatpush1.msra.mxu0 0.0
    %3156 = vmatprep.subr.mxu0 0.0
    %3157 = vmatpush1.msra.mxu0 0.0
    %3158 = vmatprep.mubr.f32.mxu0 0.0
    %3159 = vmatmul.mubr.f32.gmra.mrb[0].mxu0 %v3077
    %v3160 = vpop.f32.mrb[0].mxu0
    %v3161 = vadd.f32 %v106, %v3160
    %v3162 = vpop.f32.mrb[0].mxu0
    %3163 = vdwg.mxu0
    %v3164 = vsel %vm633, %v3161, -inf
    %3165 = vmax.xlane.f32.xlu0 %v3164
    %v3166 = vpop.xlane.xlu0 %3165
    %v3167 = vsub.f32 %v3161, %v3166
    %v3168 = vmul.f32 %v3167, 1.442695
    %v3169 = vpow.pop %v3168
    %v3170 = vsel %vm633, %v3169, 0.0
    %3171 = vadd.xlane.f32.xlu0 %v3170
    %v3172 = vpop.xlane.xlu0 %3171
    %v3173 = vlog2.pop %v3172
    %v3174 = vmul.f32 %v3173, 0.6931472
    %v3175 = vsub.f32 %v3167, %v3174
    %3176 = vst [vmem:[#allocation12 + $0x5] sm:$0x1] %v3175
    %s3177 = sld [smem:[#allocation2 + $0x6]]
    %p3178 = scmp.gt.s32.totalorder %s3177, 0
    %s3179 = scalar_select %p3178, %s3177, 0
    %p3180 = scmp.lt.s32.totalorder %s3179, 127
    %s3181 = scalar_select %p3180, %s3179, 127
    %s3182 = scalar_lea.vmem [#allocation6], %s3181
    %v3183 = vld [vmem:[%s3182] sm:$0x1]
    %v3184 = vmax.f32 %v3183, 0.0
    %v3185 = vld [vmem:[#allocation7] sm:$0xff]
    %v3186 = vld [vmem:[#allocation7 + $0x8] sm:$0xff]
    %v3187 = vld [vmem:[#allocation7 + $0x10] sm:$0xff]
    %v3188 = vld [vmem:[#allocation7 + $0x18] sm:$0xff]
    %v3189 = vld [vmem:[#allocation7 + $0x20] sm:$0xff]
    %v3190 = vld [vmem:[#allocation7 + $0x28] sm:$0xff]
    %v3191 = vld [vmem:[#allocation7 + $0x30] sm:$0xff]
    %v3192 = vld [vmem:[#allocation7 + $0x38] sm:$0xff]
    %v3193 = vld [vmem:[#allocation7 + $0x40] sm:$0xff]
    %v3194 = vld [vmem:[#allocation7 + $0x48] sm:$0xff]
    %v3195 = vld [vmem:[#allocation7 + $0x50] sm:$0xff]
    %v3196 = vld [vmem:[#allocation7 + $0x58] sm:$0xff]
    %v3197 = vld [vmem:[#allocation7 + $0x60] sm:$0xff]
    %v3198 = vld [vmem:[#allocation7 + $0x68] sm:$0xff]
    %v3199 = vld [vmem:[#allocation7 + $0x70] sm:$0xff]
    %v3200 = vld [vmem:[#allocation7 + $0x78] sm:$0xff]
    %v3201 = vld [vmem:[#allocation7 + $0x80] sm:$0xff]
    %v3202 = vld [vmem:[#allocation7 + $0x88] sm:$0xff]
    %v3203 = vld [vmem:[#allocation7 + $0x90] sm:$0xff]
    %v3204 = vld [vmem:[#allocation7 + $0x98] sm:$0xff]
    %v3205 = vld [vmem:[#allocation7 + $0xa0] sm:$0xff]
    %v3206 = vld [vmem:[#allocation7 + $0xa8] sm:$0xff]
    %v3207 = vld [vmem:[#allocation7 + $0xb0] sm:$0xff]
    %v3208 = vld [vmem:[#allocation7 + $0xb8] sm:$0xff]
    %v3209 = vld [vmem:[#allocation7 + $0xc0] sm:$0xff]
    %v3210 = vld [vmem:[#allocation7 + $0xc8] sm:$0xff]
    %v3211 = vld [vmem:[#allocation7 + $0xd0] sm:$0xff]
    %v3212 = vld [vmem:[#allocation7 + $0xd8] sm:$0xff]
    %v3213 = vld [vmem:[#allocation7 + $0xe0] sm:$0xff]
    %v3214 = vld [vmem:[#allocation7 + $0xe8] sm:$0xff]
    %v3215 = vld [vmem:[#allocation7 + $0xf0] sm:$0xff]
    %v3216 = vld [vmem:[#allocation7 + $0xf8] sm:$0xff]
    %v3217 = vld [vmem:[#allocation7 + $0x100] sm:$0xff]
    %v3218 = vld [vmem:[#allocation7 + $0x108] sm:$0xff]
    %v3219 = vld [vmem:[#allocation7 + $0x110] sm:$0xff]
    %v3220 = vld [vmem:[#allocation7 + $0x118] sm:$0xff]
    %v3221 = vld [vmem:[#allocation7 + $0x120] sm:$0xff]
    %v3222 = vld [vmem:[#allocation7 + $0x128] sm:$0xff]
    %v3223 = vld [vmem:[#allocation7 + $0x130] sm:$0xff]
    %v3224 = vld [vmem:[#allocation7 + $0x138] sm:$0xff]
    %v3225 = vld [vmem:[#allocation7 + $0x140] sm:$0xff]
    %v3226 = vld [vmem:[#allocation7 + $0x148] sm:$0xff]
    %v3227 = vld [vmem:[#allocation7 + $0x150] sm:$0xff]
    %v3228 = vld [vmem:[#allocation7 + $0x158] sm:$0xff]
    %v3229 = vld [vmem:[#allocation7 + $0x160] sm:$0xff]
    %v3230 = vld [vmem:[#allocation7 + $0x168] sm:$0xff]
    %v3231 = vld [vmem:[#allocation7 + $0x170] sm:$0xff]
    %v3232 = vld [vmem:[#allocation7 + $0x178] sm:$0xff]
    %3233 = vmatprep.subr.mxu0 %v3186
    %3234 = vmatpush1.msra.mxu0 %v3185
    %3235 = vmatprep.subr.mxu0 %v3189
    %3236 = vmatpush1.msra.mxu0 %v3188
    %3237 = vmatprep.subr.mxu0 %v3192
    %3238 = vmatpush1.msra.mxu0 %v3191
    %3239 = vmatprep.subr.mxu0 %v3195
    %3240 = vmatpush1.msra.mxu0 %v3194
    %3241 = vmatprep.subr.mxu0 %v3198
    %3242 = vmatpush1.msra.mxu0 %v3197
    %3243 = vmatprep.subr.mxu0 %v3201
    %3244 = vmatpush1.msra.mxu0 %v3200
    %3245 = vmatprep.subr.mxu0 %v3204
    %3246 = vmatpush1.msra.mxu0 %v3203
    %3247 = vmatprep.subr.mxu0 %v3207
    %3248 = vmatpush1.msra.mxu0 %v3206
    %3249 = vmatprep.subr.mxu0 %v3210
    %3250 = vmatpush1.msra.mxu0 %v3209
    %3251 = vmatprep.subr.mxu0 %v3213
    %3252 = vmatpush1.msra.mxu0 %v3212
    %3253 = vmatprep.subr.mxu0 %v3216
    %3254 = vmatpush1.msra.mxu0 %v3215
    %3255 = vmatprep.subr.mxu0 %v3219
    %3256 = vmatpush1.msra.mxu0 %v3218
    %3257 = vmatprep.subr.mxu0 %v3222
    %3258 = vmatpush1.msra.mxu0 %v3221
    %3259 = vmatprep.subr.mxu0 %v3225
    %3260 = vmatpush1.msra.mxu0 %v3224
    %3261 = vmatprep.subr.mxu0 %v3228
    %3262 = vmatpush1.msra.mxu0 %v3227
    %3263 = vmatprep.subr.mxu0 %v3231
    %3264 = vmatpush1.msra.mxu0 %v3230
    %3265 = vmatprep.subr.mxu0 0.0
    %3266 = vmatpush1.msra.mxu0 0.0
    %3267 = vmatprep.subr.mxu0 0.0
    %3268 = vmatpush1.msra.mxu0 0.0
    %3269 = vmatprep.subr.mxu0 0.0
    %3270 = vmatpush1.msra.mxu0 0.0
    %3271 = vmatprep.subr.mxu0 0.0
    %3272 = vmatpush1.msra.mxu0 0.0
    %3273 = vmatprep.subr.mxu0 0.0
    %3274 = vmatpush1.msra.mxu0 0.0
    %3275 = vmatprep.subr.mxu0 0.0
    %3276 = vmatpush1.msra.mxu0 0.0
    %3277 = vmatprep.subr.mxu0 0.0
    %3278 = vmatpush1.msra.mxu0 0.0
    %3279 = vmatprep.subr.mxu0 0.0
    %3280 = vmatpush1.msra.mxu0 0.0
    %3281 = vmatprep.subr.mxu0 0.0
    %3282 = vmatpush1.msra.mxu0 0.0
    %3283 = vmatprep.subr.mxu0 0.0
    %3284 = vmatpush1.msra.mxu0 0.0
    %3285 = vmatprep.subr.mxu0 0.0
    %3286 = vmatpush1.msra.mxu0 0.0
    %3287 = vmatprep.subr.mxu0 0.0
    %3288 = vmatpush1.msra.mxu0 0.0
    %3289 = vmatprep.subr.mxu0 0.0
    %3290 = vmatpush1.msra.mxu0 0.0
    %3291 = vmatprep.subr.mxu0 0.0
    %3292 = vmatpush1.msra.mxu0 0.0
    %3293 = vmatprep.subr.mxu0 0.0
    %3294 = vmatpush1.msra.mxu0 0.0
    %3295 = vmatprep.subr.mxu0 0.0
    %3296 = vmatpush1.msra.mxu0 0.0
    %3297 = vmatprep.mubr.f32.mxu0 0.0
    %3298 = vmatmul.mubr.f32.gmra.mrb[0].mxu0 %v3184
    %v3299 = vpop.f32.mrb[0].mxu0
    %v3300 = vadd.f32 %v168, %v3299
    %v3301 = vpop.f32.mrb[0].mxu0
    %v3302 = vadd.f32 %v172, %v3301
    %3303 = vdwg.mxu0
    %3304 = vmatprep.subr.mxu0 0.0
    %3305 = vmatpush1.msra.mxu0 %v3187
    %3306 = vmatprep.subr.mxu0 0.0
    %3307 = vmatpush1.msra.mxu0 %v3190
    %3308 = vmatprep.subr.mxu0 0.0
    %3309 = vmatpush1.msra.mxu0 %v3193
    %3310 = vmatprep.subr.mxu0 0.0
    %3311 = vmatpush1.msra.mxu0 %v3196
    %3312 = vmatprep.subr.mxu0 0.0
    %3313 = vmatpush1.msra.mxu0 %v3199
    %3314 = vmatprep.subr.mxu0 0.0
    %3315 = vmatpush1.msra.mxu0 %v3202
    %3316 = vmatprep.subr.mxu0 0.0
    %3317 = vmatpush1.msra.mxu0 %v3205
    %3318 = vmatprep.subr.mxu0 0.0
    %3319 = vmatpush1.msra.mxu0 %v3208
    %3320 = vmatprep.subr.mxu0 0.0
    %3321 = vmatpush1.msra.mxu0 %v3211
    %3322 = vmatprep.subr.mxu0 0.0
    %3323 = vmatpush1.msra.mxu0 %v3214
    %3324 = vmatprep.subr.mxu0 0.0
    %3325 = vmatpush1.msra.mxu0 %v3217
    %3326 = vmatprep.subr.mxu0 0.0
    %3327 = vmatpush1.msra.mxu0 %v3220
    %3328 = vmatprep.subr.mxu0 0.0
    %3329 = vmatpush1.msra.mxu0 %v3223
    %3330 = vmatprep.subr.mxu0 0.0
    %3331 = vmatpush1.msra.mxu0 %v3226
    %3332 = vmatprep.subr.mxu0 0.0
    %3333 = vmatpush1.msra.mxu0 %v3229
    %3334 = vmatprep.subr.mxu0 0.0
    %3335 = vmatpush1.msra.mxu0 %v3232
    %3336 = vmatprep.subr.mxu0 0.0
    %3337 = vmatpush1.msra.mxu0 0.0
    %3338 = vmatprep.subr.mxu0 0.0
    %3339 = vmatpush1.msra.mxu0 0.0
    %3340 = vmatprep.subr.mxu0 0.0
    %3341 = vmatpush1.msra.mxu0 0.0
    %3342 = vmatprep.subr.mxu0 0.0
    %3343 = vmatpush1.msra.mxu0 0.0
    %3344 = vmatprep.subr.mxu0 0.0
    %3345 = vmatpush1.msra.mxu0 0.0
    %3346 = vmatprep.subr.mxu0 0.0
    %3347 = vmatpush1.msra.mxu0 0.0
    %3348 = vmatprep.subr.mxu0 0.0
    %3349 = vmatpush1.msra.mxu0 0.0
    %3350 = vmatprep.subr.mxu0 0.0
    %3351 = vmatpush1.msra.mxu0 0.0
    %3352 = vmatprep.subr.mxu0 0.0
    %3353 = vmatpush1.msra.mxu0 0.0
    %3354 = vmatprep.subr.mxu0 0.0
    %3355 = vmatpush1.msra.mxu0 0.0
    %3356 = vmatprep.subr.mxu0 0.0
    %3357 = vmatpush1.msra.mxu0 0.0
    %3358 = vmatprep.subr.mxu0 0.0
    %3359 = vmatpush1.msra.mxu0 0.0
    %3360 = vmatprep.subr.mxu0 0.0
    %3361 = vmatpush1.msra.mxu0 0.0
    %3362 = vmatprep.subr.mxu0 0.0
    %3363 = vmatpush1.msra.mxu0 0.0
    %3364 = vmatprep.subr.mxu0 0.0
    %3365 = vmatpush1.msra.mxu0 0.0
    %3366 = vmatprep.subr.mxu0 0.0
    %3367 = vmatpush1.msra.mxu0 0.0
    %3368 = vmatprep.mubr.f32.mxu0 0.0
    %3369 = vmatmul.mubr.f32.gmra.mrb[0].mxu0 %v3184
    %v3370 = vpop.f32.mrb[0].mxu0
    %v3371 = vadd.f32 %v176, %v3370
    %v3372 = vpop.f32.mrb[0].mxu0
    %3373 = vdwg.mxu0
    %v3374 = vld [vmem:[#allocation9] sm:$0xff]
    %v3375 = vld [vmem:[#allocation9 + $0x8] sm:$0xff]
    %v3376 = vld [vmem:[#allocation9 + $0x10] sm:$0xff]
    %v3377 = vld [vmem:[#allocation9 + $0x18] sm:$0xff]
    %v3378 = vld [vmem:[#allocation9 + $0x20] sm:$0xff]
    %v3379 = vld [vmem:[#allocation9 + $0x28] sm:$0xff]
    %v3380 = vld [vmem:[#allocation9 + $0x30] sm:$0xff]
    %v3381 = vld [vmem:[#allocation9 + $0x38] sm:$0xff]
    %v3382 = vld [vmem:[#allocation9 + $0x40] sm:$0xff]
    %v3383 = vld [vmem:[#allocation9 + $0x48] sm:$0xff]
    %v3384 = vld [vmem:[#allocation9 + $0x50] sm:$0xff]
    %v3385 = vld [vmem:[#allocation9 + $0x58] sm:$0xff]
    %v3386 = vld [vmem:[#allocation9 + $0x60] sm:$0xff]
    %v3387 = vld [vmem:[#allocation9 + $0x68] sm:$0xff]
    %v3388 = vld [vmem:[#allocation9 + $0x70] sm:$0xff]
    %v3389 = vld [vmem:[#allocation9 + $0x78] sm:$0xff]
    %v3390 = vld [vmem:[#allocation9 + $0x80] sm:$0xff]
    %v3391 = vld [vmem:[#allocation9 + $0x88] sm:$0xff]
    %v3392 = vld [vmem:[#allocation9 + $0x90] sm:$0xff]
    %v3393 = vld [vmem:[#allocation9 + $0x98] sm:$0xff]
    %v3394 = vld [vmem:[#allocation9 + $0xa0] sm:$0xff]
    %v3395 = vld [vmem:[#allocation9 + $0xa8] sm:$0xff]
    %v3396 = vld [vmem:[#allocation9 + $0xb0] sm:$0xff]
    %v3397 = vld [vmem:[#allocation9 + $0xb8] sm:$0xff]
    %v3398 = vld [vmem:[#allocation9 + $0xc0] sm:$0xff]
    %v3399 = vld [vmem:[#allocation9 + $0xc8] sm:$0xff]
    %v3400 = vld [vmem:[#allocation9 + $0xd0] sm:$0xff]
    %v3401 = vld [vmem:[#allocation9 + $0xd8] sm:$0xff]
    %v3402 = vld [vmem:[#allocation9 + $0xe0] sm:$0xff]
    %v3403 = vld [vmem:[#allocation9 + $0xe8] sm:$0xff]
    %v3404 = vld [vmem:[#allocation9 + $0xf0] sm:$0xff]
    %v3405 = vld [vmem:[#allocation9 + $0xf8] sm:$0xff]
    %v3406 = vld [vmem:[#allocation9 + $0x100] sm:$0xff]
    %v3407 = vld [vmem:[#allocation9 + $0x108] sm:$0xff]
    %v3408 = vld [vmem:[#allocation9 + $0x110] sm:$0xff]
    %v3409 = vld [vmem:[#allocation9 + $0x118] sm:$0xff]
    %v3410 = vld [vmem:[#allocation9 + $0x120] sm:$0xff]
    %v3411 = vld [vmem:[#allocation9 + $0x128] sm:$0xff]
    %v3412 = vld [vmem:[#allocation9 + $0x130] sm:$0xff]
    %v3413 = vld [vmem:[#allocation9 + $0x138] sm:$0xff]
    %v3414 = vld [vmem:[#allocation9 + $0x140] sm:$0xff]
    %v3415 = vld [vmem:[#allocation9 + $0x148] sm:$0xff]
    %v3416 = vld [vmem:[#allocation9 + $0x150] sm:$0xff]
    %v3417 = vld [vmem:[#allocation9 + $0x158] sm:$0xff]
    %v3418 = vld [vmem:[#allocation9 + $0x160] sm:$0xff]
    %v3419 = vld [vmem:[#allocation9 + $0x168] sm:$0xff]
    %v3420 = vld [vmem:[#allocation9 + $0x170] sm:$0xff]
    %v3421 = vld [vmem:[#allocation9 + $0x178] sm:$0xff]
    %3422 = vmatprep.subr.mxu0 %v3375
    %3423 = vmatpush1.msra.mxu0 %v3374
    %3424 = vmatprep.subr.mxu0 %v3378
    %3425 = vmatpush1.msra.mxu0 %v3377
    %3426 = vmatprep.subr.mxu0 %v3381
    %3427 = vmatpush1.msra.mxu0 %v3380
    %3428 = vmatprep.subr.mxu0 %v3384
    %3429 = vmatpush1.msra.mxu0 %v3383
    %3430 = vmatprep.subr.mxu0 %v3387
    %3431 = vmatpush1.msra.mxu0 %v3386
    %3432 = vmatprep.subr.mxu0 %v3390
    %3433 = vmatpush1.msra.mxu0 %v3389
    %3434 = vmatprep.subr.mxu0 %v3393
    %3435 = vmatpush1.msra.mxu0 %v3392
    %3436 = vmatprep.subr.mxu0 %v3396
    %3437 = vmatpush1.msra.mxu0 %v3395
    %3438 = vmatprep.subr.mxu0 %v3399
    %3439 = vmatpush1.msra.mxu0 %v3398
    %3440 = vmatprep.subr.mxu0 %v3402
    %3441 = vmatpush1.msra.mxu0 %v3401
    %3442 = vmatprep.subr.mxu0 %v3405
    %3443 = vmatpush1.msra.mxu0 %v3404
    %3444 = vmatprep.subr.mxu0 %v3408
    %3445 = vmatpush1.msra.mxu0 %v3407
    %3446 = vmatprep.subr.mxu0 %v3411
    %3447 = vmatpush1.msra.mxu0 %v3410
    %3448 = vmatprep.subr.mxu0 %v3414
    %3449 = vmatpush1.msra.mxu0 %v3413
    %3450 = vmatprep.subr.mxu0 %v3417
    %3451 = vmatpush1.msra.mxu0 %v3416
    %3452 = vmatprep.subr.mxu0 %v3420
    %3453 = vmatpush1.msra.mxu0 %v3419
    %3454 = vmatprep.subr.mxu0 0.0
    %3455 = vmatpush1.msra.mxu0 0.0
    %3456 = vmatprep.subr.mxu0 0.0
    %3457 = vmatpush1.msra.mxu0 0.0
    %3458 = vmatprep.subr.mxu0 0.0
    %3459 = vmatpush1.msra.mxu0 0.0
    %3460 = vmatprep.subr.mxu0 0.0
    %3461 = vmatpush1.msra.mxu0 0.0
    %3462 = vmatprep.subr.mxu0 0.0
    %3463 = vmatpush1.msra.mxu0 0.0
    %3464 = vmatprep.subr.mxu0 0.0
    %3465 = vmatpush1.msra.mxu0 0.0
    %3466 = vmatprep.subr.mxu0 0.0
    %3467 = vmatpush1.msra.mxu0 0.0
    %3468 = vmatprep.subr.mxu0 0.0
    %3469 = vmatpush1.msra.mxu0 0.0
    %3470 = vmatprep.subr.mxu0 0.0
    %3471 = vmatpush1.msra.mxu0 0.0
    %3472 = vmatprep.subr.mxu0 0.0
    %3473 = vmatpush1.msra.mxu0 0.0
    %3474 = vmatprep.subr.mxu0 0.0
    %3475 = vmatpush1.msra.mxu0 0.0
    %3476 = vmatprep.subr.mxu0 0.0
    %3477 = vmatpush1.msra.mxu0 0.0
    %3478 = vmatprep.subr.mxu0 0.0
    %3479 = vmatpush1.msra.mxu0 0.0
    %3480 = vmatprep.subr.mxu0 0.0
    %3481 = vmatpush1.msra.mxu0 0.0
    %3482 = vmatprep.subr.mxu0 0.0
    %3483 = vmatpush1.msra.mxu0 0.0
    %3484 = vmatprep.subr.mxu0 0.0
    %3485 = vmatpush1.msra.mxu0 0.0
    %3486 = vmatprep.mubr.f32.mxu0 0.0
    %3487 = vmatmul.mubr.f32.gmra.mrb[0].mxu0 %v3077
    %v3488 = vpop.f32.mrb[0].mxu0
    %v3489 = vadd.f32 %v373, %v3488
    %v3490 = vpop.f32.mrb[0].mxu0
    %v3491 = vadd.f32 %v377, %v3490
    %3492 = vdwg.mxu0
    %3493 = vmatprep.subr.mxu0 0.0
    %3494 = vmatpush1.msra.mxu0 %v3376
    %3495 = vmatprep.subr.mxu0 0.0
    %3496 = vmatpush1.msra.mxu0 %v3379
    %3497 = vmatprep.subr.mxu0 0.0
    %3498 = vmatpush1.msra.mxu0 %v3382
    %3499 = vmatprep.subr.mxu0 0.0
    %3500 = vmatpush1.msra.mxu0 %v3385
    %3501 = vmatprep.subr.mxu0 0.0
    %3502 = vmatpush1.msra.mxu0 %v3388
    %3503 = vmatprep.subr.mxu0 0.0
    %3504 = vmatpush1.msra.mxu0 %v3391
    %3505 = vmatprep.subr.mxu0 0.0
    %3506 = vmatpush1.msra.mxu0 %v3394
    %3507 = vmatprep.subr.mxu0 0.0
    %3508 = vmatpush1.msra.mxu0 %v3397
    %3509 = vmatprep.subr.mxu0 0.0
    %3510 = vmatpush1.msra.mxu0 %v3400
    %3511 = vmatprep.subr.mxu0 0.0
    %3512 = vmatpush1.msra.mxu0 %v3403
    %3513 = vmatprep.subr.mxu0 0.0
    %3514 = vmatpush1.msra.mxu0 %v3406
    %3515 = vmatprep.subr.mxu0 0.0
    %3516 = vmatpush1.msra.mxu0 %v3409
    %3517 = vmatprep.subr.mxu0 0.0
    %3518 = vmatpush1.msra.mxu0 %v3412
    %3519 = vmatprep.subr.mxu0 0.0
    %3520 = vmatpush1.msra.mxu0 %v3415
    %3521 = vmatprep.subr.mxu0 0.0
    %3522 = vmatpush1.msra.mxu0 %v3418
    %3523 = vmatprep.subr.mxu0 0.0
    %3524 = vmatpush1.msra.mxu0 %v3421
    %3525 = vmatprep.subr.mxu0 0.0
    %3526 = vmatpush1.msra.mxu0 0.0
    %3527 = vmatprep.subr.mxu0 0.0
    %3528 = vmatpush1.msra.mxu0 0.0
    %3529 = vmatprep.subr.mxu0 0.0
    %3530 = vmatpush1.msra.mxu0 0.0
    %3531 = vmatprep.subr.mxu0 0.0
    %3532 = vmatpush1.msra.mxu0 0.0
    %3533 = vmatprep.subr.mxu0 0.0
    %3534 = vmatpush1.msra.mxu0 0.0
    %3535 = vmatprep.subr.mxu0 0.0
    %3536 = vmatpush1.msra.mxu0 0.0
    %3537 = vmatprep.subr.mxu0 0.0
    %3538 = vmatpush1.msra.mxu0 0.0
    %3539 = vmatprep.subr.mxu0 0.0
    %3540 = vmatpush1.msra.mxu0 0.0
    %3541 = vmatprep.subr.mxu0 0.0
    %3542 = vmatpush1.msra.mxu0 0.0
    %3543 = vmatprep.subr.mxu0 0.0
    %3544 = vmatpush1.msra.mxu0 0.0
    %3545 = vmatprep.subr.mxu0 0.0
    %3546 = vmatpush1.msra.mxu0 0.0
    %3547 = vmatprep.subr.mxu0 0.0
    %3548 = vmatpush1.msra.mxu0 0.0
    %3549 = vmatprep.subr.mxu0 0.0
    %3550 = vmatpush1.msra.mxu0 0.0
    %3551 = vmatprep.subr.mxu0 0.0
    %3552 = vmatpush1.msra.mxu0 0.0
    %3553 = vmatprep.subr.mxu0 0.0
    %3554 = vmatpush1.msra.mxu0 0.0
    %3555 = vmatprep.subr.mxu0 0.0
    %3556 = vmatpush1.msra.mxu0 0.0
    %3557 = vmatprep.mubr.f32.mxu0 0.0
    %3558 = vmatmul.mubr.f32.gmra.mrb[0].mxu0 %v3077
    %v3559 = vpop.f32.mrb[0].mxu0
    %v3560 = vadd.f32 %v381, %v3559
    %v3561 = vpop.f32.mrb[0].mxu0
    %3562 = vdwg.mxu0
    %v3563 = vadd.f32 %v3300, %v3489
    %v3564 = vxor.u32 %v3563, 2147483648
    %v3565 = vmul.f32 %v3564, 1.442695
    %v3566 = vpow.pop %v3565
    %v3567 = vadd.f32 %v3566, 1.0
    %v3568 = vrcp.pop %v3567
    %v3569 = vmul.f32 1.0, %v3568
    %v3570 = vadd.f32 %v3302, %v3491
    %v3571 = vxor.u32 %v3570, 2147483648
    %v3572 = vmul.f32 %v3571, 1.442695
    %v3573 = vpow.pop %v3572
    %v3574 = vadd.f32 %v3573, 1.0
    %v3575 = vrcp.pop %v3574
    %v3576 = vmul.f32 1.0, %v3575
    %v3577 = vmul.f32 %v3569, %v3560
    %v3578 = vadd.f32 %v3371, %v3577
    %v3579 = vtanh.pop %v3578
    %v3580 = vsub.f32 1.0, %v3576
    %v3581 = vmul.f32 %v3580, %v3579
    %v3582 = vmul.f32 %v3576, %v3077
    %v3583 = vadd.f32 %v3581, %v3582
    %v3584 = vld [vmem:[#allocation10] sm:$0xff]
    %v3585 = vld [vmem:[#allocation10 + $0x8] sm:$0xff]
    %v3586 = vld [vmem:[#allocation10 + $0x10] sm:$0xff]
    %v3587 = vld [vmem:[#allocation10 + $0x18] sm:$0xff]
    %v3588 = vld [vmem:[#allocation10 + $0x20] sm:$0xff]
    %v3589 = vld [vmem:[#allocation10 + $0x28] sm:$0xff]
    %v3590 = vld [vmem:[#allocation10 + $0x30] sm:$0xff]
    %v3591 = vld [vmem:[#allocation10 + $0x38] sm:$0xff]
    %v3592 = vld [vmem:[#allocation10 + $0x40] sm:$0xff]
    %v3593 = vld [vmem:[#allocation10 + $0x48] sm:$0xff]
    %v3594 = vld [vmem:[#allocation10 + $0x50] sm:$0xff]
    %v3595 = vld [vmem:[#allocation10 + $0x58] sm:$0xff]
    %v3596 = vld [vmem:[#allocation10 + $0x60] sm:$0xff]
    %v3597 = vld [vmem:[#allocation10 + $0x68] sm:$0xff]
    %v3598 = vld [vmem:[#allocation10 + $0x70] sm:$0xff]
    %v3599 = vld [vmem:[#allocation10 + $0x78] sm:$0xff]
    %3600 = vmatprep.subr.mxu0 0.0
    %3601 = vmatpush1.msra.mxu0 %v3584
    %3602 = vmatprep.subr.mxu0 0.0
    %3603 = vmatpush1.msra.mxu0 %v3585
    %3604 = vmatprep.subr.mxu0 0.0
    %3605 = vmatpush1.msra.mxu0 %v3586
    %3606 = vmatprep.subr.mxu0 0.0
    %3607 = vmatpush1.msra.mxu0 %v3587
    %3608 = vmatprep.subr.mxu0 0.0
    %3609 = vmatpush1.msra.mxu0 %v3588
    %3610 = vmatprep.subr.mxu0 0.0
    %3611 = vmatpush1.msra.mxu0 %v3589
    %3612 = vmatprep.subr.mxu0 0.0
    %3613 = vmatpush1.msra.mxu0 %v3590
    %3614 = vmatprep.subr.mxu0 0.0
    %3615 = vmatpush1.msra.mxu0 %v3591
    %3616 = vmatprep.subr.mxu0 0.0
    %3617 = vmatpush1.msra.mxu0 %v3592
    %3618 = vmatprep.subr.mxu0 0.0
    %3619 = vmatpush1.msra.mxu0 %v3593
    %3620 = vmatprep.subr.mxu0 0.0
    %3621 = vmatpush1.msra.mxu0 %v3594
    %3622 = vmatprep.subr.mxu0 0.0
    %3623 = vmatpush1.msra.mxu0 %v3595
    %3624 = vmatprep.subr.mxu0 0.0
    %3625 = vmatpush1.msra.mxu0 %v3596
    %3626 = vmatprep.subr.mxu0 0.0
    %3627 = vmatpush1.msra.mxu0 %v3597
    %3628 = vmatprep.subr.mxu0 0.0
    %3629 = vmatpush1.msra.mxu0 %v3598
    %3630 = vmatprep.subr.mxu0 0.0
    %3631 = vmatpush1.msra.mxu0 %v3599
    %3632 = vmatprep.subr.mxu0 0.0
    %3633 = vmatpush1.msra.mxu0 0.0
    %3634 = vmatprep.subr.mxu0 0.0
    %3635 = vmatpush1.msra.mxu0 0.0
    %3636 = vmatprep.subr.mxu0 0.0
    %3637 = vmatpush1.msra.mxu0 0.0
    %3638 = vmatprep.subr.mxu0 0.0
    %3639 = vmatpush1.msra.mxu0 0.0
    %3640 = vmatprep.subr.mxu0 0.0
    %3641 = vmatpush1.msra.mxu0 0.0
    %3642 = vmatprep.subr.mxu0 0.0
    %3643 = vmatpush1.msra.mxu0 0.0
    %3644 = vmatprep.subr.mxu0 0.0
    %3645 = vmatpush1.msra.mxu0 0.0
    %3646 = vmatprep.subr.mxu0 0.0
    %3647 = vmatpush1.msra.mxu0 0.0
    %3648 = vmatprep.subr.mxu0 0.0
    %3649 = vmatpush1.msra.mxu0 0.0
    %3650 = vmatprep.subr.mxu0 0.0
    %3651 = vmatpush1.msra.mxu0 0.0
    %3652 = vmatprep.subr.mxu0 0.0
    %3653 = vmatpush1.msra.mxu0 0.0
    %3654 = vmatprep.subr.mxu0 0.0
    %3655 = vmatpush1.msra.mxu0 0.0
    %3656 = vmatprep.subr.mxu0 0.0
    %3657 = vmatpush1.msra.mxu0 0.0
    %3658 = vmatprep.subr.mxu0 0.0
    %3659 = vmatpush1.msra.mxu0 0.0
    %3660 = vmatprep.subr.mxu0 0.0
    %3661 = vmatpush1.msra.mxu0 0.0
    %3662 = vmatprep.subr.mxu0 0.0
    %3663 = vmatpush1.msra.mxu0 0.0
    %3664 = vmatprep.mubr.f32.mxu0 0.0
    %3665 = vmatmul.mubr.f32.gmra.mrb[0].mxu0 %v3583
    %v3666 = vpop.f32.mrb[0].mxu0
    %v3667 = vadd.f32 %v106, %v3666
    %v3668 = vpop.f32.mrb[0].mxu0
    %3669 = vdwg.mxu0
    %v3670 = vsel %vm633, %v3667, -inf
    %3671 = vmax.xlane.f32.xlu0 %v3670
    %v3672 = vpop.xlane.xlu0 %3671
    %v3673 = vsub.f32 %v3667, %v3672
    %v3674 = vmul.f32 %v3673, 1.442695
    %v3675 = vpow.pop %v3674
    %v3676 = vsel %vm633, %v3675, 0.0
    %3677 = vadd.xlane.f32.xlu0 %v3676
    %v3678 = vpop.xlane.xlu0 %3677
    %v3679 = vlog2.pop %v3678
    %v3680 = vmul.f32 %v3679, 0.6931472
    %v3681 = vsub.f32 %v3673, %v3680
    %3682 = vst [vmem:[#allocation12 + $0x6] sm:$0x1] %v3681
    %s3683 = sld [smem:[#allocation2 + $0x7]]
    %p3684 = scmp.gt.s32.totalorder %s3683, 0
    %s3685 = scalar_select %p3684, %s3683, 0
    %p3686 = scmp.lt.s32.totalorder %s3685, 127
    %s3687 = scalar_select %p3686, %s3685, 127
    %s3688 = scalar_lea.vmem [#allocation6], %s3687
    %v3689 = vld [vmem:[%s3688] sm:$0x1]
    %v3690 = vmax.f32 %v3689, 0.0
    %v3691 = vld [vmem:[#allocation7] sm:$0xff]
    %v3692 = vld [vmem:[#allocation7 + $0x8] sm:$0xff]
    %v3693 = vld [vmem:[#allocation7 + $0x10] sm:$0xff]
    %v3694 = vld [vmem:[#allocation7 + $0x18] sm:$0xff]
    %v3695 = vld [vmem:[#allocation7 + $0x20] sm:$0xff]
    %v3696 = vld [vmem:[#allocation7 + $0x28] sm:$0xff]
    %v3697 = vld [vmem:[#allocation7 + $0x30] sm:$0xff]
    %v3698 = vld [vmem:[#allocation7 + $0x38] sm:$0xff]
    %v3699 = vld [vmem:[#allocation7 + $0x40] sm:$0xff]
    %v3700 = vld [vmem:[#allocation7 + $0x48] sm:$0xff]
    %v3701 = vld [vmem:[#allocation7 + $0x50] sm:$0xff]
    %v3702 = vld [vmem:[#allocation7 + $0x58] sm:$0xff]
    %v3703 = vld [vmem:[#allocation7 + $0x60] sm:$0xff]
    %v3704 = vld [vmem:[#allocation7 + $0x68] sm:$0xff]
    %v3705 = vld [vmem:[#allocation7 + $0x70] sm:$0xff]
    %v3706 = vld [vmem:[#allocation7 + $0x78] sm:$0xff]
    %v3707 = vld [vmem:[#allocation7 + $0x80] sm:$0xff]
    %v3708 = vld [vmem:[#allocation7 + $0x88] sm:$0xff]
    %v3709 = vld [vmem:[#allocation7 + $0x90] sm:$0xff]
    %v3710 = vld [vmem:[#allocation7 + $0x98] sm:$0xff]
    %v3711 = vld [vmem:[#allocation7 + $0xa0] sm:$0xff]
    %v3712 = vld [vmem:[#allocation7 + $0xa8] sm:$0xff]
    %v3713 = vld [vmem:[#allocation7 + $0xb0] sm:$0xff]
    %v3714 = vld [vmem:[#allocation7 + $0xb8] sm:$0xff]
    %v3715 = vld [vmem:[#allocation7 + $0xc0] sm:$0xff]
    %v3716 = vld [vmem:[#allocation7 + $0xc8] sm:$0xff]
    %v3717 = vld [vmem:[#allocation7 + $0xd0] sm:$0xff]
    %v3718 = vld [vmem:[#allocation7 + $0xd8] sm:$0xff]
    %v3719 = vld [vmem:[#allocation7 + $0xe0] sm:$0xff]
    %v3720 = vld [vmem:[#allocation7 + $0xe8] sm:$0xff]
    %v3721 = vld [vmem:[#allocation7 + $0xf0] sm:$0xff]
    %v3722 = vld [vmem:[#allocation7 + $0xf8] sm:$0xff]
    %v3723 = vld [vmem:[#allocation7 + $0x100] sm:$0xff]
    %v3724 = vld [vmem:[#allocation7 + $0x108] sm:$0xff]
    %v3725 = vld [vmem:[#allocation7 + $0x110] sm:$0xff]
    %v3726 = vld [vmem:[#allocation7 + $0x118] sm:$0xff]
    %v3727 = vld [vmem:[#allocation7 + $0x120] sm:$0xff]
    %v3728 = vld [vmem:[#allocation7 + $0x128] sm:$0xff]
    %v3729 = vld [vmem:[#allocation7 + $0x130] sm:$0xff]
    %v3730 = vld [vmem:[#allocation7 + $0x138] sm:$0xff]
    %v3731 = vld [vmem:[#allocation7 + $0x140] sm:$0xff]
    %v3732 = vld [vmem:[#allocation7 + $0x148] sm:$0xff]
    %v3733 = vld [vmem:[#allocation7 + $0x150] sm:$0xff]
    %v3734 = vld [vmem:[#allocation7 + $0x158] sm:$0xff]
    %v3735 = vld [vmem:[#allocation7 + $0x160] sm:$0xff]
    %v3736 = vld [vmem:[#allocation7 + $0x168] sm:$0xff]
    %v3737 = vld [vmem:[#allocation7 + $0x170] sm:$0xff]
    %v3738 = vld [vmem:[#allocation7 + $0x178] sm:$0xff]
    %3739 = vmatprep.subr.mxu0 %v3692
    %3740 = vmatpush1.msra.mxu0 %v3691
    %3741 = vmatprep.subr.mxu0 %v3695
    %3742 = vmatpush1.msra.mxu0 %v3694
    %3743 = vmatprep.subr.mxu0 %v3698
    %3744 = vmatpush1.msra.mxu0 %v3697
    %3745 = vmatprep.subr.mxu0 %v3701
    %3746 = vmatpush1.msra.mxu0 %v3700
    %3747 = vmatprep.subr.mxu0 %v3704
    %3748 = vmatpush1.msra.mxu0 %v3703
    %3749 = vmatprep.subr.mxu0 %v3707
    %3750 = vmatpush1.msra.mxu0 %v3706
    %3751 = vmatprep.subr.mxu0 %v3710
    %3752 = vmatpush1.msra.mxu0 %v3709
    %3753 = vmatprep.subr.mxu0 %v3713
    %3754 = vmatpush1.msra.mxu0 %v3712
    %3755 = vmatprep.subr.mxu0 %v3716
    %3756 = vmatpush1.msra.mxu0 %v3715
    %3757 = vmatprep.subr.mxu0 %v3719
    %3758 = vmatpush1.msra.mxu0 %v3718
    %3759 = vmatprep.subr.mxu0 %v3722
    %3760 = vmatpush1.msra.mxu0 %v3721
    %3761 = vmatprep.subr.mxu0 %v3725
    %3762 = vmatpush1.msra.mxu0 %v3724
    %3763 = vmatprep.subr.mxu0 %v3728
    %3764 = vmatpush1.msra.mxu0 %v3727
    %3765 = vmatprep.subr.mxu0 %v3731
    %3766 = vmatpush1.msra.mxu0 %v3730
    %3767 = vmatprep.subr.mxu0 %v3734
    %3768 = vmatpush1.msra.mxu0 %v3733
    %3769 = vmatprep.subr.mxu0 %v3737
    %3770 = vmatpush1.msra.mxu0 %v3736
    %3771 = vmatprep.subr.mxu0 0.0
    %3772 = vmatpush1.msra.mxu0 0.0
    %3773 = vmatprep.subr.mxu0 0.0
    %3774 = vmatpush1.msra.mxu0 0.0
    %3775 = vmatprep.subr.mxu0 0.0
    %3776 = vmatpush1.msra.mxu0 0.0
    %3777 = vmatprep.subr.mxu0 0.0
    %3778 = vmatpush1.msra.mxu0 0.0
    %3779 = vmatprep.subr.mxu0 0.0
    %3780 = vmatpush1.msra.mxu0 0.0
    %3781 = vmatprep.subr.mxu0 0.0
    %3782 = vmatpush1.msra.mxu0 0.0
    %3783 = vmatprep.subr.mxu0 0.0
    %3784 = vmatpush1.msra.mxu0 0.0
    %3785 = vmatprep.subr.mxu0 0.0
    %3786 = vmatpush1.msra.mxu0 0.0
    %3787 = vmatprep.subr.mxu0 0.0
    %3788 = vmatpush1.msra.mxu0 0.0
    %3789 = vmatprep.subr.mxu0 0.0
    %3790 = vmatpush1.msra.mxu0 0.0
    %3791 = vmatprep.subr.mxu0 0.0
    %3792 = vmatpush1.msra.mxu0 0.0
    %3793 = vmatprep.subr.mxu0 0.0
    %3794 = vmatpush1.msra.mxu0 0.0
    %3795 = vmatprep.subr.mxu0 0.0
    %3796 = vmatpush1.msra.mxu0 0.0
    %3797 = vmatprep.subr.mxu0 0.0
    %3798 = vmatpush1.msra.mxu0 0.0
    %3799 = vmatprep.subr.mxu0 0.0
    %3800 = vmatpush1.msra.mxu0 0.0
    %3801 = vmatprep.subr.mxu0 0.0
    %3802 = vmatpush1.msra.mxu0 0.0
    %3803 = vmatprep.mubr.f32.mxu0 0.0
    %3804 = vmatmul.mubr.f32.gmra.mrb[0].mxu0 %v3690
    %v3805 = vpop.f32.mrb[0].mxu0
    %v3806 = vadd.f32 %v168, %v3805
    %v3807 = vpop.f32.mrb[0].mxu0
    %v3808 = vadd.f32 %v172, %v3807
    %3809 = vdwg.mxu0
    %3810 = vmatprep.subr.mxu0 0.0
    %3811 = vmatpush1.msra.mxu0 %v3693
    %3812 = vmatprep.subr.mxu0 0.0
    %3813 = vmatpush1.msra.mxu0 %v3696
    %3814 = vmatprep.subr.mxu0 0.0
    %3815 = vmatpush1.msra.mxu0 %v3699
    %3816 = vmatprep.subr.mxu0 0.0
    %3817 = vmatpush1.msra.mxu0 %v3702
    %3818 = vmatprep.subr.mxu0 0.0
    %3819 = vmatpush1.msra.mxu0 %v3705
    %3820 = vmatprep.subr.mxu0 0.0
    %3821 = vmatpush1.msra.mxu0 %v3708
    %3822 = vmatprep.subr.mxu0 0.0
    %3823 = vmatpush1.msra.mxu0 %v3711
    %3824 = vmatprep.subr.mxu0 0.0
    %3825 = vmatpush1.msra.mxu0 %v3714
    %3826 = vmatprep.subr.mxu0 0.0
    %3827 = vmatpush1.msra.mxu0 %v3717
    %3828 = vmatprep.subr.mxu0 0.0
    %3829 = vmatpush1.msra.mxu0 %v3720
    %3830 = vmatprep.subr.mxu0 0.0
    %3831 = vmatpush1.msra.mxu0 %v3723
    %3832 = vmatprep.subr.mxu0 0.0
    %3833 = vmatpush1.msra.mxu0 %v3726
    %3834 = vmatprep.subr.mxu0 0.0
    %3835 = vmatpush1.msra.mxu0 %v3729
    %3836 = vmatprep.subr.mxu0 0.0
    %3837 = vmatpush1.msra.mxu0 %v3732
    %3838 = vmatprep.subr.mxu0 0.0
    %3839 = vmatpush1.msra.mxu0 %v3735
    %3840 = vmatprep.subr.mxu0 0.0
    %3841 = vmatpush1.msra.mxu0 %v3738
    %3842 = vmatprep.subr.mxu0 0.0
    %3843 = vmatpush1.msra.mxu0 0.0
    %3844 = vmatprep.subr.mxu0 0.0
    %3845 = vmatpush1.msra.mxu0 0.0
    %3846 = vmatprep.subr.mxu0 0.0
    %3847 = vmatpush1.msra.mxu0 0.0
    %3848 = vmatprep.subr.mxu0 0.0
    %3849 = vmatpush1.msra.mxu0 0.0
    %3850 = vmatprep.subr.mxu0 0.0
    %3851 = vmatpush1.msra.mxu0 0.0
    %3852 = vmatprep.subr.mxu0 0.0
    %3853 = vmatpush1.msra.mxu0 0.0
    %3854 = vmatprep.subr.mxu0 0.0
    %3855 = vmatpush1.msra.mxu0 0.0
    %3856 = vmatprep.subr.mxu0 0.0
    %3857 = vmatpush1.msra.mxu0 0.0
    %3858 = vmatprep.subr.mxu0 0.0
    %3859 = vmatpush1.msra.mxu0 0.0
    %3860 = vmatprep.subr.mxu0 0.0
    %3861 = vmatpush1.msra.mxu0 0.0
    %3862 = vmatprep.subr.mxu0 0.0
    %3863 = vmatpush1.msra.mxu0 0.0
    %3864 = vmatprep.subr.mxu0 0.0
    %3865 = vmatpush1.msra.mxu0 0.0
    %3866 = vmatprep.subr.mxu0 0.0
    %3867 = vmatpush1.msra.mxu0 0.0
    %3868 = vmatprep.subr.mxu0 0.0
    %3869 = vmatpush1.msra.mxu0 0.0
    %3870 = vmatprep.subr.mxu0 0.0
    %3871 = vmatpush1.msra.mxu0 0.0
    %3872 = vmatprep.subr.mxu0 0.0
    %3873 = vmatpush1.msra.mxu0 0.0
    %3874 = vmatprep.mubr.f32.mxu0 0.0
    %3875 = vmatmul.mubr.f32.gmra.mrb[0].mxu0 %v3690
    %v3876 = vpop.f32.mrb[0].mxu0
    %v3877 = vadd.f32 %v176, %v3876
    %v3878 = vpop.f32.mrb[0].mxu0
    %3879 = vdwg.mxu0
    %v3880 = vld [vmem:[#allocation9] sm:$0xff]
    %v3881 = vld [vmem:[#allocation9 + $0x8] sm:$0xff]
    %v3882 = vld [vmem:[#allocation9 + $0x10] sm:$0xff]
    %v3883 = vld [vmem:[#allocation9 + $0x18] sm:$0xff]
    %v3884 = vld [vmem:[#allocation9 + $0x20] sm:$0xff]
    %v3885 = vld [vmem:[#allocation9 + $0x28] sm:$0xff]
    %v3886 = vld [vmem:[#allocation9 + $0x30] sm:$0xff]
    %v3887 = vld [vmem:[#allocation9 + $0x38] sm:$0xff]
    %v3888 = vld [vmem:[#allocation9 + $0x40] sm:$0xff]
    %v3889 = vld [vmem:[#allocation9 + $0x48] sm:$0xff]
    %v3890 = vld [vmem:[#allocation9 + $0x50] sm:$0xff]
    %v3891 = vld [vmem:[#allocation9 + $0x58] sm:$0xff]
    %v3892 = vld [vmem:[#allocation9 + $0x60] sm:$0xff]
    %v3893 = vld [vmem:[#allocation9 + $0x68] sm:$0xff]
    %v3894 = vld [vmem:[#allocation9 + $0x70] sm:$0xff]
    %v3895 = vld [vmem:[#allocation9 + $0x78] sm:$0xff]
    %v3896 = vld [vmem:[#allocation9 + $0x80] sm:$0xff]
    %v3897 = vld [vmem:[#allocation9 + $0x88] sm:$0xff]
    %v3898 = vld [vmem:[#allocation9 + $0x90] sm:$0xff]
    %v3899 = vld [vmem:[#allocation9 + $0x98] sm:$0xff]
    %v3900 = vld [vmem:[#allocation9 + $0xa0] sm:$0xff]
    %v3901 = vld [vmem:[#allocation9 + $0xa8] sm:$0xff]
    %v3902 = vld [vmem:[#allocation9 + $0xb0] sm:$0xff]
    %v3903 = vld [vmem:[#allocation9 + $0xb8] sm:$0xff]
    %v3904 = vld [vmem:[#allocation9 + $0xc0] sm:$0xff]
    %v3905 = vld [vmem:[#allocation9 + $0xc8] sm:$0xff]
    %v3906 = vld [vmem:[#allocation9 + $0xd0] sm:$0xff]
    %v3907 = vld [vmem:[#allocation9 + $0xd8] sm:$0xff]
    %v3908 = vld [vmem:[#allocation9 + $0xe0] sm:$0xff]
    %v3909 = vld [vmem:[#allocation9 + $0xe8] sm:$0xff]
    %v3910 = vld [vmem:[#allocation9 + $0xf0] sm:$0xff]
    %v3911 = vld [vmem:[#allocation9 + $0xf8] sm:$0xff]
    %v3912 = vld [vmem:[#allocation9 + $0x100] sm:$0xff]
    %v3913 = vld [vmem:[#allocation9 + $0x108] sm:$0xff]
    %v3914 = vld [vmem:[#allocation9 + $0x110] sm:$0xff]
    %v3915 = vld [vmem:[#allocation9 + $0x118] sm:$0xff]
    %v3916 = vld [vmem:[#allocation9 + $0x120] sm:$0xff]
    %v3917 = vld [vmem:[#allocation9 + $0x128] sm:$0xff]
    %v3918 = vld [vmem:[#allocation9 + $0x130] sm:$0xff]
    %v3919 = vld [vmem:[#allocation9 + $0x138] sm:$0xff]
    %v3920 = vld [vmem:[#allocation9 + $0x140] sm:$0xff]
    %v3921 = vld [vmem:[#allocation9 + $0x148] sm:$0xff]
    %v3922 = vld [vmem:[#allocation9 + $0x150] sm:$0xff]
    %v3923 = vld [vmem:[#allocation9 + $0x158] sm:$0xff]
    %v3924 = vld [vmem:[#allocation9 + $0x160] sm:$0xff]
    %v3925 = vld [vmem:[#allocation9 + $0x168] sm:$0xff]
    %v3926 = vld [vmem:[#allocation9 + $0x170] sm:$0xff]
    %v3927 = vld [vmem:[#allocation9 + $0x178] sm:$0xff]
    %3928 = vmatprep.subr.mxu0 %v3881
    %3929 = vmatpush1.msra.mxu0 %v3880
    %3930 = vmatprep.subr.mxu0 %v3884
    %3931 = vmatpush1.msra.mxu0 %v3883
    %3932 = vmatprep.subr.mxu0 %v3887
    %3933 = vmatpush1.msra.mxu0 %v3886
    %3934 = vmatprep.subr.mxu0 %v3890
    %3935 = vmatpush1.msra.mxu0 %v3889
    %3936 = vmatprep.subr.mxu0 %v3893
    %3937 = vmatpush1.msra.mxu0 %v3892
    %3938 = vmatprep.subr.mxu0 %v3896
    %3939 = vmatpush1.msra.mxu0 %v3895
    %3940 = vmatprep.subr.mxu0 %v3899
    %3941 = vmatpush1.msra.mxu0 %v3898
    %3942 = vmatprep.subr.mxu0 %v3902
    %3943 = vmatpush1.msra.mxu0 %v3901
    %3944 = vmatprep.subr.mxu0 %v3905
    %3945 = vmatpush1.msra.mxu0 %v3904
    %3946 = vmatprep.subr.mxu0 %v3908
    %3947 = vmatpush1.msra.mxu0 %v3907
    %3948 = vmatprep.subr.mxu0 %v3911
    %3949 = vmatpush1.msra.mxu0 %v3910
    %3950 = vmatprep.subr.mxu0 %v3914
    %3951 = vmatpush1.msra.mxu0 %v3913
    %3952 = vmatprep.subr.mxu0 %v3917
    %3953 = vmatpush1.msra.mxu0 %v3916
    %3954 = vmatprep.subr.mxu0 %v3920
    %3955 = vmatpush1.msra.mxu0 %v3919
    %3956 = vmatprep.subr.mxu0 %v3923
    %3957 = vmatpush1.msra.mxu0 %v3922
    %3958 = vmatprep.subr.mxu0 %v3926
    %3959 = vmatpush1.msra.mxu0 %v3925
    %3960 = vmatprep.subr.mxu0 0.0
    %3961 = vmatpush1.msra.mxu0 0.0
    %3962 = vmatprep.subr.mxu0 0.0
    %3963 = vmatpush1.msra.mxu0 0.0
    %3964 = vmatprep.subr.mxu0 0.0
    %3965 = vmatpush1.msra.mxu0 0.0
    %3966 = vmatprep.subr.mxu0 0.0
    %3967 = vmatpush1.msra.mxu0 0.0
    %3968 = vmatprep.subr.mxu0 0.0
    %3969 = vmatpush1.msra.mxu0 0.0
    %3970 = vmatprep.subr.mxu0 0.0
    %3971 = vmatpush1.msra.mxu0 0.0
    %3972 = vmatprep.subr.mxu0 0.0
    %3973 = vmatpush1.msra.mxu0 0.0
    %3974 = vmatprep.subr.mxu0 0.0
    %3975 = vmatpush1.msra.mxu0 0.0
    %3976 = vmatprep.subr.mxu0 0.0
    %3977 = vmatpush1.msra.mxu0 0.0
    %3978 = vmatprep.subr.mxu0 0.0
    %3979 = vmatpush1.msra.mxu0 0.0
    %3980 = vmatprep.subr.mxu0 0.0
    %3981 = vmatpush1.msra.mxu0 0.0
    %3982 = vmatprep.subr.mxu0 0.0
    %3983 = vmatpush1.msra.mxu0 0.0
    %3984 = vmatprep.subr.mxu0 0.0
    %3985 = vmatpush1.msra.mxu0 0.0
    %3986 = vmatprep.subr.mxu0 0.0
    %3987 = vmatpush1.msra.mxu0 0.0
    %3988 = vmatprep.subr.mxu0 0.0
    %3989 = vmatpush1.msra.mxu0 0.0
    %3990 = vmatprep.subr.mxu0 0.0
    %3991 = vmatpush1.msra.mxu0 0.0
    %3992 = vmatprep.mubr.f32.mxu0 0.0
    %3993 = vmatmul.mubr.f32.gmra.mrb[0].mxu0 %v3583
    %v3994 = vpop.f32.mrb[0].mxu0
    %v3995 = vadd.f32 %v373, %v3994
    %v3996 = vpop.f32.mrb[0].mxu0
    %v3997 = vadd.f32 %v377, %v3996
    %3998 = vdwg.mxu0
    %3999 = vmatprep.subr.mxu0 0.0
    %4000 = vmatpush1.msra.mxu0 %v3882
    %4001 = vmatprep.subr.mxu0 0.0
    %4002 = vmatpush1.msra.mxu0 %v3885
    %4003 = vmatprep.subr.mxu0 0.0
    %4004 = vmatpush1.msra.mxu0 %v3888
    %4005 = vmatprep.subr.mxu0 0.0
    %4006 = vmatpush1.msra.mxu0 %v3891
    %4007 = vmatprep.subr.mxu0 0.0
    %4008 = vmatpush1.msra.mxu0 %v3894
    %4009 = vmatprep.subr.mxu0 0.0
    %4010 = vmatpush1.msra.mxu0 %v3897
    %4011 = vmatprep.subr.mxu0 0.0
    %4012 = vmatpush1.msra.mxu0 %v3900
    %4013 = vmatprep.subr.mxu0 0.0
    %4014 = vmatpush1.msra.mxu0 %v3903
    %4015 = vmatprep.subr.mxu0 0.0
    %4016 = vmatpush1.msra.mxu0 %v3906
    %4017 = vmatprep.subr.mxu0 0.0
    %4018 = vmatpush1.msra.mxu0 %v3909
    %4019 = vmatprep.subr.mxu0 0.0
    %4020 = vmatpush1.msra.mxu0 %v3912
    %4021 = vmatprep.subr.mxu0 0.0
    %4022 = vmatpush1.msra.mxu0 %v3915
    %4023 = vmatprep.subr.mxu0 0.0
    %4024 = vmatpush1.msra.mxu0 %v3918
    %4025 = vmatprep.subr.mxu0 0.0
    %4026 = vmatpush1.msra.mxu0 %v3921
    %4027 = vmatprep.subr.mxu0 0.0
    %4028 = vmatpush1.msra.mxu0 %v3924
    %4029 = vmatprep.subr.mxu0 0.0
    %4030 = vmatpush1.msra.mxu0 %v3927
    %4031 = vmatprep.subr.mxu0 0.0
    %4032 = vmatpush1.msra.mxu0 0.0
    %4033 = vmatprep.subr.mxu0 0.0
    %4034 = vmatpush1.msra.mxu0 0.0
    %4035 = vmatprep.subr.mxu0 0.0
    %4036 = vmatpush1.msra.mxu0 0.0
    %4037 = vmatprep.subr.mxu0 0.0
    %4038 = vmatpush1.msra.mxu0 0.0
    %4039 = vmatprep.subr.mxu0 0.0
    %4040 = vmatpush1.msra.mxu0 0.0
    %4041 = vmatprep.subr.mxu0 0.0
    %4042 = vmatpush1.msra.mxu0 0.0
    %4043 = vmatprep.subr.mxu0 0.0
    %4044 = vmatpush1.msra.mxu0 0.0
    %4045 = vmatprep.subr.mxu0 0.0
    %4046 = vmatpush1.msra.mxu0 0.0
    %4047 = vmatprep.subr.mxu0 0.0
    %4048 = vmatpush1.msra.mxu0 0.0
    %4049 = vmatprep.subr.mxu0 0.0
    %4050 = vmatpush1.msra.mxu0 0.0
    %4051 = vmatprep.subr.mxu0 0.0
    %4052 = vmatpush1.msra.mxu0 0.0
    %4053 = vmatprep.subr.mxu0 0.0
    %4054 = vmatpush1.msra.mxu0 0.0
    %4055 = vmatprep.subr.mxu0 0.0
    %4056 = vmatpush1.msra.mxu0 0.0
    %4057 = vmatprep.subr.mxu0 0.0
    %4058 = vmatpush1.msra.mxu0 0.0
    %4059 = vmatprep.subr.mxu0 0.0
    %4060 = vmatpush1.msra.mxu0 0.0
    %4061 = vmatprep.subr.mxu0 0.0
    %4062 = vmatpush1.msra.mxu0 0.0
    %4063 = vmatprep.mubr.f32.mxu0 0.0
    %4064 = vmatmul.mubr.f32.gmra.mrb[0].mxu0 %v3583
    %v4065 = vpop.f32.mrb[0].mxu0
    %v4066 = vadd.f32 %v381, %v4065
    %v4067 = vpop.f32.mrb[0].mxu0
    %4068 = vdwg.mxu0
    %v4069 = vadd.f32 %v3806, %v3995
    %v4070 = vxor.u32 %v4069, 2147483648
    %v4071 = vmul.f32 %v4070, 1.442695
    %v4072 = vpow.pop %v4071
    %v4073 = vadd.f32 %v4072, 1.0
    %v4074 = vrcp.pop %v4073
    %v4075 = vmul.f32 1.0, %v4074
    %v4076 = vadd.f32 %v3808, %v3997
    %v4077 = vxor.u32 %v4076, 2147483648
    %v4078 = vmul.f32 %v4077, 1.442695
    %v4079 = vpow.pop %v4078
    %v4080 = vadd.f32 %v4079, 1.0
    %v4081 = vrcp.pop %v4080
    %v4082 = vmul.f32 1.0, %v4081
    %v4083 = vmul.f32 %v4075, %v4066
    %v4084 = vadd.f32 %v3877, %v4083
    %v4085 = vtanh.pop %v4084
    %v4086 = vsub.f32 1.0, %v4082
    %v4087 = vmul.f32 %v4086, %v4085
    %v4088 = vmul.f32 %v4082, %v3583
    %v4089 = vadd.f32 %v4087, %v4088
    %v4090 = vld [vmem:[#allocation10] sm:$0xff]
    %v4091 = vld [vmem:[#allocation10 + $0x8] sm:$0xff]
    %v4092 = vld [vmem:[#allocation10 + $0x10] sm:$0xff]
    %v4093 = vld [vmem:[#allocation10 + $0x18] sm:$0xff]
    %v4094 = vld [vmem:[#allocation10 + $0x20] sm:$0xff]
    %v4095 = vld [vmem:[#allocation10 + $0x28] sm:$0xff]
    %v4096 = vld [vmem:[#allocation10 + $0x30] sm:$0xff]
    %v4097 = vld [vmem:[#allocation10 + $0x38] sm:$0xff]
    %v4098 = vld [vmem:[#allocation10 + $0x40] sm:$0xff]
    %v4099 = vld [vmem:[#allocation10 + $0x48] sm:$0xff]
    %v4100 = vld [vmem:[#allocation10 + $0x50] sm:$0xff]
    %v4101 = vld [vmem:[#allocation10 + $0x58] sm:$0xff]
    %v4102 = vld [vmem:[#allocation10 + $0x60] sm:$0xff]
    %v4103 = vld [vmem:[#allocation10 + $0x68] sm:$0xff]
    %v4104 = vld [vmem:[#allocation10 + $0x70] sm:$0xff]
    %v4105 = vld [vmem:[#allocation10 + $0x78] sm:$0xff]
    %4106 = vmatprep.subr.mxu0 0.0
    %4107 = vmatpush1.msra.mxu0 %v4090
    %4108 = vmatprep.subr.mxu0 0.0
    %4109 = vmatpush1.msra.mxu0 %v4091
    %4110 = vmatprep.subr.mxu0 0.0
    %4111 = vmatpush1.msra.mxu0 %v4092
    %4112 = vmatprep.subr.mxu0 0.0
    %4113 = vmatpush1.msra.mxu0 %v4093
    %4114 = vmatprep.subr.mxu0 0.0
    %4115 = vmatpush1.msra.mxu0 %v4094
    %4116 = vmatprep.subr.mxu0 0.0
    %4117 = vmatpush1.msra.mxu0 %v4095
    %4118 = vmatprep.subr.mxu0 0.0
    %4119 = vmatpush1.msra.mxu0 %v4096
    %4120 = vmatprep.subr.mxu0 0.0
    %4121 = vmatpush1.msra.mxu0 %v4097
    %4122 = vmatprep.subr.mxu0 0.0
    %4123 = vmatpush1.msra.mxu0 %v4098
    %4124 = vmatprep.subr.mxu0 0.0
    %4125 = vmatpush1.msra.mxu0 %v4099
    %4126 = vmatprep.subr.mxu0 0.0
    %4127 = vmatpush1.msra.mxu0 %v4100
    %4128 = vmatprep.subr.mxu0 0.0
    %4129 = vmatpush1.msra.mxu0 %v4101
    %4130 = vmatprep.subr.mxu0 0.0
    %4131 = vmatpush1.msra.mxu0 %v4102
    %4132 = vmatprep.subr.mxu0 0.0
    %4133 = vmatpush1.msra.mxu0 %v4103
    %4134 = vmatprep.subr.mxu0 0.0
    %4135 = vmatpush1.msra.mxu0 %v4104
    %4136 = vmatprep.subr.mxu0 0.0
    %4137 = vmatpush1.msra.mxu0 %v4105
    %4138 = vmatprep.subr.mxu0 0.0
    %4139 = vmatpush1.msra.mxu0 0.0
    %4140 = vmatprep.subr.mxu0 0.0
    %4141 = vmatpush1.msra.mxu0 0.0
    %4142 = vmatprep.subr.mxu0 0.0
    %4143 = vmatpush1.msra.mxu0 0.0
    %4144 = vmatprep.subr.mxu0 0.0
    %4145 = vmatpush1.msra.mxu0 0.0
    %4146 = vmatprep.subr.mxu0 0.0
    %4147 = vmatpush1.msra.mxu0 0.0
    %4148 = vmatprep.subr.mxu0 0.0
    %4149 = vmatpush1.msra.mxu0 0.0
    %4150 = vmatprep.subr.mxu0 0.0
    %4151 = vmatpush1.msra.mxu0 0.0
    %4152 = vmatprep.subr.mxu0 0.0
    %4153 = vmatpush1.msra.mxu0 0.0
    %4154 = vmatprep.subr.mxu0 0.0
    %4155 = vmatpush1.msra.mxu0 0.0
    %4156 = vmatprep.subr.mxu0 0.0
    %4157 = vmatpush1.msra.mxu0 0.0
    %4158 = vmatprep.subr.mxu0 0.0
    %4159 = vmatpush1.msra.mxu0 0.0
    %4160 = vmatprep.subr.mxu0 0.0
    %4161 = vmatpush1.msra.mxu0 0.0
    %4162 = vmatprep.subr.mxu0 0.0
    %4163 = vmatpush1.msra.mxu0 0.0
    %4164 = vmatprep.subr.mxu0 0.0
    %4165 = vmatpush1.msra.mxu0 0.0
    %4166 = vmatprep.subr.mxu0 0.0
    %4167 = vmatpush1.msra.mxu0 0.0
    %4168 = vmatprep.subr.mxu0 0.0
    %4169 = vmatpush1.msra.mxu0 0.0
    %4170 = vmatprep.mubr.f32.mxu0 0.0
    %4171 = vmatmul.mubr.f32.gmra.mrb[0].mxu0 %v4089
    %v4172 = vpop.f32.mrb[0].mxu0
    %v4173 = vadd.f32 %v106, %v4172
    %v4174 = vpop.f32.mrb[0].mxu0
    %4175 = vdwg.mxu0
    %v4176 = vsel %vm633, %v4173, -inf
    %4177 = vmax.xlane.f32.xlu0 %v4176
    %v4178 = vpop.xlane.xlu0 %4177
    %v4179 = vsub.f32 %v4173, %v4178
    %v4180 = vmul.f32 %v4179, 1.442695
    %v4181 = vpow.pop %v4180
    %v4182 = vsel %vm633, %v4181, 0.0
    %4183 = vadd.xlane.f32.xlu0 %v4182
    %v4184 = vpop.xlane.xlu0 %4183
    %v4185 = vlog2.pop %v4184
    %v4186 = vmul.f32 %v4185, 0.6931472
    %v4187 = vsub.f32 %v4179, %v4186
    %4188 = vst [vmem:[#allocation12 + $0x7] sm:$0x1] %v4187
    %4189 = vst [vmem:[#allocation13] sm:$0x1] %v4089
    // Predicated region
    $region58: #{decoder_rnn_decode.1} parent=1 // pred_check
      _
    $region59: #{decoder_rnn_decode.1} parent=1 // pred_check_branch
      %4191 = sbr.rel (0) target = $region61
    $region60: #{decoder_rnn_decode.1} parent=1 // pred_region
      %s4193 = ssub.s32 128, 128
      %4194 = vsyncadd [#allocation4], %s4193
      %s4196 = sshll.u32 [#allocation12], 4
      %s4197 = int_to_ptr.vmem [resolvable:$true] %s4196
      %4199 = dma.vmem_to_hbm [thread:$0]  %s4197, 128, %s9, [#allocation4]
    $region61: #{decoder_rnn_decode.1} parent=1 // pred_fallthru
      _
    // Predicated region
    $region62: #{decoder_rnn_decode.1} parent=1 // pred_check
      _
    $region63: #{decoder_rnn_decode.1} parent=1 // pred_check_branch
      %4201 = sbr.rel (0) target = $region65
    $region64: #{decoder_rnn_decode.1} parent=1 // pred_region
      %s4203 = ssub.s32 16, 16
      %4204 = vsyncadd [#allocation14], %s4203
      %s4206 = sshll.u32 [#allocation13], 4
      %s4207 = int_to_ptr.vmem [resolvable:$true] %s4206
      %4209 = dma.vmem_to_hbm [thread:$0]  %s4207, 16, %s10, [#allocation14]
    $region65: #{decoder_rnn_decode.1} parent=1 // pred_fallthru
      _
    // Predicated region
    $region66: #{decoder_rnn_decode.1} parent=1 // pred_check
      _
    $region67: #{decoder_rnn_decode.1} parent=1 // pred_check_branch
      %4211 = sbr.rel (0) target = $region69
    $region68: #{decoder_rnn_decode.1} parent=1 // pred_region
      %4212 = dma.done [#allocation4], 128
    $region69: #{decoder_rnn_decode.1} parent=1 // pred_fallthru
      _
    // Predicated region
    $region70: #{decoder_rnn_decode.1} parent=1 // pred_check
      _
    $region71: #{decoder_rnn_decode.1} parent=1 // pred_check_branch
      %4214 = sbr.rel (0) target = $region73
    $region72: #{decoder_rnn_decode.1} parent=1 // pred_region
      %4215 = dma.done [#allocation14], 16
    $region73: #{decoder_rnn_decode.1} parent=1 // pred_fallthru
      _
    %4216 = vsyncpa [#allocation3], 1
    %4217 = vsyncpa [#allocation8], 1
    %4218 = vsyncpa [#allocation11], 1
    %4219 = vsyncpa [#allocation4], 1
    %4220 = vsyncpa [#allocation14], 1
    %4221 = vsyncpa [#allocation5], 1

</llo_original>
